<compile_context>
chip_gen: v6e
topology: v6e:2x2x1
jax: 0.10.0
libtpu: 0.0.40
codegen_flags: <defaults>
</compile_context>

<pallas_src>
import functools

import numpy as np
import jax
import jax.numpy as jnp
from jax import lax
from jax.experimental import pallas as pl
from jax.experimental.pallas import tpu as pltpu


def _softplus(x):
    # numerically-stable softplus for BCEWithLogits
    return jnp.maximum(x, 0.0) + jnp.log1p(jnp.exp(-jnp.abs(x)))


def _vmem_limit_bytes():
    """Scoped-VMEM limit sized against the current generation's physical VMEM
    (v7x has only 64 MiB/TC), with headroom for compiler-internal scratch."""
    try:
        cap = pltpu.get_tpu_info().vmem_capacity_bytes
    except Exception:  # attribute / query not available -> conservative default
        cap = 64 * 1024 * 1024
    return min(int(cap) * 4 // 5, 100 * 1024 * 1024)


# ------------------------------ encoder kernel -------------------------------
def encode_kernel(x_ref, w_ref, b_ref, zs_ref):
    # zs = x @ W_enc + b_enc, emitted in bf16 for the downstream MXU matmuls.
    zs_ref[...] = (
        jnp.dot(x_ref[...].astype(jnp.bfloat16), w_ref[...],
                preferred_element_type=jnp.float32)
        + b_ref[...]
    ).astype(zs_ref.dtype)


# ----------------------------- edge-loss kernel -------------------------------
def edge_loss_kernel(idx_ref, zs_ref, w1a_ref, w1b_ref, b1_ref, w2_ref, b2_ref,
                     part_ref, *, n_edges, tile_e):
    pid = pl.program_id(0)
    te = tile_e

    zs = zs_ref[...]                                   # (N, H) bf16, VMEM
    n_nodes = zs.shape[0]

    # ---- fused gather: one (3*tE, N) one-hot, ONE MXU matmul ----------------
    idx = idx_ref[...]                                 # (3*tE, 1) [src; dst; neg]
    cols = lax.broadcasted_iota(jnp.int32, (3 * te, n_nodes), 1)
    onehot = (cols == idx).astype(jnp.bfloat16)        # exact 0/1 in bf16
    z_all = jnp.dot(onehot, zs,
                    preferred_element_type=jnp.float32).astype(jnp.bfloat16)
    z_src = z_all[:te]                                 # (tE,  H)
    z_dn = z_all[te:]                                  # (2tE, H) stacked [dst; neg]

    # ---- detector layer 1: W1b applied ONCE to the stacked [dst; neg] -------
    h_a = jnp.dot(z_src, w1a_ref[...], preferred_element_type=jnp.float32)
    h_b = jnp.dot(z_dn, w1b_ref[...], preferred_element_type=jnp.float32)
    ha_b1 = h_a + b1_ref[...]
    h_pos = jnp.maximum(ha_b1 + h_b[:te], 0.0)         # (tE, D)
    h_neg = jnp.maximum(ha_b1 + h_b[te:], 0.0)

    # ---- width-1 output matmul -> VPU multiply + lane (XLU) reduce -----------
    w2 = w2_ref[...]                                   # (1, D) f32
    b2 = b2_ref[0, 0]                                  # scalar from SMEM
    pos_logit = jnp.sum(h_pos * w2, axis=-1, keepdims=True) + b2   # (tE, 1)
    neg_logit = jnp.sum(h_neg * w2, axis=-1, keepdims=True) + b2

    # ---- masked BCEWithLogits partial sum (pos label 1, neg label 0) ---------
    # softplus(x) - x == softplus(-x)
    row = pid * te + lax.broadcasted_iota(jnp.int32, (te, 1), 0)
    valid = (row < n_edges).astype(jnp.float32)
    contrib = valid * (_softplus(-pos_logit) + _softplus(neg_logit))
    part_ref[...] = jnp.sum(contrib, keepdims=True)    # (1, 1) per-tile partial


# --------------------------------- wrapper ------------------------------------
def pipeline_loss(x, src, dst, neg, params, *, tile_e=256):
    """Fused forward: encode -> gather pos/neg edge endpoints -> detector ->
    mean BCEWithLogits loss over the concatenated 2E logits (= Pipeline.forward)."""
    n, f = x.shape
    h = params["w_enc"].shape[1]
    d = params["w1a"].shape[1]
    e = src.shape[0]

    # ---- stage 1: one-shot node encoder (zs in bf16) -------------------------
    w_enc = params["w_enc"].astype(jnp.bfloat16)
    b_enc = params["b_enc"].reshape(1, h).astype(jnp.float32)
    zs = pl.pallas_call(
        encode_kernel,
        out_shape=jax.ShapeDtypeStruct((n, h), jnp.bfloat16),
        grid=(1,),
        in_specs=[pl.BlockSpec((n, f), lambda i: (0, 0)),
                  pl.BlockSpec((f, h), lambda i: (0, 0)),
                  pl.BlockSpec((1, h), lambda i: (0, 0))],
        out_specs=pl.BlockSpec((n, h), lambda i: (0, 0)),
        compiler_params=pltpu.CompilerParams(
            dimension_semantics=("arbitrary",)),
    )(x, w_enc, b_enc)

    # ---- stage 2: edge tiles, per-tile partial losses, "parallel" grid -------
    num_tiles = pl.cdiv(e, tile_e)
    e_pad = num_tiles * tile_e
    pad = e_pad - e

    def pack(a):  # (E,) -> (num_tiles, tile_e) int32 (padded rows index node 0)
        return jnp.pad(a.astype(jnp.int32), (0, pad)).reshape(num_tiles, tile_e)

    # per-tile stacked indices, ordered [src ; dst ; neg] -> one DMA per tile
    idx_all = jnp.stack([pack(src), pack(dst), pack(neg)], axis=1)
    idx_all = idx_all.reshape(num_tiles, 3 * tile_e, 1)

    w1a = params["w1a"].astype(jnp.bfloat16)
    w1b = params["w1b"].astype(jnp.bfloat16)
    b1 = params["b1"].reshape(1, d).astype(jnp.float32)
    w2 = params["w2"].reshape(1, d).astype(jnp.float32)
    b2 = params["b2"].reshape(1, 1).astype(jnp.float32)

    kernel = functools.partial(edge_loss_kernel, n_edges=e, tile_e=tile_e)
    invariant = lambda shape: pl.BlockSpec(shape, lambda i: (0, 0))

    partials = pl.pallas_call(
        kernel,
        out_shape=jax.ShapeDtypeStruct((num_tiles, 1, 1), jnp.float32),
        grid=(num_tiles,),
        in_specs=[
            pl.BlockSpec((None, 3 * tile_e, 1), lambda i: (i, 0, 0)),   # indices
            invariant((n, h)),                                          # zs (bf16)
            invariant((h, d)),                                          # W1a (bf16)
            invariant((h, d)),                                          # W1b (bf16)
            invariant((1, d)),                                          # b1
            invariant((1, d)),                                          # w2 row
            pl.BlockSpec(memory_space=pltpu.MemorySpace.SMEM),          # b2 scalar
        ],
        out_specs=pl.BlockSpec((None, 1, 1), lambda i: (i, 0, 0)),
        compiler_params=pltpu.CompilerParams(
            dimension_semantics=("parallel",),      # independent tiles -> megacore OK
            vmem_limit_bytes=_vmem_limit_bytes(),
        ),
    )(idx_all, zs, w1a, w1b, b1, w2, b2)

    # mean over ALL 2E concatenated logits (nn.BCEWithLogitsLoss default 'mean')
    return jnp.sum(partials) * (1.0 / (2.0 * e))


# ----------------------- host-side CSR expansion (hoisted) --------------------
def build_edge_lists(csr_ptr, edge_index, batch):
    """CSR neighbor expansion for the batch nodes. Done ONCE on the host,
    outside the per-forward path (avoids per-call Python loops / recompiles)."""
    src_list, dst_list = [], []
    for nid in np.asarray(batch):
        st, en = int(csr_ptr[nid]), int(csr_ptr[nid + 1])
        dst_list.append(np.asarray(edge_index[st:en], dtype=np.int32))
        src_list.append(np.full(en - st, nid, dtype=np.int32))
    return (np.concatenate(src_list).astype(np.int32),
            np.concatenate(dst_list).astype(np.int32))


# ----------------------------- pure-JAX reference -----------------------------
def pipeline_loss_ref(x, src, dst, neg, params):
    zs = x @ params["w_enc"] + params["b_enc"]
    w1 = jnp.concatenate([params["w1a"], params["w1b"]], axis=0)

    def detector(z_s, z_d):
        hcat = jnp.concatenate([z_s, z_d], axis=-1)
        hid = jnp.maximum(hcat @ w1 + params["b1"], 0.0)
        return hid @ params["w2"] + params["b2"]

    pos = detector(zs[src], zs[dst])
    neg_l = detector(zs[src], zs[neg])
    logits = jnp.concatenate([pos, neg_l], axis=0)[:, 0]
    labels = jnp.concatenate([jnp.ones_like(pos), jnp.zeros_like(neg_l)], axis=0)[:, 0]
    return jnp.mean(_softplus(logits) - labels * logits)


if __name__ == "__main__":
    # small, deterministic, lane-dense problem
    N, F, H, D = 32, 128, 128, 128     # nodes, feat dim, embed dim, detector hidden
    B, DEG = 8, 32                     # batch nodes, fixed out-degree -> E = 256
    key = jax.random.PRNGKey(0)
    k_x, k_we, k_w1a, k_w1b, k_w2, k_neg = jax.random.split(key, 6)

    # node features
    x = jax.random.normal(k_x, (N, F), dtype=jnp.float32)

    # synthetic CSR graph: node i -> (i+1 .. i+DEG) mod N
    edge_index = np.concatenate(
        [np.arange(i + 1, i + 1 + DEG) % N for i in range(N)]).astype(np.int32)
    csr_ptr = (np.arange(N + 1) * DEG).astype(np.int32)
    batch = np.arange(B, dtype=np.int32)

    # deterministic parameters (synthetic tgat encoder + detector MLP)
    params = {
        "w_enc": jax.random.normal(k_we, (F, H), dtype=jnp.float32) * 0.1,
        "b_enc": jnp.zeros((H,), dtype=jnp.float32),
        "w1a": jax.random.normal(k_w1a, (H, D), dtype=jnp.float32) * 0.1,
        "w1b": jax.random.normal(k_w1b, (H, D), dtype=jnp.float32) * 0.1,
        "b1": jnp.zeros((D,), dtype=jnp.float32),
        "w2": jax.random.normal(k_w2, (D, 1), dtype=jnp.float32) * 0.1,
        "b2": jnp.zeros((1,), dtype=jnp.float32),
    }

    # hoisted graph glue + deterministic negative sampling (torch.randint analog)
    src_np, dst_np = build_edge_lists(csr_ptr, edge_index, batch)
    src = jnp.asarray(src_np)
    dst = jnp.asarray(dst_np)
    neg = jax.random.randint(k_neg, dst.shape, 0, N, dtype=jnp.int32)

    loss_fn = jax.jit(pipeline_loss)
    loss = loss_fn(x, src, dst, neg, params)
    jax.block_until_ready(loss)

    ref = pipeline_loss_ref(x, src, dst, neg, params)
    assert jnp.isfinite(loss)
    assert jnp.abs(loss - ref) < 7.5e-2, (float(loss), float(ref))
    print("KERNEL_OK")
</pallas_src>

<mosaic_0001>
module attributes {stable_mosaic.version = 11 : i64} {
  func.func @encode_kernel(%arg0: i32, %arg1: memref<32x128xf32, #tpu.memory_space<vmem>>, %arg2: memref<128x128xbf16, #tpu.memory_space<vmem>>, %arg3: memref<1x128xf32, #tpu.memory_space<vmem>>, %arg4: memref<32x128xbf16, #tpu.memory_space<vmem>>) attributes {dimension_semantics = [#tpu.dimension_semantics<arbitrary>], iteration_bounds = array<i64: 1>, scalar_prefetch = 0 : i64, scratch_operands = 0 : i64, tpu.core_type = #tpu.core_type<tc>, window_params = [{pipeline_mode = #tpu.pipeline_mode<synchronous>, transform_indices = @transform_0, window_bounds = array<i64: 32, 128>}, {pipeline_mode = #tpu.pipeline_mode<synchronous>, transform_indices = @transform_1, window_bounds = array<i64: 128, 128>}, {pipeline_mode = #tpu.pipeline_mode<synchronous>, transform_indices = @transform_2, window_bounds = array<i64: 1, 128>}, {pipeline_mode = #tpu.pipeline_mode<synchronous>, transform_indices = @transform_3, window_bounds = array<i64: 32, 128>}]} {
    %c0 = arith.constant 0 : index
    %c0_0 = arith.constant 0 : index
    %0 = vector.load %arg1[%c0, %c0_0] : memref<32x128xf32, #tpu.memory_space<vmem>>, vector<32x128xf32>
    %1 = arith.truncf %0 : vector<32x128xf32> to vector<32x128xbf16>
    %c0_1 = arith.constant 0 : index
    %c0_2 = arith.constant 0 : index
    %2 = vector.load %arg2[%c0_1, %c0_2] : memref<128x128xbf16, #tpu.memory_space<vmem>>, vector<128x128xbf16>
    %cst = arith.constant dense<0.000000e+00> : vector<32x128xf32>
    %3 = tpu.matmul %1, %2, %cst {dimension_numbers = #tpu.dot_dimension_numbers<[1], [0], [0], [1], [0, 0, 1, 1], [], []>} : vector<32x128xbf16>, vector<128x128xbf16>, vector<32x128xf32> -> vector<32x128xf32>
    %c0_3 = arith.constant 0 : index
    %c0_4 = arith.constant 0 : index
    %4 = vector.load %arg3[%c0_3, %c0_4] : memref<1x128xf32, #tpu.memory_space<vmem>>, vector<1x128xf32>
    %5 = vector.broadcast %4 : vector<1x128xf32> to vector<32x128xf32>
    %6 = arith.addf %3, %5 : vector<32x128xf32>
    %7 = arith.truncf %6 : vector<32x128xf32> to vector<32x128xbf16>
    %c0_5 = arith.constant 0 : index
    %c0_6 = arith.constant 0 : index
    %8 = vector.load %arg4[%c0_5, %c0_6] : memref<32x128xbf16, #tpu.memory_space<vmem>>, vector<32x128xbf16>
    tpu.vector_store %arg4[%c0_5, %c0_6], %7 {strides = array<i32>} : memref<32x128xbf16, #tpu.memory_space<vmem>>, vector<32x128xbf16>,
    return
  }
  func.func @transform_0(%arg0: i32) -> (i32, i32) {
    %c0_i32 = arith.constant 0 : i32
    %c0_i32_0 = arith.constant 0 : i32
    %c0_i32_1 = arith.constant 0 : i32
    return %c0_i32, %c0_i32_0 : i32, i32
  }
  func.func @transform_1(%arg0: i32) -> (i32, i32) {
    %c0_i32 = arith.constant 0 : i32
    %c0_i32_0 = arith.constant 0 : i32
    %c0_i32_1 = arith.constant 0 : i32
    return %c0_i32, %c0_i32_0 : i32, i32
  }
  func.func @transform_2(%arg0: i32) -> (i32, i32) {
    %c0_i32 = arith.constant 0 : i32
    %c0_i32_0 = arith.constant 0 : i32
    %c0_i32_1 = arith.constant 0 : i32
    return %c0_i32, %c0_i32_0 : i32, i32
  }
  func.func @transform_3(%arg0: i32) -> (i32, i32) {
    %c0_i32 = arith.constant 0 : i32
    %c0_i32_0 = arith.constant 0 : i32
    %c0_i32_1 = arith.constant 0 : i32
    return %c0_i32, %c0_i32_0 : i32, i32
  }
}

module attributes {stable_mosaic.version = 11 : i64} {
  func.func @edge_loss_kernel(%arg0: i32, %arg1: memref<1x768x1xi32, #tpu.memory_space<vmem>>, %arg2: memref<32x128xbf16, #tpu.memory_space<vmem>>, %arg3: memref<128x128xbf16, #tpu.memory_space<vmem>>, %arg4: memref<128x128xbf16, #tpu.memory_space<vmem>>, %arg5: memref<1x128xf32, #tpu.memory_space<vmem>>, %arg6: memref<1x128xf32, #tpu.memory_space<vmem>>, %arg7: memref<1x1xf32, #tpu.memory_space<smem>>, %arg8: memref<1x1x1xf32, #tpu.memory_space<vmem>>) attributes {dimension_semantics = [#tpu.dimension_semantics<parallel>], iteration_bounds = array<i64: 1>, scalar_prefetch = 0 : i64, scratch_operands = 0 : i64, tpu.core_type = #tpu.core_type<tc>, window_params = [{transform_indices = @transform_0, window_bounds = array<i64: 1, 768, 1>}, {pipeline_mode = #tpu.pipeline_mode<synchronous>, transform_indices = @transform_1, window_bounds = array<i64: 32, 128>}, {pipeline_mode = #tpu.pipeline_mode<synchronous>, transform_indices = @transform_2, window_bounds = array<i64: 128, 128>}, {pipeline_mode = #tpu.pipeline_mode<synchronous>, transform_indices = @transform_3, window_bounds = array<i64: 128, 128>}, {pipeline_mode = #tpu.pipeline_mode<synchronous>, transform_indices = @transform_4, window_bounds = array<i64: 1, 128>}, {pipeline_mode = #tpu.pipeline_mode<synchronous>, transform_indices = @transform_5, window_bounds = array<i64: 1, 128>}, {transform_indices = @transform_6, window_bounds = array<i64: 1, 1>}, {transform_indices = @transform_7, window_bounds = array<i64: 1, 1, 1>}]} {
    %c0 = arith.constant 0 : index
    %c0_0 = arith.constant 0 : index
    %0 = vector.load %arg2[%c0, %c0_0] : memref<32x128xbf16, #tpu.memory_space<vmem>>, vector<32x128xbf16>
    %c0_1 = arith.constant 0 : index
    %c0_2 = arith.constant 0 : index
    %c0_3 = arith.constant 0 : index
    %1 = vector.load %arg1[%c0_1, %c0_2, %c0_3] : memref<1x768x1xi32, #tpu.memory_space<vmem>>, vector<1x768x1xi32>
    %2 = vector.shape_cast %1 : vector<1x768x1xi32> to vector<768x1xi32>
    %3 = tpu.iota {dimensions = array<i32: 1>} : vector<768x32xi32>
    %4 = vector.broadcast %2 : vector<768x1xi32> to vector<768x32xi32>
    %5 = arith.cmpi eq, %3, %4 : vector<768x32xi32>
    %6 = arith.extui %5 : vector<768x32xi1> to vector<768x32xi32>
    %7 = arith.sitofp %6 : vector<768x32xi32> to vector<768x32xf32>
    %8 = arith.truncf %7 : vector<768x32xf32> to vector<768x32xbf16>
    %cst = arith.constant dense<0.000000e+00> : vector<768x128xf32>
    %9 = tpu.matmul %8, %0, %cst {dimension_numbers = #tpu.dot_dimension_numbers<[1], [0], [0], [1], [0, 0, 1, 1], [], []>} : vector<768x32xbf16>, vector<32x128xbf16>, vector<768x128xf32> -> vector<768x128xf32>
    %10 = arith.truncf %9 : vector<768x128xf32> to vector<768x128xbf16>
    %11 = vector.extract_strided_slice %10 {offsets = [0, 0], sizes = [256, 128], strides = [1, 1]} : vector<768x128xbf16> to vector<256x128xbf16>
    %12 = vector.extract_strided_slice %10 {offsets = [256, 0], sizes = [512, 128], strides = [1, 1]} : vector<768x128xbf16> to vector<512x128xbf16>
    %c0_4 = arith.constant 0 : index
    %c0_5 = arith.constant 0 : index
    %13 = vector.load %arg3[%c0_4, %c0_5] : memref<128x128xbf16, #tpu.memory_space<vmem>>, vector<128x128xbf16>
    %cst_6 = arith.constant dense<0.000000e+00> : vector<256x128xf32>
    %14 = tpu.matmul %11, %13, %cst_6 {dimension_numbers = #tpu.dot_dimension_numbers<[1], [0], [0], [1], [0, 0, 1, 1], [], []>} : vector<256x128xbf16>, vector<128x128xbf16>, vector<256x128xf32> -> vector<256x128xf32>
    %c0_7 = arith.constant 0 : index
    %c0_8 = arith.constant 0 : index
    %15 = vector.load %arg4[%c0_7, %c0_8] : memref<128x128xbf16, #tpu.memory_space<vmem>>, vector<128x128xbf16>
    %cst_9 = arith.constant dense<0.000000e+00> : vector<512x128xf32>
    %16 = tpu.matmul %12, %15, %cst_9 {dimension_numbers = #tpu.dot_dimension_numbers<[1], [0], [0], [1], [0, 0, 1, 1], [], []>} : vector<512x128xbf16>, vector<128x128xbf16>, vector<512x128xf32> -> vector<512x128xf32>
    %c0_10 = arith.constant 0 : index
    %c0_11 = arith.constant 0 : index
    %17 = vector.load %arg5[%c0_10, %c0_11] : memref<1x128xf32, #tpu.memory_space<vmem>>, vector<1x128xf32>
    %18 = vector.broadcast %17 : vector<1x128xf32> to vector<256x128xf32>
    %19 = arith.addf %14, %18 : vector<256x128xf32>
    %20 = vector.extract_strided_slice %16 {offsets = [0, 0], sizes = [256, 128], strides = [1, 1]} : vector<512x128xf32> to vector<256x128xf32>
    %21 = arith.addf %19, %20 : vector<256x128xf32>
    %cst_12 = arith.constant 0.000000e+00 : f32
    %22 = vector.broadcast %cst_12 : f32 to vector<256x128xf32>
    %23 = arith.maximumf %21, %22 : vector<256x128xf32>
    %24 = vector.extract_strided_slice %16 {offsets = [256, 0], sizes = [256, 128], strides = [1, 1]} : vector<512x128xf32> to vector<256x128xf32>
    %25 = arith.addf %19, %24 : vector<256x128xf32>
    %cst_13 = arith.constant 0.000000e+00 : f32
    %26 = vector.broadcast %cst_13 : f32 to vector<256x128xf32>
    %27 = arith.maximumf %25, %26 : vector<256x128xf32>
    %c0_14 = arith.constant 0 : index
    %c0_15 = arith.constant 0 : index
    %28 = vector.load %arg6[%c0_14, %c0_15] : memref<1x128xf32, #tpu.memory_space<vmem>>, vector<1x128xf32>
    %c0_16 = arith.constant 0 : index
    %c0_17 = arith.constant 0 : index
    %29 = memref.load %arg7[%c0_16, %c0_17] : memref<1x1xf32, #tpu.memory_space<smem>>
    %30 = vector.broadcast %28 : vector<1x128xf32> to vector<256x128xf32>
    %31 = arith.mulf %23, %30 : vector<256x128xf32>
    %cst_18 = arith.constant dense<0.000000e+00> : vector<256xf32>
    %32 = vector.multi_reduction <add>, %31, %cst_18 [1] : vector<256x128xf32> to vector<256xf32>
    %33 = vector.shape_cast %32 : vector<256xf32> to vector<256x1xf32>
    %34 = vector.broadcast %29 : f32 to vector<256x1xf32>
    %35 = arith.addf %33, %34 : vector<256x1xf32>
    %36 = vector.broadcast %28 : vector<1x128xf32> to vector<256x128xf32>
    %37 = arith.mulf %27, %36 : vector<256x128xf32>
    %cst_19 = arith.constant dense<0.000000e+00> : vector<256xf32>
    %38 = vector.multi_reduction <add>, %37, %cst_19 [1] : vector<256x128xf32> to vector<256xf32>
    %39 = vector.shape_cast %38 : vector<256xf32> to vector<256x1xf32>
    %40 = vector.broadcast %29 : f32 to vector<256x1xf32>
    %41 = arith.addf %39, %40 : vector<256x1xf32>
    %c256_i32 = arith.constant 256 : i32
    %42 = arith.muli %arg0, %c256_i32 : i32
    %43 = tpu.iota {dimensions = array<i32: 0>} : vector<256x1xi32>
    %44 = vector.broadcast %42 : i32 to vector<256x1xi32>
    %45 = arith.addi %44, %43 : vector<256x1xi32>
    %c256_i32_20 = arith.constant 256 : i32
    %46 = vector.broadcast %c256_i32_20 : i32 to vector<256x1xi32>
    %47 = arith.cmpi slt, %45, %46 : vector<256x1xi32>
    %48 = arith.extui %47 : vector<256x1xi1> to vector<256x1xi32>
    %49 = arith.sitofp %48 : vector<256x1xi32> to vector<256x1xf32>
    %cst_21 = arith.constant 0.000000e+00 : f32
    %50 = vector.broadcast %cst_21 : f32 to vector<256x1xf32>
    %51 = arith.subf %50, %35 : vector<256x1xf32>
    %cst_22 = arith.constant 0.000000e+00 : f32
    %52 = vector.broadcast %cst_22 : f32 to vector<256x1xf32>
    %53 = arith.maximumf %51, %52 : vector<256x1xf32>
    %54 = math.absf %51 : vector<256x1xf32>
    %cst_23 = arith.constant 0.000000e+00 : f32
    %55 = vector.broadcast %cst_23 : f32 to vector<256x1xf32>
    %56 = arith.subf %55, %54 : vector<256x1xf32>
    %57 = math.exp %56 : vector<256x1xf32>
    %58 = math.log1p %57 : vector<256x1xf32>
    %59 = arith.addf %53, %58 : vector<256x1xf32>
    %cst_24 = arith.constant 0.000000e+00 : f32
    %60 = vector.broadcast %cst_24 : f32 to vector<256x1xf32>
    %61 = arith.maximumf %41, %60 : vector<256x1xf32>
    %62 = math.absf %41 : vector<256x1xf32>
    %cst_25 = arith.constant 0.000000e+00 : f32
    %63 = vector.broadcast %cst_25 : f32 to vector<256x1xf32>
    %64 = arith.subf %63, %62 : vector<256x1xf32>
    %65 = math.exp %64 : vector<256x1xf32>
    %66 = math.log1p %65 : vector<256x1xf32>
    %67 = arith.addf %61, %66 : vector<256x1xf32>
    %68 = arith.addf %59, %67 : vector<256x1xf32>
    %69 = arith.mulf %49, %68 : vector<256x1xf32>
    %70 = vector.shape_cast %69 : vector<256x1xf32> to vector<1x256x1xf32>
    %cst_26 = arith.constant dense<0.000000e+00> : vector<1xf32>
    %71 = vector.multi_reduction <add>, %70, %cst_26 [1, 2] : vector<1x256x1xf32> to vector<1xf32>
    %72 = vector.shape_cast %71 : vector<1xf32> to vector<1x1x1xf32>
    %73 = vector.extract %72[0, 0, 0] : f32 from vector<1x1x1xf32>
    %74 = vector.broadcast %73 : f32 to vector<1x1xf32>
    %c0_27 = arith.constant 0 : index
    %c0_28 = arith.constant 0 : index
    %c0_29 = arith.constant 0 : index
    %75 = vector.load %arg8[%c0_27, %c0_28, %c0_29] : memref<1x1x1xf32, #tpu.memory_space<vmem>>, vector<1x1x1xf32>
    %76 = vector.shape_cast %75 : vector<1x1x1xf32> to vector<1x1xf32>
    %77 = vector.shape_cast %74 : vector<1x1xf32> to vector<1x1x1xf32>
    tpu.vector_store %arg8[%c0_27, %c0_28, %c0_29], %77 {strides = array<i32>} : memref<1x1x1xf32, #tpu.memory_space<vmem>>, vector<1x1x1xf32>,
    return
  }
  func.func @transform_0(%arg0: i32) -> (i32, i32, i32) {
    %c0_i32 = arith.constant 0 : i32
    %c0_i32_0 = arith.constant 0 : i32
    %c0_i32_1 = arith.constant 0 : i32
    return %arg0, %c0_i32, %c0_i32_0 : i32, i32, i32
  }
  func.func @transform_1(%arg0: i32) -> (i32, i32) {
    %c0_i32 = arith.constant 0 : i32
    %c0_i32_0 = arith.constant 0 : i32
    %c0_i32_1 = arith.constant 0 : i32
    return %c0_i32, %c0_i32_0 : i32, i32
  }
  func.func @transform_2(%arg0: i32) -> (i32, i32) {
    %c0_i32 = arith.constant 0 : i32
    %c0_i32_0 = arith.constant 0 : i32
    %c0_i32_1 = arith.constant 0 : i32
    return %c0_i32, %c0_i32_0 : i32, i32
  }
  func.func @transform_3(%arg0: i32) -> (i32, i32) {
    %c0_i32 = arith.constant 0 : i32
    %c0_i32_0 = arith.constant 0 : i32
    %c0_i32_1 = arith.constant 0 : i32
    return %c0_i32, %c0_i32_0 : i32, i32
  }
  func.func @transform_4(%arg0: i32) -> (i32, i32) {
    %c0_i32 = arith.constant 0 : i32
    %c0_i32_0 = arith.constant 0 : i32
    %c0_i32_1 = arith.constant 0 : i32
    return %c0_i32, %c0_i32_0 : i32, i32
  }
  func.func @transform_5(%arg0: i32) -> (i32, i32) {
    %c0_i32 = arith.constant 0 : i32
    %c0_i32_0 = arith.constant 0 : i32
    %c0_i32_1 = arith.constant 0 : i32
    return %c0_i32, %c0_i32_0 : i32, i32
  }
  func.func @transform_6(%arg0: i32) -> (i32, i32) {
    %c0_i32 = arith.constant 0 : i32
    %c0_i32_0 = arith.constant 0 : i32
    %c0_i32_1 = arith.constant 0 : i32
    return %c0_i32, %c0_i32_0 : i32, i32
  }
  func.func @transform_7(%arg0: i32) -> (i32, i32, i32) {
    %c0_i32 = arith.constant 0 : i32
    %c0_i32_0 = arith.constant 0 : i32
    %c0_i32_1 = arith.constant 0 : i32
    return %arg0, %c0_i32, %c0_i32_0 : i32, i32, i32
  }
}

</mosaic_0001>

<llo_original>
// kernel: pipeline_loss.2
$region0: #{pipeline_loss.2}
  #allocation0 [shape = 'u32[]', space=smem, size = 0x4, offset = 0x4, fixed_abs, tag = 'smem constant byte address 0x4 - core index']
  #allocation1 [shape = 'u32[144,128]{1,0:T(1,128)}', space=vmem, size = 0x12000, scoped, tag = 'internal scratch']
  %s0 = inlined_call_operand.vmem [shape: f32[32,128], index: 0, kind: input, shape index: {}]
  %s1 = inlined_call_operand.vmem [shape: bf16[128,128], index: 1, kind: input, shape index: {}]
  %s2 = inlined_call_operand.vmem [shape: f32[1,128], index: 2, kind: input, shape index: {}]
  %s3 = inlined_call_operand.vmem [shape: bf16[32,128], index: 3, kind: output, shape index: {}]
  %s4 = sld [smem:[#allocation0]]
  $region22: #{pipeline_loss.2} parent=0
    _
  %s6 = ssub.s32 1, %s4
  %s7 = scalar_select 0, %s6, %s4
  // Predicated region
  $region2: #{pipeline_loss.2} parent=0 // pred_check
    _
  $region3: #{pipeline_loss.2} parent=0 // pred_check_branch
    %9 = sbr.rel (0) target = $region5
  $region4: #{pipeline_loss.2} parent=0 // pred_region
    _
  $region5: #{pipeline_loss.2} parent=0 // pred_fallthru
    _
  // Predicated region
  $region6: #{pipeline_loss.2} parent=0 // pred_check
    _
  $region7: #{pipeline_loss.2} parent=0 // pred_check_branch
    %11 = sbr.rel (0) target = $region9
  $region8: #{pipeline_loss.2} parent=0 // pred_region
    _
  $region9: #{pipeline_loss.2} parent=0 // pred_fallthru
    _
  // Predicated region
  $region10: #{pipeline_loss.2} parent=0 // pred_check
    _
  $region11: #{pipeline_loss.2} parent=0 // pred_check_branch
    %13 = sbr.rel (0) target = $region13
  $region12: #{pipeline_loss.2} parent=0 // pred_region
    _
  $region13: #{pipeline_loss.2} parent=0 // pred_fallthru
    _
  %v15 = vld [vmem:[%s0] sm:$0xff]
  %v16 = vld [vmem:[%s0 + $0x8] sm:$0xff]
  %v17 = vld [vmem:[%s0 + $0x10] sm:$0xff]
  %v18 = vld [vmem:[%s0 + $0x18] sm:$0xff]
  %v19 = vpack.c.bf16 %v16, %v15
  %v20 = vpack.c.bf16 %v18, %v17
  %v21 = vld [vmem:[%s1] sm:$0xf]
  %v22 = vld [vmem:[%s1 + $0x4] sm:$0xf]
  %v23 = vld [vmem:[%s1 + $0x8] sm:$0xf]
  %v24 = vld [vmem:[%s1 + $0xc] sm:$0xf]
  %v25 = vld [vmem:[%s1 + $0x10] sm:$0xf]
  %v26 = vld [vmem:[%s1 + $0x14] sm:$0xf]
  %v27 = vld [vmem:[%s1 + $0x18] sm:$0xf]
  %v28 = vld [vmem:[%s1 + $0x1c] sm:$0xf]
  %v29 = vld [vmem:[%s1 + $0x20] sm:$0xf]
  %v30 = vld [vmem:[%s1 + $0x24] sm:$0xf]
  %v31 = vld [vmem:[%s1 + $0x28] sm:$0xf]
  %v32 = vld [vmem:[%s1 + $0x2c] sm:$0xf]
  %v33 = vld [vmem:[%s1 + $0x30] sm:$0xf]
  %v34 = vld [vmem:[%s1 + $0x34] sm:$0xf]
  %v35 = vld [vmem:[%s1 + $0x38] sm:$0xf]
  %v36 = vld [vmem:[%s1 + $0x3c] sm:$0xf]
  %v37 = vld [vmem:[%s2] sm:$0x1]
  %v39 = vlaneseq
  %v40 = vshrl.u32 %v39, 7
  %v41 = vsub.s32 0, %v40
  %v42 = vrot.slane %v37, %v41
  %v60 = vunpack.c.l.b16 %v21
  %v61 = vunpack.c.l.b16 %v22
  %v62 = vunpack.c.l.b16 %v23
  %v63 = vunpack.c.l.b16 %v24
  %v64 = vunpack.c.l.b16 %v25
  %v65 = vunpack.c.l.b16 %v26
  %v66 = vunpack.c.l.b16 %v27
  %v67 = vunpack.c.l.b16 %v28
  %v68 = vunpack.c.l.b16 %v29
  %v69 = vunpack.c.l.b16 %v30
  %v70 = vunpack.c.l.b16 %v31
  %v71 = vunpack.c.l.b16 %v32
  %v72 = vunpack.c.l.b16 %v33
  %v73 = vunpack.c.l.b16 %v34
  %v74 = vunpack.c.l.b16 %v35
  %v75 = vunpack.c.l.b16 %v36
  %v76 = vpack.c.b16 %v61, %v60
  %v77 = vpack.c.b16 %v63, %v62
  %v78 = vpack.c.b16 %v65, %v64
  %v79 = vpack.c.b16 %v67, %v66
  %v80 = vpack.c.b16 %v69, %v68
  %v81 = vpack.c.b16 %v71, %v70
  %v82 = vpack.c.b16 %v73, %v72
  %v83 = vpack.c.b16 %v75, %v74
  %92 = vmatprep.subr.bf16.mxu0 0
  %93 = vmatpush1.bf16.msra.mxu0 %v83
  %94 = vmatprep.subr.bf16.mxu0 0
  %95 = vmatpush1.bf16.msra.mxu0 %v82
  %96 = vmatprep.subr.bf16.mxu0 0
  %97 = vmatpush1.bf16.msra.mxu0 %v81
  %98 = vmatprep.subr.bf16.mxu0 0
  %99 = vmatpush1.bf16.msra.mxu0 %v80
  %100 = vmatprep.subr.bf16.mxu0 0
  %101 = vmatpush1.bf16.msra.mxu0 %v79
  %102 = vmatprep.subr.bf16.mxu0 0
  %103 = vmatpush1.bf16.msra.mxu0 %v78
  %104 = vmatprep.subr.bf16.mxu0 0
  %105 = vmatpush1.bf16.msra.mxu0 %v77
  %106 = vmatprep.subr.bf16.mxu0 0
  %107 = vmatpush1.bf16.msra.mxu0 %v76
  %108 = vmatprep.subr.bf16.mxu0 0
  %109 = vmatpush2.bf16.msra.mxu0 0
  %110 = vmatprep.subr.bf16.mxu0 0
  %111 = vmatpush2.bf16.msra.mxu0 0
  %112 = vmatprep.subr.bf16.mxu0 0
  %113 = vmatpush2.bf16.msra.mxu0 0
  %114 = vmatprep.subr.bf16.mxu0 0
  %115 = vmatpush2.bf16.msra.mxu0 0
  %116 = vmatprep.subr.bf16.mxu0 0
  %117 = vmatpush2.bf16.msra.mxu0 0
  %118 = vmatprep.subr.bf16.mxu0 0
  %119 = vmatpush2.bf16.msra.mxu0 0
  %120 = vmatprep.subr.bf16.mxu0 0
  %121 = vmatpush2.bf16.msra.mxu0 0
  %122 = vmatprep.subr.bf16.mxu0 0
  %123 = vmatpush2.bf16.msra.mxu0 0
  %124 = vmatprep.mubr.bf16.mxu0 0
  %125 = vmatmul.mubr.bf16.gmra.mxu0 %v19
  %v126 = vpop.f32.mrf.mxu0
  %v127 = vadd.f32 %v42, %v126
  %v128 = vpop.f32.mrf.mxu0
  %v129 = vpop.f32.mrf.mxu0
  %v130 = vadd.f32 %v42, %v129
  %v131 = vpop.f32.mrf.mxu0
  %132 = vmatprep.mubr.bf16.mxu0 0
  %133 = vmatmul.mubr.bf16.gmra.mxu0 %v20
  %v134 = vpop.f32.mrf.mxu0
  %v135 = vadd.f32 %v42, %v134
  %v136 = vpop.f32.mrf.mxu0
  %v137 = vpop.f32.mrf.mxu0
  %v138 = vadd.f32 %v42, %v137
  %v139 = vpop.f32.mrf.mxu0
  %140 = vdwg.mxu0
  %v141 = vpack.c.bf16 %v130, %v127
  %v142 = vpack.c.bf16 %v138, %v135
  %v145 = vunpack.c.l.b16 %v141
  %v146 = vunpack.c.h.b16 %v141
  %v147 = vunpack.c.l.b16 %v142
  %v148 = vunpack.c.h.b16 %v142
  %v149 = vpack.c.b16 %v145, %v145
  %v150 = vpack.c.b16 %v146, %v146
  %v151 = vpack.c.b16 %v147, %v147
  %v152 = vpack.c.b16 %v148, %v148
  %157 = vst [vmem:[%s3] sm:$0xf] %v149
  %158 = vst [vmem:[%s3 + $0x4] sm:$0xf] %v150
  %159 = vst [vmem:[%s3 + $0x8] sm:$0xf] %v151
  %160 = vst [vmem:[%s3 + $0xc] sm:$0xf] %v152
  // Predicated region
  $region14: #{pipeline_loss.2} parent=0 // pred_check
    _
  $region15: #{pipeline_loss.2} parent=0 // pred_check_branch
    %162 = sbr.rel (0) target = $region17
  $region16: #{pipeline_loss.2} parent=0 // pred_region
    _
  $region17: #{pipeline_loss.2} parent=0 // pred_fallthru
    _
  // Predicated region
  $region18: #{pipeline_loss.2} parent=0 // pred_check
    _
  $region19: #{pipeline_loss.2} parent=0 // pred_check_branch
    %164 = sbr.rel (0) target = $region21
  $region20: #{pipeline_loss.2} parent=0 // pred_region
    _
  $region21: #{pipeline_loss.2} parent=0 // pred_fallthru
    _

// kernel: pipeline_loss.3
$region0: #{pipeline_loss.3}
  #allocation0 [shape = 'u32[]', space=smem, size = 0x4, offset = 0x4, fixed_abs, tag = 'smem constant byte address 0x4 - core index']
  #allocation1 [shape = 'u32[144,128]{1,0:T(1,128)}', space=vmem, size = 0x12000, scoped, tag = 'internal scratch']
  #allocation2 [shape = 'f32[1,1]{1,0:T(1,128)S(6)}', space=smem, size = 0x200, scoped, tag = 'scoped memory for pipeline_loss.3']
  %s0 = inlined_call_operand.vmem [shape: s32[1,768,1], index: 0, kind: input, shape index: {}]
  %s1 = inlined_call_operand.vmem [shape: bf16[32,128], index: 1, kind: input, shape index: {}]
  %s2 = inlined_call_operand.vmem [shape: bf16[128,128], index: 2, kind: input, shape index: {}]
  %s3 = inlined_call_operand.vmem [shape: bf16[128,128], index: 3, kind: input, shape index: {}]
  %s4 = inlined_call_operand.vmem [shape: f32[1,128], index: 4, kind: input, shape index: {}]
  %s5 = inlined_call_operand.vmem [shape: f32[1,128], index: 5, kind: input, shape index: {}]
  %s6 = inlined_call_operand.<no memory space> [shape: f32[1,1], index: 6, kind: input, shape index: {}]
  %s7 = inlined_call_operand.hbm [shape: f32[1,1,1], index: 7, kind: output, shape index: {}]
  %s8 = sld [smem:[#allocation0]]
  $region38: #{pipeline_loss.3} parent=0
    _
  %s10 = ssub.s32 1, %s8
  %s11 = scalar_select 0, %s10, %s8
  %12 = sst [smem:[#allocation2]] %s6
  $region1: #{pipeline_loss.3} parent=0
    #allocation3 [shape = 'u8[512]{0}', space=vmem, size = 0x400, scoped, tag = 'output window, operand 0, single buffered']
    #allocation4 [shape = 's32[1]{0}', space=sflag, size = 0x4, scoped, tag = 'scoped memory for pipeline_loss.3']
    %13 = vsyncpa [#allocation4], 0
    // Predicated region
    $region2: #{pipeline_loss.3} parent=1 // pred_check
      _
    $region3: #{pipeline_loss.3} parent=1 // pred_check_branch
      %15 = sbr.rel (0) target = $region5
    $region4: #{pipeline_loss.3} parent=1 // pred_region
      _
    $region5: #{pipeline_loss.3} parent=1 // pred_fallthru
      _
    // Predicated region
    $region6: #{pipeline_loss.3} parent=1 // pred_check
      _
    $region7: #{pipeline_loss.3} parent=1 // pred_check_branch
      %17 = sbr.rel (0) target = $region9
    $region8: #{pipeline_loss.3} parent=1 // pred_region
      _
    $region9: #{pipeline_loss.3} parent=1 // pred_fallthru
      _
    // Predicated region
    $region10: #{pipeline_loss.3} parent=1 // pred_check
      _
    $region11: #{pipeline_loss.3} parent=1 // pred_check_branch
      %19 = sbr.rel (0) target = $region13
    $region12: #{pipeline_loss.3} parent=1 // pred_region
      _
    $region13: #{pipeline_loss.3} parent=1 // pred_fallthru
      _
    // Predicated region
    $region14: #{pipeline_loss.3} parent=1 // pred_check
      _
    $region15: #{pipeline_loss.3} parent=1 // pred_check_branch
      %21 = sbr.rel (0) target = $region17
    $region16: #{pipeline_loss.3} parent=1 // pred_region
      _
    $region17: #{pipeline_loss.3} parent=1 // pred_fallthru
      _
    // Predicated region
    $region18: #{pipeline_loss.3} parent=1 // pred_check
      _
    $region19: #{pipeline_loss.3} parent=1 // pred_check_branch
      %23 = sbr.rel (0) target = $region21
    $region20: #{pipeline_loss.3} parent=1 // pred_region
      _
    $region21: #{pipeline_loss.3} parent=1 // pred_fallthru
      _
    // Predicated region
    $region22: #{pipeline_loss.3} parent=1 // pred_check
      _
    $region23: #{pipeline_loss.3} parent=1 // pred_check_branch
      %25 = sbr.rel (0) target = $region25
    $region24: #{pipeline_loss.3} parent=1 // pred_region
      _
    $region25: #{pipeline_loss.3} parent=1 // pred_fallthru
      _
    // Predicated region
    $region26: #{pipeline_loss.3} parent=1 // pred_check
      _
    $region27: #{pipeline_loss.3} parent=1 // pred_check_branch
      %27 = sbr.rel (0) target = $region29
    $region28: #{pipeline_loss.3} parent=1 // pred_region
      _
    $region29: #{pipeline_loss.3} parent=1 // pred_fallthru
      _
    %v29 = vld [vmem:[%s1] sm:$0xf]
    %v30 = vld [vmem:[%s1 + $0x4] sm:$0xf]
    %v31 = vld [vmem:[%s1 + $0x8] sm:$0xf]
    %v32 = vld [vmem:[%s1 + $0xc] sm:$0xf]
    %v33 = vld [vmem:[%s0] sm:$0xff]
    %v34 = vld [vmem:[%s0 + $0x8] sm:$0xff]
    %v35 = vld [vmem:[%s0 + $0x10] sm:$0xff]
    %v36 = vld [vmem:[%s0 + $0x18] sm:$0xff]
    %v37 = vld [vmem:[%s0 + $0x20] sm:$0xff]
    %v38 = vld [vmem:[%s0 + $0x28] sm:$0xff]
    %v39 = vld [vmem:[%s0 + $0x30] sm:$0xff]
    %v40 = vld [vmem:[%s0 + $0x38] sm:$0xff]
    %v41 = vld [vmem:[%s0 + $0x40] sm:$0xff]
    %v42 = vld [vmem:[%s0 + $0x48] sm:$0xff]
    %v43 = vld [vmem:[%s0 + $0x50] sm:$0xff]
    %v44 = vld [vmem:[%s0 + $0x58] sm:$0xff]
    %v45 = vld [vmem:[%s0 + $0x60] sm:$0xff]
    %v46 = vld [vmem:[%s0 + $0x68] sm:$0xff]
    %v47 = vld [vmem:[%s0 + $0x70] sm:$0xff]
    %v48 = vld [vmem:[%s0 + $0x78] sm:$0xff]
    %v49 = vld [vmem:[%s0 + $0x80] sm:$0xff]
    %v50 = vld [vmem:[%s0 + $0x88] sm:$0xff]
    %v51 = vld [vmem:[%s0 + $0x90] sm:$0xff]
    %v52 = vld [vmem:[%s0 + $0x98] sm:$0xff]
    %v53 = vld [vmem:[%s0 + $0xa0] sm:$0xff]
    %v54 = vld [vmem:[%s0 + $0xa8] sm:$0xff]
    %v55 = vld [vmem:[%s0 + $0xb0] sm:$0xff]
    %v56 = vld [vmem:[%s0 + $0xb8] sm:$0xff]
    %v57 = vld [vmem:[%s0 + $0xc0] sm:$0xff]
    %v58 = vld [vmem:[%s0 + $0xc8] sm:$0xff]
    %v59 = vld [vmem:[%s0 + $0xd0] sm:$0xff]
    %v60 = vld [vmem:[%s0 + $0xd8] sm:$0xff]
    %v61 = vld [vmem:[%s0 + $0xe0] sm:$0xff]
    %v62 = vld [vmem:[%s0 + $0xe8] sm:$0xff]
    %v63 = vld [vmem:[%s0 + $0xf0] sm:$0xff]
    %v64 = vld [vmem:[%s0 + $0xf8] sm:$0xff]
    %v65 = vld [vmem:[%s0 + $0x100] sm:$0xff]
    %v66 = vld [vmem:[%s0 + $0x108] sm:$0xff]
    %v67 = vld [vmem:[%s0 + $0x110] sm:$0xff]
    %v68 = vld [vmem:[%s0 + $0x118] sm:$0xff]
    %v69 = vld [vmem:[%s0 + $0x120] sm:$0xff]
    %v70 = vld [vmem:[%s0 + $0x128] sm:$0xff]
    %v71 = vld [vmem:[%s0 + $0x130] sm:$0xff]
    %v72 = vld [vmem:[%s0 + $0x138] sm:$0xff]
    %v73 = vld [vmem:[%s0 + $0x140] sm:$0xff]
    %v74 = vld [vmem:[%s0 + $0x148] sm:$0xff]
    %v75 = vld [vmem:[%s0 + $0x150] sm:$0xff]
    %v76 = vld [vmem:[%s0 + $0x158] sm:$0xff]
    %v77 = vld [vmem:[%s0 + $0x160] sm:$0xff]
    %v78 = vld [vmem:[%s0 + $0x168] sm:$0xff]
    %v79 = vld [vmem:[%s0 + $0x170] sm:$0xff]
    %v80 = vld [vmem:[%s0 + $0x178] sm:$0xff]
    %v81 = vld [vmem:[%s0 + $0x180] sm:$0xff]
    %v82 = vld [vmem:[%s0 + $0x188] sm:$0xff]
    %v83 = vld [vmem:[%s0 + $0x190] sm:$0xff]
    %v84 = vld [vmem:[%s0 + $0x198] sm:$0xff]
    %v85 = vld [vmem:[%s0 + $0x1a0] sm:$0xff]
    %v86 = vld [vmem:[%s0 + $0x1a8] sm:$0xff]
    %v87 = vld [vmem:[%s0 + $0x1b0] sm:$0xff]
    %v88 = vld [vmem:[%s0 + $0x1b8] sm:$0xff]
    %v89 = vld [vmem:[%s0 + $0x1c0] sm:$0xff]
    %v90 = vld [vmem:[%s0 + $0x1c8] sm:$0xff]
    %v91 = vld [vmem:[%s0 + $0x1d0] sm:$0xff]
    %v92 = vld [vmem:[%s0 + $0x1d8] sm:$0xff]
    %v93 = vld [vmem:[%s0 + $0x1e0] sm:$0xff]
    %v94 = vld [vmem:[%s0 + $0x1e8] sm:$0xff]
    %v95 = vld [vmem:[%s0 + $0x1f0] sm:$0xff]
    %v96 = vld [vmem:[%s0 + $0x1f8] sm:$0xff]
    %v97 = vld [vmem:[%s0 + $0x200] sm:$0xff]
    %v98 = vld [vmem:[%s0 + $0x208] sm:$0xff]
    %v99 = vld [vmem:[%s0 + $0x210] sm:$0xff]
    %v100 = vld [vmem:[%s0 + $0x218] sm:$0xff]
    %v101 = vld [vmem:[%s0 + $0x220] sm:$0xff]
    %v102 = vld [vmem:[%s0 + $0x228] sm:$0xff]
    %v103 = vld [vmem:[%s0 + $0x230] sm:$0xff]
    %v104 = vld [vmem:[%s0 + $0x238] sm:$0xff]
    %v105 = vld [vmem:[%s0 + $0x240] sm:$0xff]
    %v106 = vld [vmem:[%s0 + $0x248] sm:$0xff]
    %v107 = vld [vmem:[%s0 + $0x250] sm:$0xff]
    %v108 = vld [vmem:[%s0 + $0x258] sm:$0xff]
    %v109 = vld [vmem:[%s0 + $0x260] sm:$0xff]
    %v110 = vld [vmem:[%s0 + $0x268] sm:$0xff]
    %v111 = vld [vmem:[%s0 + $0x270] sm:$0xff]
    %v112 = vld [vmem:[%s0 + $0x278] sm:$0xff]
    %v113 = vld [vmem:[%s0 + $0x280] sm:$0xff]
    %v114 = vld [vmem:[%s0 + $0x288] sm:$0xff]
    %v115 = vld [vmem:[%s0 + $0x290] sm:$0xff]
    %v116 = vld [vmem:[%s0 + $0x298] sm:$0xff]
    %v117 = vld [vmem:[%s0 + $0x2a0] sm:$0xff]
    %v118 = vld [vmem:[%s0 + $0x2a8] sm:$0xff]
    %v119 = vld [vmem:[%s0 + $0x2b0] sm:$0xff]
    %v120 = vld [vmem:[%s0 + $0x2b8] sm:$0xff]
    %v121 = vld [vmem:[%s0 + $0x2c0] sm:$0xff]
    %v122 = vld [vmem:[%s0 + $0x2c8] sm:$0xff]
    %v123 = vld [vmem:[%s0 + $0x2d0] sm:$0xff]
    %v124 = vld [vmem:[%s0 + $0x2d8] sm:$0xff]
    %v125 = vld [vmem:[%s0 + $0x2e0] sm:$0xff]
    %v126 = vld [vmem:[%s0 + $0x2e8] sm:$0xff]
    %v127 = vld [vmem:[%s0 + $0x2f0] sm:$0xff]
    %v128 = vld [vmem:[%s0 + $0x2f8] sm:$0xff]
    %v129 = vlaneseq
    %v130 = vand.u32 %v129, 127
    %131 = vset.pattern.permute.xlu0 0
    %132 = vperm.xlu0 %131, %v33
    %v133 = vpop.permute.xlu0 %132
    %134 = vset.pattern.permute.xlu0 0
    %135 = vperm.xlu0 %134, %v34
    %v136 = vpop.permute.xlu0 %135
    %137 = vset.pattern.permute.xlu0 0
    %138 = vperm.xlu0 %137, %v35
    %v139 = vpop.permute.xlu0 %138
    %140 = vset.pattern.permute.xlu0 0
    %141 = vperm.xlu0 %140, %v36
    %v142 = vpop.permute.xlu0 %141
    %143 = vset.pattern.permute.xlu0 0
    %144 = vperm.xlu0 %143, %v37
    %v145 = vpop.permute.xlu0 %144
    %146 = vset.pattern.permute.xlu0 0
    %147 = vperm.xlu0 %146, %v38
    %v148 = vpop.permute.xlu0 %147
    %149 = vset.pattern.permute.xlu0 0
    %150 = vperm.xlu0 %149, %v39
    %v151 = vpop.permute.xlu0 %150
    %152 = vset.pattern.permute.xlu0 0
    %153 = vperm.xlu0 %152, %v40
    %v154 = vpop.permute.xlu0 %153
    %155 = vset.pattern.permute.xlu0 0
    %156 = vperm.xlu0 %155, %v41
    %v157 = vpop.permute.xlu0 %156
    %158 = vset.pattern.permute.xlu0 0
    %159 = vperm.xlu0 %158, %v42
    %v160 = vpop.permute.xlu0 %159
    %161 = vset.pattern.permute.xlu0 0
    %162 = vperm.xlu0 %161, %v43
    %v163 = vpop.permute.xlu0 %162
    %164 = vset.pattern.permute.xlu0 0
    %165 = vperm.xlu0 %164, %v44
    %v166 = vpop.permute.xlu0 %165
    %167 = vset.pattern.permute.xlu0 0
    %168 = vperm.xlu0 %167, %v45
    %v169 = vpop.permute.xlu0 %168
    %170 = vset.pattern.permute.xlu0 0
    %171 = vperm.xlu0 %170, %v46
    %v172 = vpop.permute.xlu0 %171
    %173 = vset.pattern.permute.xlu0 0
    %174 = vperm.xlu0 %173, %v47
    %v175 = vpop.permute.xlu0 %174
    %176 = vset.pattern.permute.xlu0 0
    %177 = vperm.xlu0 %176, %v48
    %v178 = vpop.permute.xlu0 %177
    %179 = vset.pattern.permute.xlu0 0
    %180 = vperm.xlu0 %179, %v49
    %v181 = vpop.permute.xlu0 %180
    %182 = vset.pattern.permute.xlu0 0
    %183 = vperm.xlu0 %182, %v50
    %v184 = vpop.permute.xlu0 %183
    %185 = vset.pattern.permute.xlu0 0
    %186 = vperm.xlu0 %185, %v51
    %v187 = vpop.permute.xlu0 %186
    %188 = vset.pattern.permute.xlu0 0
    %189 = vperm.xlu0 %188, %v52
    %v190 = vpop.permute.xlu0 %189
    %191 = vset.pattern.permute.xlu0 0
    %192 = vperm.xlu0 %191, %v53
    %v193 = vpop.permute.xlu0 %192
    %194 = vset.pattern.permute.xlu0 0
    %195 = vperm.xlu0 %194, %v54
    %v196 = vpop.permute.xlu0 %195
    %197 = vset.pattern.permute.xlu0 0
    %198 = vperm.xlu0 %197, %v55
    %v199 = vpop.permute.xlu0 %198
    %200 = vset.pattern.permute.xlu0 0
    %201 = vperm.xlu0 %200, %v56
    %v202 = vpop.permute.xlu0 %201
    %203 = vset.pattern.permute.xlu0 0
    %204 = vperm.xlu0 %203, %v57
    %v205 = vpop.permute.xlu0 %204
    %206 = vset.pattern.permute.xlu0 0
    %207 = vperm.xlu0 %206, %v58
    %v208 = vpop.permute.xlu0 %207
    %209 = vset.pattern.permute.xlu0 0
    %210 = vperm.xlu0 %209, %v59
    %v211 = vpop.permute.xlu0 %210
    %212 = vset.pattern.permute.xlu0 0
    %213 = vperm.xlu0 %212, %v60
    %v214 = vpop.permute.xlu0 %213
    %215 = vset.pattern.permute.xlu0 0
    %216 = vperm.xlu0 %215, %v61
    %v217 = vpop.permute.xlu0 %216
    %218 = vset.pattern.permute.xlu0 0
    %219 = vperm.xlu0 %218, %v62
    %v220 = vpop.permute.xlu0 %219
    %221 = vset.pattern.permute.xlu0 0
    %222 = vperm.xlu0 %221, %v63
    %v223 = vpop.permute.xlu0 %222
    %224 = vset.pattern.permute.xlu0 0
    %225 = vperm.xlu0 %224, %v64
    %v226 = vpop.permute.xlu0 %225
    %227 = vset.pattern.permute.xlu0 0
    %228 = vperm.xlu0 %227, %v65
    %v229 = vpop.permute.xlu0 %228
    %230 = vset.pattern.permute.xlu0 0
    %231 = vperm.xlu0 %230, %v66
    %v232 = vpop.permute.xlu0 %231
    %233 = vset.pattern.permute.xlu0 0
    %234 = vperm.xlu0 %233, %v67
    %v235 = vpop.permute.xlu0 %234
    %236 = vset.pattern.permute.xlu0 0
    %237 = vperm.xlu0 %236, %v68
    %v238 = vpop.permute.xlu0 %237
    %239 = vset.pattern.permute.xlu0 0
    %240 = vperm.xlu0 %239, %v69
    %v241 = vpop.permute.xlu0 %240
    %242 = vset.pattern.permute.xlu0 0
    %243 = vperm.xlu0 %242, %v70
    %v244 = vpop.permute.xlu0 %243
    %245 = vset.pattern.permute.xlu0 0
    %246 = vperm.xlu0 %245, %v71
    %v247 = vpop.permute.xlu0 %246
    %248 = vset.pattern.permute.xlu0 0
    %249 = vperm.xlu0 %248, %v72
    %v250 = vpop.permute.xlu0 %249
    %251 = vset.pattern.permute.xlu0 0
    %252 = vperm.xlu0 %251, %v73
    %v253 = vpop.permute.xlu0 %252
    %254 = vset.pattern.permute.xlu0 0
    %255 = vperm.xlu0 %254, %v74
    %v256 = vpop.permute.xlu0 %255
    %257 = vset.pattern.permute.xlu0 0
    %258 = vperm.xlu0 %257, %v75
    %v259 = vpop.permute.xlu0 %258
    %260 = vset.pattern.permute.xlu0 0
    %261 = vperm.xlu0 %260, %v76
    %v262 = vpop.permute.xlu0 %261
    %263 = vset.pattern.permute.xlu0 0
    %264 = vperm.xlu0 %263, %v77
    %v265 = vpop.permute.xlu0 %264
    %266 = vset.pattern.permute.xlu0 0
    %267 = vperm.xlu0 %266, %v78
    %v268 = vpop.permute.xlu0 %267
    %269 = vset.pattern.permute.xlu0 0
    %270 = vperm.xlu0 %269, %v79
    %v271 = vpop.permute.xlu0 %270
    %272 = vset.pattern.permute.xlu0 0
    %273 = vperm.xlu0 %272, %v80
    %v274 = vpop.permute.xlu0 %273
    %275 = vset.pattern.permute.xlu0 0
    %276 = vperm.xlu0 %275, %v81
    %v277 = vpop.permute.xlu0 %276
    %278 = vset.pattern.permute.xlu0 0
    %279 = vperm.xlu0 %278, %v82
    %v280 = vpop.permute.xlu0 %279
    %281 = vset.pattern.permute.xlu0 0
    %282 = vperm.xlu0 %281, %v83
    %v283 = vpop.permute.xlu0 %282
    %284 = vset.pattern.permute.xlu0 0
    %285 = vperm.xlu0 %284, %v84
    %v286 = vpop.permute.xlu0 %285
    %287 = vset.pattern.permute.xlu0 0
    %288 = vperm.xlu0 %287, %v85
    %v289 = vpop.permute.xlu0 %288
    %290 = vset.pattern.permute.xlu0 0
    %291 = vperm.xlu0 %290, %v86
    %v292 = vpop.permute.xlu0 %291
    %293 = vset.pattern.permute.xlu0 0
    %294 = vperm.xlu0 %293, %v87
    %v295 = vpop.permute.xlu0 %294
    %296 = vset.pattern.permute.xlu0 0
    %297 = vperm.xlu0 %296, %v88
    %v298 = vpop.permute.xlu0 %297
    %299 = vset.pattern.permute.xlu0 0
    %300 = vperm.xlu0 %299, %v89
    %v301 = vpop.permute.xlu0 %300
    %302 = vset.pattern.permute.xlu0 0
    %303 = vperm.xlu0 %302, %v90
    %v304 = vpop.permute.xlu0 %303
    %305 = vset.pattern.permute.xlu0 0
    %306 = vperm.xlu0 %305, %v91
    %v307 = vpop.permute.xlu0 %306
    %308 = vset.pattern.permute.xlu0 0
    %309 = vperm.xlu0 %308, %v92
    %v310 = vpop.permute.xlu0 %309
    %311 = vset.pattern.permute.xlu0 0
    %312 = vperm.xlu0 %311, %v93
    %v313 = vpop.permute.xlu0 %312
    %314 = vset.pattern.permute.xlu0 0
    %315 = vperm.xlu0 %314, %v94
    %v316 = vpop.permute.xlu0 %315
    %317 = vset.pattern.permute.xlu0 0
    %318 = vperm.xlu0 %317, %v95
    %v319 = vpop.permute.xlu0 %318
    %320 = vset.pattern.permute.xlu0 0
    %321 = vperm.xlu0 %320, %v96
    %v322 = vpop.permute.xlu0 %321
    %323 = vset.pattern.permute.xlu0 0
    %324 = vperm.xlu0 %323, %v97
    %v325 = vpop.permute.xlu0 %324
    %326 = vset.pattern.permute.xlu0 0
    %327 = vperm.xlu0 %326, %v98
    %v328 = vpop.permute.xlu0 %327
    %329 = vset.pattern.permute.xlu0 0
    %330 = vperm.xlu0 %329, %v99
    %v331 = vpop.permute.xlu0 %330
    %332 = vset.pattern.permute.xlu0 0
    %333 = vperm.xlu0 %332, %v100
    %v334 = vpop.permute.xlu0 %333
    %335 = vset.pattern.permute.xlu0 0
    %336 = vperm.xlu0 %335, %v101
    %v337 = vpop.permute.xlu0 %336
    %338 = vset.pattern.permute.xlu0 0
    %339 = vperm.xlu0 %338, %v102
    %v340 = vpop.permute.xlu0 %339
    %341 = vset.pattern.permute.xlu0 0
    %342 = vperm.xlu0 %341, %v103
    %v343 = vpop.permute.xlu0 %342
    %344 = vset.pattern.permute.xlu0 0
    %345 = vperm.xlu0 %344, %v104
    %v346 = vpop.permute.xlu0 %345
    %347 = vset.pattern.permute.xlu0 0
    %348 = vperm.xlu0 %347, %v105
    %v349 = vpop.permute.xlu0 %348
    %350 = vset.pattern.permute.xlu0 0
    %351 = vperm.xlu0 %350, %v106
    %v352 = vpop.permute.xlu0 %351
    %353 = vset.pattern.permute.xlu0 0
    %354 = vperm.xlu0 %353, %v107
    %v355 = vpop.permute.xlu0 %354
    %356 = vset.pattern.permute.xlu0 0
    %357 = vperm.xlu0 %356, %v108
    %v358 = vpop.permute.xlu0 %357
    %359 = vset.pattern.permute.xlu0 0
    %360 = vperm.xlu0 %359, %v109
    %v361 = vpop.permute.xlu0 %360
    %362 = vset.pattern.permute.xlu0 0
    %363 = vperm.xlu0 %362, %v110
    %v364 = vpop.permute.xlu0 %363
    %365 = vset.pattern.permute.xlu0 0
    %366 = vperm.xlu0 %365, %v111
    %v367 = vpop.permute.xlu0 %366
    %368 = vset.pattern.permute.xlu0 0
    %369 = vperm.xlu0 %368, %v112
    %v370 = vpop.permute.xlu0 %369
    %371 = vset.pattern.permute.xlu0 0
    %372 = vperm.xlu0 %371, %v113
    %v373 = vpop.permute.xlu0 %372
    %374 = vset.pattern.permute.xlu0 0
    %375 = vperm.xlu0 %374, %v114
    %v376 = vpop.permute.xlu0 %375
    %377 = vset.pattern.permute.xlu0 0
    %378 = vperm.xlu0 %377, %v115
    %v379 = vpop.permute.xlu0 %378
    %380 = vset.pattern.permute.xlu0 0
    %381 = vperm.xlu0 %380, %v116
    %v382 = vpop.permute.xlu0 %381
    %383 = vset.pattern.permute.xlu0 0
    %384 = vperm.xlu0 %383, %v117
    %v385 = vpop.permute.xlu0 %384
    %386 = vset.pattern.permute.xlu0 0
    %387 = vperm.xlu0 %386, %v118
    %v388 = vpop.permute.xlu0 %387
    %389 = vset.pattern.permute.xlu0 0
    %390 = vperm.xlu0 %389, %v119
    %v391 = vpop.permute.xlu0 %390
    %392 = vset.pattern.permute.xlu0 0
    %393 = vperm.xlu0 %392, %v120
    %v394 = vpop.permute.xlu0 %393
    %395 = vset.pattern.permute.xlu0 0
    %396 = vperm.xlu0 %395, %v121
    %v397 = vpop.permute.xlu0 %396
    %398 = vset.pattern.permute.xlu0 0
    %399 = vperm.xlu0 %398, %v122
    %v400 = vpop.permute.xlu0 %399
    %401 = vset.pattern.permute.xlu0 0
    %402 = vperm.xlu0 %401, %v123
    %v403 = vpop.permute.xlu0 %402
    %404 = vset.pattern.permute.xlu0 0
    %405 = vperm.xlu0 %404, %v124
    %v406 = vpop.permute.xlu0 %405
    %407 = vset.pattern.permute.xlu0 0
    %408 = vperm.xlu0 %407, %v125
    %v409 = vpop.permute.xlu0 %408
    %410 = vset.pattern.permute.xlu0 0
    %411 = vperm.xlu0 %410, %v126
    %v412 = vpop.permute.xlu0 %411
    %413 = vset.pattern.permute.xlu0 0
    %414 = vperm.xlu0 %413, %v127
    %v415 = vpop.permute.xlu0 %414
    %416 = vset.pattern.permute.xlu0 0
    %417 = vperm.xlu0 %416, %v128
    %v418 = vpop.permute.xlu0 %417
    %vm419 = vcmp.eq.s32.totalorder %v130, %v133
    %vm420 = vcmp.eq.s32.totalorder %v130, %v136
    %vm421 = vcmp.eq.s32.totalorder %v130, %v139
    %vm422 = vcmp.eq.s32.totalorder %v130, %v142
    %vm423 = vcmp.eq.s32.totalorder %v130, %v145
    %vm424 = vcmp.eq.s32.totalorder %v130, %v148
    %vm425 = vcmp.eq.s32.totalorder %v130, %v151
    %vm426 = vcmp.eq.s32.totalorder %v130, %v154
    %vm427 = vcmp.eq.s32.totalorder %v130, %v157
    %vm428 = vcmp.eq.s32.totalorder %v130, %v160
    %vm429 = vcmp.eq.s32.totalorder %v130, %v163
    %vm430 = vcmp.eq.s32.totalorder %v130, %v166
    %vm431 = vcmp.eq.s32.totalorder %v130, %v169
    %vm432 = vcmp.eq.s32.totalorder %v130, %v172
    %vm433 = vcmp.eq.s32.totalorder %v130, %v175
    %vm434 = vcmp.eq.s32.totalorder %v130, %v178
    %vm435 = vcmp.eq.s32.totalorder %v130, %v181
    %vm436 = vcmp.eq.s32.totalorder %v130, %v184
    %vm437 = vcmp.eq.s32.totalorder %v130, %v187
    %vm438 = vcmp.eq.s32.totalorder %v130, %v190
    %vm439 = vcmp.eq.s32.totalorder %v130, %v193
    %vm440 = vcmp.eq.s32.totalorder %v130, %v196
    %vm441 = vcmp.eq.s32.totalorder %v130, %v199
    %vm442 = vcmp.eq.s32.totalorder %v130, %v202
    %vm443 = vcmp.eq.s32.totalorder %v130, %v205
    %vm444 = vcmp.eq.s32.totalorder %v130, %v208
    %vm445 = vcmp.eq.s32.totalorder %v130, %v211
    %vm446 = vcmp.eq.s32.totalorder %v130, %v214
    %vm447 = vcmp.eq.s32.totalorder %v130, %v217
    %vm448 = vcmp.eq.s32.totalorder %v130, %v220
    %vm449 = vcmp.eq.s32.totalorder %v130, %v223
    %vm450 = vcmp.eq.s32.totalorder %v130, %v226
    %vm451 = vcmp.eq.s32.totalorder %v130, %v229
    %vm452 = vcmp.eq.s32.totalorder %v130, %v232
    %vm453 = vcmp.eq.s32.totalorder %v130, %v235
    %vm454 = vcmp.eq.s32.totalorder %v130, %v238
    %vm455 = vcmp.eq.s32.totalorder %v130, %v241
    %vm456 = vcmp.eq.s32.totalorder %v130, %v244
    %vm457 = vcmp.eq.s32.totalorder %v130, %v247
    %vm458 = vcmp.eq.s32.totalorder %v130, %v250
    %vm459 = vcmp.eq.s32.totalorder %v130, %v253
    %vm460 = vcmp.eq.s32.totalorder %v130, %v256
    %vm461 = vcmp.eq.s32.totalorder %v130, %v259
    %vm462 = vcmp.eq.s32.totalorder %v130, %v262
    %vm463 = vcmp.eq.s32.totalorder %v130, %v265
    %vm464 = vcmp.eq.s32.totalorder %v130, %v268
    %vm465 = vcmp.eq.s32.totalorder %v130, %v271
    %vm466 = vcmp.eq.s32.totalorder %v130, %v274
    %vm467 = vcmp.eq.s32.totalorder %v130, %v277
    %vm468 = vcmp.eq.s32.totalorder %v130, %v280
    %vm469 = vcmp.eq.s32.totalorder %v130, %v283
    %vm470 = vcmp.eq.s32.totalorder %v130, %v286
    %vm471 = vcmp.eq.s32.totalorder %v130, %v289
    %vm472 = vcmp.eq.s32.totalorder %v130, %v292
    %vm473 = vcmp.eq.s32.totalorder %v130, %v295
    %vm474 = vcmp.eq.s32.totalorder %v130, %v298
    %vm475 = vcmp.eq.s32.totalorder %v130, %v301
    %vm476 = vcmp.eq.s32.totalorder %v130, %v304
    %vm477 = vcmp.eq.s32.totalorder %v130, %v307
    %vm478 = vcmp.eq.s32.totalorder %v130, %v310
    %vm479 = vcmp.eq.s32.totalorder %v130, %v313
    %vm480 = vcmp.eq.s32.totalorder %v130, %v316
    %vm481 = vcmp.eq.s32.totalorder %v130, %v319
    %vm482 = vcmp.eq.s32.totalorder %v130, %v322
    %vm483 = vcmp.eq.s32.totalorder %v130, %v325
    %vm484 = vcmp.eq.s32.totalorder %v130, %v328
    %vm485 = vcmp.eq.s32.totalorder %v130, %v331
    %vm486 = vcmp.eq.s32.totalorder %v130, %v334
    %vm487 = vcmp.eq.s32.totalorder %v130, %v337
    %vm488 = vcmp.eq.s32.totalorder %v130, %v340
    %vm489 = vcmp.eq.s32.totalorder %v130, %v343
    %vm490 = vcmp.eq.s32.totalorder %v130, %v346
    %vm491 = vcmp.eq.s32.totalorder %v130, %v349
    %vm492 = vcmp.eq.s32.totalorder %v130, %v352
    %vm493 = vcmp.eq.s32.totalorder %v130, %v355
    %vm494 = vcmp.eq.s32.totalorder %v130, %v358
    %vm495 = vcmp.eq.s32.totalorder %v130, %v361
    %vm496 = vcmp.eq.s32.totalorder %v130, %v364
    %vm497 = vcmp.eq.s32.totalorder %v130, %v367
    %vm498 = vcmp.eq.s32.totalorder %v130, %v370
    %vm499 = vcmp.eq.s32.totalorder %v130, %v373
    %vm500 = vcmp.eq.s32.totalorder %v130, %v376
    %vm501 = vcmp.eq.s32.totalorder %v130, %v379
    %vm502 = vcmp.eq.s32.totalorder %v130, %v382
    %vm503 = vcmp.eq.s32.totalorder %v130, %v385
    %vm504 = vcmp.eq.s32.totalorder %v130, %v388
    %vm505 = vcmp.eq.s32.totalorder %v130, %v391
    %vm506 = vcmp.eq.s32.totalorder %v130, %v394
    %vm507 = vcmp.eq.s32.totalorder %v130, %v397
    %vm508 = vcmp.eq.s32.totalorder %v130, %v400
    %vm509 = vcmp.eq.s32.totalorder %v130, %v403
    %vm510 = vcmp.eq.s32.totalorder %v130, %v406
    %vm511 = vcmp.eq.s32.totalorder %v130, %v409
    %vm512 = vcmp.eq.s32.totalorder %v130, %v412
    %vm513 = vcmp.eq.s32.totalorder %v130, %v415
    %vm514 = vcmp.eq.s32.totalorder %v130, %v418
    %v515 = vsel %vm419, 1, 0
    %v516 = vsel %vm420, 1, 0
    %v517 = vsel %vm421, 1, 0
    %v518 = vsel %vm422, 1, 0
    %v519 = vsel %vm423, 1, 0
    %v520 = vsel %vm424, 1, 0
    %v521 = vsel %vm425, 1, 0
    %v522 = vsel %vm426, 1, 0
    %v523 = vsel %vm427, 1, 0
    %v524 = vsel %vm428, 1, 0
    %v525 = vsel %vm429, 1, 0
    %v526 = vsel %vm430, 1, 0
    %v527 = vsel %vm431, 1, 0
    %v528 = vsel %vm432, 1, 0
    %v529 = vsel %vm433, 1, 0
    %v530 = vsel %vm434, 1, 0
    %v531 = vsel %vm435, 1, 0
    %v532 = vsel %vm436, 1, 0
    %v533 = vsel %vm437, 1, 0
    %v534 = vsel %vm438, 1, 0
    %v535 = vsel %vm439, 1, 0
    %v536 = vsel %vm440, 1, 0
    %v537 = vsel %vm441, 1, 0
    %v538 = vsel %vm442, 1, 0
    %v539 = vsel %vm443, 1, 0
    %v540 = vsel %vm444, 1, 0
    %v541 = vsel %vm445, 1, 0
    %v542 = vsel %vm446, 1, 0
    %v543 = vsel %vm447, 1, 0
    %v544 = vsel %vm448, 1, 0
    %v545 = vsel %vm449, 1, 0
    %v546 = vsel %vm450, 1, 0
    %v547 = vsel %vm451, 1, 0
    %v548 = vsel %vm452, 1, 0
    %v549 = vsel %vm453, 1, 0
    %v550 = vsel %vm454, 1, 0
    %v551 = vsel %vm455, 1, 0
    %v552 = vsel %vm456, 1, 0
    %v553 = vsel %vm457, 1, 0
    %v554 = vsel %vm458, 1, 0
    %v555 = vsel %vm459, 1, 0
    %v556 = vsel %vm460, 1, 0
    %v557 = vsel %vm461, 1, 0
    %v558 = vsel %vm462, 1, 0
    %v559 = vsel %vm463, 1, 0
    %v560 = vsel %vm464, 1, 0
    %v561 = vsel %vm465, 1, 0
    %v562 = vsel %vm466, 1, 0
    %v563 = vsel %vm467, 1, 0
    %v564 = vsel %vm468, 1, 0
    %v565 = vsel %vm469, 1, 0
    %v566 = vsel %vm470, 1, 0
    %v567 = vsel %vm471, 1, 0
    %v568 = vsel %vm472, 1, 0
    %v569 = vsel %vm473, 1, 0
    %v570 = vsel %vm474, 1, 0
    %v571 = vsel %vm475, 1, 0
    %v572 = vsel %vm476, 1, 0
    %v573 = vsel %vm477, 1, 0
    %v574 = vsel %vm478, 1, 0
    %v575 = vsel %vm479, 1, 0
    %v576 = vsel %vm480, 1, 0
    %v577 = vsel %vm481, 1, 0
    %v578 = vsel %vm482, 1, 0
    %v579 = vsel %vm483, 1, 0
    %v580 = vsel %vm484, 1, 0
    %v581 = vsel %vm485, 1, 0
    %v582 = vsel %vm486, 1, 0
    %v583 = vsel %vm487, 1, 0
    %v584 = vsel %vm488, 1, 0
    %v585 = vsel %vm489, 1, 0
    %v586 = vsel %vm490, 1, 0
    %v587 = vsel %vm491, 1, 0
    %v588 = vsel %vm492, 1, 0
    %v589 = vsel %vm493, 1, 0
    %v590 = vsel %vm494, 1, 0
    %v591 = vsel %vm495, 1, 0
    %v592 = vsel %vm496, 1, 0
    %v593 = vsel %vm497, 1, 0
    %v594 = vsel %vm498, 1, 0
    %v595 = vsel %vm499, 1, 0
    %v596 = vsel %vm500, 1, 0
    %v597 = vsel %vm501, 1, 0
    %v598 = vsel %vm502, 1, 0
    %v599 = vsel %vm503, 1, 0
    %v600 = vsel %vm504, 1, 0
    %v601 = vsel %vm505, 1, 0
    %v602 = vsel %vm506, 1, 0
    %v603 = vsel %vm507, 1, 0
    %v604 = vsel %vm508, 1, 0
    %v605 = vsel %vm509, 1, 0
    %v606 = vsel %vm510, 1, 0
    %v607 = vsel %vm511, 1, 0
    %v608 = vsel %vm512, 1, 0
    %v609 = vsel %vm513, 1, 0
    %v610 = vsel %vm514, 1, 0
    %v611 = vcvt.s32.f32 %v515
    %v612 = vcvt.s32.f32 %v516
    %v613 = vcvt.s32.f32 %v517
    %v614 = vcvt.s32.f32 %v518
    %v615 = vcvt.s32.f32 %v519
    %v616 = vcvt.s32.f32 %v520
    %v617 = vcvt.s32.f32 %v521
    %v618 = vcvt.s32.f32 %v522
    %v619 = vcvt.s32.f32 %v523
    %v620 = vcvt.s32.f32 %v524
    %v621 = vcvt.s32.f32 %v525
    %v622 = vcvt.s32.f32 %v526
    %v623 = vcvt.s32.f32 %v527
    %v624 = vcvt.s32.f32 %v528
    %v625 = vcvt.s32.f32 %v529
    %v626 = vcvt.s32.f32 %v530
    %v627 = vcvt.s32.f32 %v531
    %v628 = vcvt.s32.f32 %v532
    %v629 = vcvt.s32.f32 %v533
    %v630 = vcvt.s32.f32 %v534
    %v631 = vcvt.s32.f32 %v535
    %v632 = vcvt.s32.f32 %v536
    %v633 = vcvt.s32.f32 %v537
    %v634 = vcvt.s32.f32 %v538
    %v635 = vcvt.s32.f32 %v539
    %v636 = vcvt.s32.f32 %v540
    %v637 = vcvt.s32.f32 %v541
    %v638 = vcvt.s32.f32 %v542
    %v639 = vcvt.s32.f32 %v543
    %v640 = vcvt.s32.f32 %v544
    %v641 = vcvt.s32.f32 %v545
    %v642 = vcvt.s32.f32 %v546
    %v643 = vcvt.s32.f32 %v547
    %v644 = vcvt.s32.f32 %v548
    %v645 = vcvt.s32.f32 %v549
    %v646 = vcvt.s32.f32 %v550
    %v647 = vcvt.s32.f32 %v551
    %v648 = vcvt.s32.f32 %v552
    %v649 = vcvt.s32.f32 %v553
    %v650 = vcvt.s32.f32 %v554
    %v651 = vcvt.s32.f32 %v555
    %v652 = vcvt.s32.f32 %v556
    %v653 = vcvt.s32.f32 %v557
    %v654 = vcvt.s32.f32 %v558
    %v655 = vcvt.s32.f32 %v559
    %v656 = vcvt.s32.f32 %v560
    %v657 = vcvt.s32.f32 %v561
    %v658 = vcvt.s32.f32 %v562
    %v659 = vcvt.s32.f32 %v563
    %v660 = vcvt.s32.f32 %v564
    %v661 = vcvt.s32.f32 %v565
    %v662 = vcvt.s32.f32 %v566
    %v663 = vcvt.s32.f32 %v567
    %v664 = vcvt.s32.f32 %v568
    %v665 = vcvt.s32.f32 %v569
    %v666 = vcvt.s32.f32 %v570
    %v667 = vcvt.s32.f32 %v571
    %v668 = vcvt.s32.f32 %v572
    %v669 = vcvt.s32.f32 %v573
    %v670 = vcvt.s32.f32 %v574
    %v671 = vcvt.s32.f32 %v575
    %v672 = vcvt.s32.f32 %v576
    %v673 = vcvt.s32.f32 %v577
    %v674 = vcvt.s32.f32 %v578
    %v675 = vcvt.s32.f32 %v579
    %v676 = vcvt.s32.f32 %v580
    %v677 = vcvt.s32.f32 %v581
    %v678 = vcvt.s32.f32 %v582
    %v679 = vcvt.s32.f32 %v583
    %v680 = vcvt.s32.f32 %v584
    %v681 = vcvt.s32.f32 %v585
    %v682 = vcvt.s32.f32 %v586
    %v683 = vcvt.s32.f32 %v587
    %v684 = vcvt.s32.f32 %v588
    %v685 = vcvt.s32.f32 %v589
    %v686 = vcvt.s32.f32 %v590
    %v687 = vcvt.s32.f32 %v591
    %v688 = vcvt.s32.f32 %v592
    %v689 = vcvt.s32.f32 %v593
    %v690 = vcvt.s32.f32 %v594
    %v691 = vcvt.s32.f32 %v595
    %v692 = vcvt.s32.f32 %v596
    %v693 = vcvt.s32.f32 %v597
    %v694 = vcvt.s32.f32 %v598
    %v695 = vcvt.s32.f32 %v599
    %v696 = vcvt.s32.f32 %v600
    %v697 = vcvt.s32.f32 %v601
    %v698 = vcvt.s32.f32 %v602
    %v699 = vcvt.s32.f32 %v603
    %v700 = vcvt.s32.f32 %v604
    %v701 = vcvt.s32.f32 %v605
    %v702 = vcvt.s32.f32 %v606
    %v703 = vcvt.s32.f32 %v607
    %v704 = vcvt.s32.f32 %v608
    %v705 = vcvt.s32.f32 %v609
    %v706 = vcvt.s32.f32 %v610
    %v707 = vpack.c.bf16 %v612, %v611
    %v708 = vpack.c.bf16 %v614, %v613
    %v709 = vpack.c.bf16 %v616, %v615
    %v710 = vpack.c.bf16 %v618, %v617
    %v711 = vpack.c.bf16 %v620, %v619
    %v712 = vpack.c.bf16 %v622, %v621
    %v713 = vpack.c.bf16 %v624, %v623
    %v714 = vpack.c.bf16 %v626, %v625
    %v715 = vpack.c.bf16 %v628, %v627
    %v716 = vpack.c.bf16 %v630, %v629
    %v717 = vpack.c.bf16 %v632, %v631
    %v718 = vpack.c.bf16 %v634, %v633
    %v719 = vpack.c.bf16 %v636, %v635
    %v720 = vpack.c.bf16 %v638, %v637
    %v721 = vpack.c.bf16 %v640, %v639
    %v722 = vpack.c.bf16 %v642, %v641
    %v723 = vpack.c.bf16 %v644, %v643
    %v724 = vpack.c.bf16 %v646, %v645
    %v725 = vpack.c.bf16 %v648, %v647
    %v726 = vpack.c.bf16 %v650, %v649
    %v727 = vpack.c.bf16 %v652, %v651
    %v728 = vpack.c.bf16 %v654, %v653
    %v729 = vpack.c.bf16 %v656, %v655
    %v730 = vpack.c.bf16 %v658, %v657
    %v731 = vpack.c.bf16 %v660, %v659
    %v732 = vpack.c.bf16 %v662, %v661
    %v733 = vpack.c.bf16 %v664, %v663
    %v734 = vpack.c.bf16 %v666, %v665
    %v735 = vpack.c.bf16 %v668, %v667
    %v736 = vpack.c.bf16 %v670, %v669
    %v737 = vpack.c.bf16 %v672, %v671
    %v738 = vpack.c.bf16 %v674, %v673
    %v739 = vpack.c.bf16 %v676, %v675
    %v740 = vpack.c.bf16 %v678, %v677
    %v741 = vpack.c.bf16 %v680, %v679
    %v742 = vpack.c.bf16 %v682, %v681
    %v743 = vpack.c.bf16 %v684, %v683
    %v744 = vpack.c.bf16 %v686, %v685
    %v745 = vpack.c.bf16 %v688, %v687
    %v746 = vpack.c.bf16 %v690, %v689
    %v747 = vpack.c.bf16 %v692, %v691
    %v748 = vpack.c.bf16 %v694, %v693
    %v749 = vpack.c.bf16 %v696, %v695
    %v750 = vpack.c.bf16 %v698, %v697
    %v751 = vpack.c.bf16 %v700, %v699
    %v752 = vpack.c.bf16 %v702, %v701
    %v753 = vpack.c.bf16 %v704, %v703
    %v754 = vpack.c.bf16 %v706, %v705
    %v759 = vunpack.c.l.b16 %v29
    %v760 = vunpack.c.l.b16 %v30
    %v761 = vunpack.c.l.b16 %v31
    %v762 = vunpack.c.l.b16 %v32
    %v763 = vpack.c.b16 %v760, %v759
    %v764 = vpack.c.b16 %v762, %v761
    %vm767 = vcmask 261120
    %v769 = vsel %vm767, %v707, 0
    %v772 = vsel %vm767, %v708, 0
    %v775 = vsel %vm767, %v709, 0
    %v778 = vsel %vm767, %v710, 0
    %v781 = vsel %vm767, %v711, 0
    %v784 = vsel %vm767, %v712, 0
    %v787 = vsel %vm767, %v713, 0
    %v790 = vsel %vm767, %v714, 0
    %v793 = vsel %vm767, %v715, 0
    %v796 = vsel %vm767, %v716, 0
    %v799 = vsel %vm767, %v717, 0
    %v802 = vsel %vm767, %v718, 0
    %v805 = vsel %vm767, %v719, 0
    %v808 = vsel %vm767, %v720, 0
    %v811 = vsel %vm767, %v721, 0
    %v814 = vsel %vm767, %v722, 0
    %v817 = vsel %vm767, %v723, 0
    %v820 = vsel %vm767, %v724, 0
    %v823 = vsel %vm767, %v725, 0
    %v826 = vsel %vm767, %v726, 0
    %v829 = vsel %vm767, %v727, 0
    %v832 = vsel %vm767, %v728, 0
    %v835 = vsel %vm767, %v729, 0
    %v838 = vsel %vm767, %v730, 0
    %v841 = vsel %vm767, %v731, 0
    %v844 = vsel %vm767, %v732, 0
    %v847 = vsel %vm767, %v733, 0
    %v850 = vsel %vm767, %v734, 0
    %v853 = vsel %vm767, %v735, 0
    %v856 = vsel %vm767, %v736, 0
    %v859 = vsel %vm767, %v737, 0
    %v862 = vsel %vm767, %v738, 0
    %v865 = vsel %vm767, %v739, 0
    %v868 = vsel %vm767, %v740, 0
    %v871 = vsel %vm767, %v741, 0
    %v874 = vsel %vm767, %v742, 0
    %v877 = vsel %vm767, %v743, 0
    %v880 = vsel %vm767, %v744, 0
    %v883 = vsel %vm767, %v745, 0
    %v886 = vsel %vm767, %v746, 0
    %v889 = vsel %vm767, %v747, 0
    %v892 = vsel %vm767, %v748, 0
    %v895 = vsel %vm767, %v749, 0
    %v898 = vsel %vm767, %v750, 0
    %v901 = vsel %vm767, %v751, 0
    %v904 = vsel %vm767, %v752, 0
    %v907 = vsel %vm767, %v753, 0
    %v910 = vsel %vm767, %v754, 0
    %912 = vmatprep.subr.bf16.mxu0 0
    %913 = vmatpush1.bf16.msra.mxu0 0
    %914 = vmatprep.subr.bf16.mxu0 0
    %915 = vmatpush1.bf16.msra.mxu0 0
    %916 = vmatprep.subr.bf16.mxu0 0
    %917 = vmatpush1.bf16.msra.mxu0 0
    %918 = vmatprep.subr.bf16.mxu0 0
    %919 = vmatpush1.bf16.msra.mxu0 0
    %920 = vmatprep.subr.bf16.mxu0 0
    %921 = vmatpush1.bf16.msra.mxu0 0
    %922 = vmatprep.subr.bf16.mxu0 0
    %923 = vmatpush1.bf16.msra.mxu0 0
    %924 = vmatprep.subr.bf16.mxu0 0
    %925 = vmatpush1.bf16.msra.mxu0 %v764
    %926 = vmatprep.subr.bf16.mxu0 0
    %927 = vmatpush1.bf16.msra.mxu0 %v763
    %928 = vmatprep.subr.bf16.mxu0 0
    %929 = vmatpush2.bf16.msra.mxu0 0
    %930 = vmatprep.subr.bf16.mxu0 0
    %931 = vmatpush2.bf16.msra.mxu0 0
    %932 = vmatprep.subr.bf16.mxu0 0
    %933 = vmatpush2.bf16.msra.mxu0 0
    %934 = vmatprep.subr.bf16.mxu0 0
    %935 = vmatpush2.bf16.msra.mxu0 0
    %936 = vmatprep.subr.bf16.mxu0 0
    %937 = vmatpush2.bf16.msra.mxu0 0
    %938 = vmatprep.subr.bf16.mxu0 0
    %939 = vmatpush2.bf16.msra.mxu0 0
    %940 = vmatprep.subr.bf16.mxu0 0
    %941 = vmatpush2.bf16.msra.mxu0 0
    %942 = vmatprep.subr.bf16.mxu0 0
    %943 = vmatpush2.bf16.msra.mxu0 0
    %944 = vmatprep.mubr.bf16.mxu0 0
    %945 = vmatmul.mubr.bf16.gmra.mxu0 %v769
    %v946 = vpop.f32.mrf.mxu0
    %v947 = vadd.f32 0.0, %v946
    %v948 = vpop.f32.mrf.mxu0
    %v949 = vpop.f32.mrf.mxu0
    %v950 = vadd.f32 0.0, %v949
    %v951 = vpop.f32.mrf.mxu0
    %952 = vmatprep.mubr.bf16.mxu0 0
    %953 = vmatmul.mubr.bf16.gmra.mxu0 %v772
    %v954 = vpop.f32.mrf.mxu0
    %v955 = vadd.f32 0.0, %v954
    %v956 = vpop.f32.mrf.mxu0
    %v957 = vpop.f32.mrf.mxu0
    %v958 = vadd.f32 0.0, %v957
    %v959 = vpop.f32.mrf.mxu0
    %960 = vmatprep.mubr.bf16.mxu0 0
    %961 = vmatmul.mubr.bf16.gmra.mxu0 %v775
    %v962 = vpop.f32.mrf.mxu0
    %v963 = vadd.f32 0.0, %v962
    %v964 = vpop.f32.mrf.mxu0
    %v965 = vpop.f32.mrf.mxu0
    %v966 = vadd.f32 0.0, %v965
    %v967 = vpop.f32.mrf.mxu0
    %968 = vmatprep.mubr.bf16.mxu0 0
    %969 = vmatmul.mubr.bf16.gmra.mxu0 %v778
    %v970 = vpop.f32.mrf.mxu0
    %v971 = vadd.f32 0.0, %v970
    %v972 = vpop.f32.mrf.mxu0
    %v973 = vpop.f32.mrf.mxu0
    %v974 = vadd.f32 0.0, %v973
    %v975 = vpop.f32.mrf.mxu0
    %976 = vmatprep.mubr.bf16.mxu0 0
    %977 = vmatmul.mubr.bf16.gmra.mxu0 %v781
    %v978 = vpop.f32.mrf.mxu0
    %v979 = vadd.f32 0.0, %v978
    %v980 = vpop.f32.mrf.mxu0
    %v981 = vpop.f32.mrf.mxu0
    %v982 = vadd.f32 0.0, %v981
    %v983 = vpop.f32.mrf.mxu0
    %984 = vmatprep.mubr.bf16.mxu0 0
    %985 = vmatmul.mubr.bf16.gmra.mxu0 %v784
    %v986 = vpop.f32.mrf.mxu0
    %v987 = vadd.f32 0.0, %v986
    %v988 = vpop.f32.mrf.mxu0
    %v989 = vpop.f32.mrf.mxu0
    %v990 = vadd.f32 0.0, %v989
    %v991 = vpop.f32.mrf.mxu0
    %992 = vmatprep.mubr.bf16.mxu0 0
    %993 = vmatmul.mubr.bf16.gmra.mxu0 %v787
    %v994 = vpop.f32.mrf.mxu0
    %v995 = vadd.f32 0.0, %v994
    %v996 = vpop.f32.mrf.mxu0
    %v997 = vpop.f32.mrf.mxu0
    %v998 = vadd.f32 0.0, %v997
    %v999 = vpop.f32.mrf.mxu0
    %1000 = vmatprep.mubr.bf16.mxu0 0
    %1001 = vmatmul.mubr.bf16.gmra.mxu0 %v790
    %v1002 = vpop.f32.mrf.mxu0
    %v1003 = vadd.f32 0.0, %v1002
    %v1004 = vpop.f32.mrf.mxu0
    %v1005 = vpop.f32.mrf.mxu0
    %v1006 = vadd.f32 0.0, %v1005
    %v1007 = vpop.f32.mrf.mxu0
    %1008 = vmatprep.mubr.bf16.mxu0 0
    %1009 = vmatmul.mubr.bf16.gmra.mxu0 %v793
    %v1010 = vpop.f32.mrf.mxu0
    %v1011 = vadd.f32 0.0, %v1010
    %v1012 = vpop.f32.mrf.mxu0
    %v1013 = vpop.f32.mrf.mxu0
    %v1014 = vadd.f32 0.0, %v1013
    %v1015 = vpop.f32.mrf.mxu0
    %1016 = vmatprep.mubr.bf16.mxu0 0
    %1017 = vmatmul.mubr.bf16.gmra.mxu0 %v796
    %v1018 = vpop.f32.mrf.mxu0
    %v1019 = vadd.f32 0.0, %v1018
    %v1020 = vpop.f32.mrf.mxu0
    %v1021 = vpop.f32.mrf.mxu0
    %v1022 = vadd.f32 0.0, %v1021
    %v1023 = vpop.f32.mrf.mxu0
    %1024 = vmatprep.mubr.bf16.mxu0 0
    %1025 = vmatmul.mubr.bf16.gmra.mxu0 %v799
    %v1026 = vpop.f32.mrf.mxu0
    %v1027 = vadd.f32 0.0, %v1026
    %v1028 = vpop.f32.mrf.mxu0
    %v1029 = vpop.f32.mrf.mxu0
    %v1030 = vadd.f32 0.0, %v1029
    %v1031 = vpop.f32.mrf.mxu0
    %1032 = vmatprep.mubr.bf16.mxu0 0
    %1033 = vmatmul.mubr.bf16.gmra.mxu0 %v802
    %v1034 = vpop.f32.mrf.mxu0
    %v1035 = vadd.f32 0.0, %v1034
    %v1036 = vpop.f32.mrf.mxu0
    %v1037 = vpop.f32.mrf.mxu0
    %v1038 = vadd.f32 0.0, %v1037
    %v1039 = vpop.f32.mrf.mxu0
    %1040 = vmatprep.mubr.bf16.mxu0 0
    %1041 = vmatmul.mubr.bf16.gmra.mxu0 %v805
    %v1042 = vpop.f32.mrf.mxu0
    %v1043 = vadd.f32 0.0, %v1042
    %v1044 = vpop.f32.mrf.mxu0
    %v1045 = vpop.f32.mrf.mxu0
    %v1046 = vadd.f32 0.0, %v1045
    %v1047 = vpop.f32.mrf.mxu0
    %1048 = vmatprep.mubr.bf16.mxu0 0
    %1049 = vmatmul.mubr.bf16.gmra.mxu0 %v808
    %v1050 = vpop.f32.mrf.mxu0
    %v1051 = vadd.f32 0.0, %v1050
    %v1052 = vpop.f32.mrf.mxu0
    %v1053 = vpop.f32.mrf.mxu0
    %v1054 = vadd.f32 0.0, %v1053
    %v1055 = vpop.f32.mrf.mxu0
    %1056 = vmatprep.mubr.bf16.mxu0 0
    %1057 = vmatmul.mubr.bf16.gmra.mxu0 %v811
    %v1058 = vpop.f32.mrf.mxu0
    %v1059 = vadd.f32 0.0, %v1058
    %v1060 = vpop.f32.mrf.mxu0
    %v1061 = vpop.f32.mrf.mxu0
    %v1062 = vadd.f32 0.0, %v1061
    %v1063 = vpop.f32.mrf.mxu0
    %1064 = vmatprep.mubr.bf16.mxu0 0
    %1065 = vmatmul.mubr.bf16.gmra.mxu0 %v814
    %v1066 = vpop.f32.mrf.mxu0
    %v1067 = vadd.f32 0.0, %v1066
    %v1068 = vpop.f32.mrf.mxu0
    %v1069 = vpop.f32.mrf.mxu0
    %v1070 = vadd.f32 0.0, %v1069
    %v1071 = vpop.f32.mrf.mxu0
    %1072 = vmatprep.mubr.bf16.mxu0 0
    %1073 = vmatmul.mubr.bf16.gmra.mxu0 %v817
    %v1074 = vpop.f32.mrf.mxu0
    %v1075 = vadd.f32 0.0, %v1074
    %v1076 = vpop.f32.mrf.mxu0
    %v1077 = vpop.f32.mrf.mxu0
    %v1078 = vadd.f32 0.0, %v1077
    %v1079 = vpop.f32.mrf.mxu0
    %1080 = vmatprep.mubr.bf16.mxu0 0
    %1081 = vmatmul.mubr.bf16.gmra.mxu0 %v820
    %v1082 = vpop.f32.mrf.mxu0
    %v1083 = vadd.f32 0.0, %v1082
    %v1084 = vpop.f32.mrf.mxu0
    %v1085 = vpop.f32.mrf.mxu0
    %v1086 = vadd.f32 0.0, %v1085
    %v1087 = vpop.f32.mrf.mxu0
    %1088 = vmatprep.mubr.bf16.mxu0 0
    %1089 = vmatmul.mubr.bf16.gmra.mxu0 %v823
    %v1090 = vpop.f32.mrf.mxu0
    %v1091 = vadd.f32 0.0, %v1090
    %v1092 = vpop.f32.mrf.mxu0
    %v1093 = vpop.f32.mrf.mxu0
    %v1094 = vadd.f32 0.0, %v1093
    %v1095 = vpop.f32.mrf.mxu0
    %1096 = vmatprep.mubr.bf16.mxu0 0
    %1097 = vmatmul.mubr.bf16.gmra.mxu0 %v826
    %v1098 = vpop.f32.mrf.mxu0
    %v1099 = vadd.f32 0.0, %v1098
    %v1100 = vpop.f32.mrf.mxu0
    %v1101 = vpop.f32.mrf.mxu0
    %v1102 = vadd.f32 0.0, %v1101
    %v1103 = vpop.f32.mrf.mxu0
    %1104 = vmatprep.mubr.bf16.mxu0 0
    %1105 = vmatmul.mubr.bf16.gmra.mxu0 %v829
    %v1106 = vpop.f32.mrf.mxu0
    %v1107 = vadd.f32 0.0, %v1106
    %v1108 = vpop.f32.mrf.mxu0
    %v1109 = vpop.f32.mrf.mxu0
    %v1110 = vadd.f32 0.0, %v1109
    %v1111 = vpop.f32.mrf.mxu0
    %1112 = vmatprep.mubr.bf16.mxu0 0
    %1113 = vmatmul.mubr.bf16.gmra.mxu0 %v832
    %v1114 = vpop.f32.mrf.mxu0
    %v1115 = vadd.f32 0.0, %v1114
    %v1116 = vpop.f32.mrf.mxu0
    %v1117 = vpop.f32.mrf.mxu0
    %v1118 = vadd.f32 0.0, %v1117
    %v1119 = vpop.f32.mrf.mxu0
    %1120 = vmatprep.mubr.bf16.mxu0 0
    %1121 = vmatmul.mubr.bf16.gmra.mxu0 %v835
    %v1122 = vpop.f32.mrf.mxu0
    %v1123 = vadd.f32 0.0, %v1122
    %v1124 = vpop.f32.mrf.mxu0
    %v1125 = vpop.f32.mrf.mxu0
    %v1126 = vadd.f32 0.0, %v1125
    %v1127 = vpop.f32.mrf.mxu0
    %1128 = vmatprep.mubr.bf16.mxu0 0
    %1129 = vmatmul.mubr.bf16.gmra.mxu0 %v838
    %v1130 = vpop.f32.mrf.mxu0
    %v1131 = vadd.f32 0.0, %v1130
    %v1132 = vpop.f32.mrf.mxu0
    %v1133 = vpop.f32.mrf.mxu0
    %v1134 = vadd.f32 0.0, %v1133
    %v1135 = vpop.f32.mrf.mxu0
    %1136 = vmatprep.mubr.bf16.mxu0 0
    %1137 = vmatmul.mubr.bf16.gmra.mxu0 %v841
    %v1138 = vpop.f32.mrf.mxu0
    %v1139 = vadd.f32 0.0, %v1138
    %v1140 = vpop.f32.mrf.mxu0
    %v1141 = vpop.f32.mrf.mxu0
    %v1142 = vadd.f32 0.0, %v1141
    %v1143 = vpop.f32.mrf.mxu0
    %1144 = vmatprep.mubr.bf16.mxu0 0
    %1145 = vmatmul.mubr.bf16.gmra.mxu0 %v844
    %v1146 = vpop.f32.mrf.mxu0
    %v1147 = vadd.f32 0.0, %v1146
    %v1148 = vpop.f32.mrf.mxu0
    %v1149 = vpop.f32.mrf.mxu0
    %v1150 = vadd.f32 0.0, %v1149
    %v1151 = vpop.f32.mrf.mxu0
    %1152 = vmatprep.mubr.bf16.mxu0 0
    %1153 = vmatmul.mubr.bf16.gmra.mxu0 %v847
    %v1154 = vpop.f32.mrf.mxu0
    %v1155 = vadd.f32 0.0, %v1154
    %v1156 = vpop.f32.mrf.mxu0
    %v1157 = vpop.f32.mrf.mxu0
    %v1158 = vadd.f32 0.0, %v1157
    %v1159 = vpop.f32.mrf.mxu0
    %1160 = vmatprep.mubr.bf16.mxu0 0
    %1161 = vmatmul.mubr.bf16.gmra.mxu0 %v850
    %v1162 = vpop.f32.mrf.mxu0
    %v1163 = vadd.f32 0.0, %v1162
    %v1164 = vpop.f32.mrf.mxu0
    %v1165 = vpop.f32.mrf.mxu0
    %v1166 = vadd.f32 0.0, %v1165
    %v1167 = vpop.f32.mrf.mxu0
    %1168 = vmatprep.mubr.bf16.mxu0 0
    %1169 = vmatmul.mubr.bf16.gmra.mxu0 %v853
    %v1170 = vpop.f32.mrf.mxu0
    %v1171 = vadd.f32 0.0, %v1170
    %v1172 = vpop.f32.mrf.mxu0
    %v1173 = vpop.f32.mrf.mxu0
    %v1174 = vadd.f32 0.0, %v1173
    %v1175 = vpop.f32.mrf.mxu0
    %1176 = vmatprep.mubr.bf16.mxu0 0
    %1177 = vmatmul.mubr.bf16.gmra.mxu0 %v856
    %v1178 = vpop.f32.mrf.mxu0
    %v1179 = vadd.f32 0.0, %v1178
    %v1180 = vpop.f32.mrf.mxu0
    %v1181 = vpop.f32.mrf.mxu0
    %v1182 = vadd.f32 0.0, %v1181
    %v1183 = vpop.f32.mrf.mxu0
    %1184 = vmatprep.mubr.bf16.mxu0 0
    %1185 = vmatmul.mubr.bf16.gmra.mxu0 %v859
    %v1186 = vpop.f32.mrf.mxu0
    %v1187 = vadd.f32 0.0, %v1186
    %v1188 = vpop.f32.mrf.mxu0
    %v1189 = vpop.f32.mrf.mxu0
    %v1190 = vadd.f32 0.0, %v1189
    %v1191 = vpop.f32.mrf.mxu0
    %1192 = vmatprep.mubr.bf16.mxu0 0
    %1193 = vmatmul.mubr.bf16.gmra.mxu0 %v862
    %v1194 = vpop.f32.mrf.mxu0
    %v1195 = vadd.f32 0.0, %v1194
    %v1196 = vpop.f32.mrf.mxu0
    %v1197 = vpop.f32.mrf.mxu0
    %v1198 = vadd.f32 0.0, %v1197
    %v1199 = vpop.f32.mrf.mxu0
    %1200 = vmatprep.mubr.bf16.mxu0 0
    %1201 = vmatmul.mubr.bf16.gmra.mxu0 %v865
    %v1202 = vpop.f32.mrf.mxu0
    %v1203 = vadd.f32 0.0, %v1202
    %v1204 = vpop.f32.mrf.mxu0
    %v1205 = vpop.f32.mrf.mxu0
    %v1206 = vadd.f32 0.0, %v1205
    %v1207 = vpop.f32.mrf.mxu0
    %1208 = vmatprep.mubr.bf16.mxu0 0
    %1209 = vmatmul.mubr.bf16.gmra.mxu0 %v868
    %v1210 = vpop.f32.mrf.mxu0
    %v1211 = vadd.f32 0.0, %v1210
    %v1212 = vpop.f32.mrf.mxu0
    %v1213 = vpop.f32.mrf.mxu0
    %v1214 = vadd.f32 0.0, %v1213
    %v1215 = vpop.f32.mrf.mxu0
    %1216 = vmatprep.mubr.bf16.mxu0 0
    %1217 = vmatmul.mubr.bf16.gmra.mxu0 %v871
    %v1218 = vpop.f32.mrf.mxu0
    %v1219 = vadd.f32 0.0, %v1218
    %v1220 = vpop.f32.mrf.mxu0
    %v1221 = vpop.f32.mrf.mxu0
    %v1222 = vadd.f32 0.0, %v1221
    %v1223 = vpop.f32.mrf.mxu0
    %1224 = vmatprep.mubr.bf16.mxu0 0
    %1225 = vmatmul.mubr.bf16.gmra.mxu0 %v874
    %v1226 = vpop.f32.mrf.mxu0
    %v1227 = vadd.f32 0.0, %v1226
    %v1228 = vpop.f32.mrf.mxu0
    %v1229 = vpop.f32.mrf.mxu0
    %v1230 = vadd.f32 0.0, %v1229
    %v1231 = vpop.f32.mrf.mxu0
    %1232 = vmatprep.mubr.bf16.mxu0 0
    %1233 = vmatmul.mubr.bf16.gmra.mxu0 %v877
    %v1234 = vpop.f32.mrf.mxu0
    %v1235 = vadd.f32 0.0, %v1234
    %v1236 = vpop.f32.mrf.mxu0
    %v1237 = vpop.f32.mrf.mxu0
    %v1238 = vadd.f32 0.0, %v1237
    %v1239 = vpop.f32.mrf.mxu0
    %1240 = vmatprep.mubr.bf16.mxu0 0
    %1241 = vmatmul.mubr.bf16.gmra.mxu0 %v880
    %v1242 = vpop.f32.mrf.mxu0
    %v1243 = vadd.f32 0.0, %v1242
    %v1244 = vpop.f32.mrf.mxu0
    %v1245 = vpop.f32.mrf.mxu0
    %v1246 = vadd.f32 0.0, %v1245
    %v1247 = vpop.f32.mrf.mxu0
    %1248 = vmatprep.mubr.bf16.mxu0 0
    %1249 = vmatmul.mubr.bf16.gmra.mxu0 %v883
    %v1250 = vpop.f32.mrf.mxu0
    %v1251 = vadd.f32 0.0, %v1250
    %v1252 = vpop.f32.mrf.mxu0
    %v1253 = vpop.f32.mrf.mxu0
    %v1254 = vadd.f32 0.0, %v1253
    %v1255 = vpop.f32.mrf.mxu0
    %1256 = vmatprep.mubr.bf16.mxu0 0
    %1257 = vmatmul.mubr.bf16.gmra.mxu0 %v886
    %v1258 = vpop.f32.mrf.mxu0
    %v1259 = vadd.f32 0.0, %v1258
    %v1260 = vpop.f32.mrf.mxu0
    %v1261 = vpop.f32.mrf.mxu0
    %v1262 = vadd.f32 0.0, %v1261
    %v1263 = vpop.f32.mrf.mxu0
    %1264 = vmatprep.mubr.bf16.mxu0 0
    %1265 = vmatmul.mubr.bf16.gmra.mxu0 %v889
    %v1266 = vpop.f32.mrf.mxu0
    %v1267 = vadd.f32 0.0, %v1266
    %v1268 = vpop.f32.mrf.mxu0
    %v1269 = vpop.f32.mrf.mxu0
    %v1270 = vadd.f32 0.0, %v1269
    %v1271 = vpop.f32.mrf.mxu0
    %1272 = vmatprep.mubr.bf16.mxu0 0
    %1273 = vmatmul.mubr.bf16.gmra.mxu0 %v892
    %v1274 = vpop.f32.mrf.mxu0
    %v1275 = vadd.f32 0.0, %v1274
    %v1276 = vpop.f32.mrf.mxu0
    %v1277 = vpop.f32.mrf.mxu0
    %v1278 = vadd.f32 0.0, %v1277
    %v1279 = vpop.f32.mrf.mxu0
    %1280 = vmatprep.mubr.bf16.mxu0 0
    %1281 = vmatmul.mubr.bf16.gmra.mxu0 %v895
    %v1282 = vpop.f32.mrf.mxu0
    %v1283 = vadd.f32 0.0, %v1282
    %v1284 = vpop.f32.mrf.mxu0
    %v1285 = vpop.f32.mrf.mxu0
    %v1286 = vadd.f32 0.0, %v1285
    %v1287 = vpop.f32.mrf.mxu0
    %1288 = vmatprep.mubr.bf16.mxu0 0
    %1289 = vmatmul.mubr.bf16.gmra.mxu0 %v898
    %v1290 = vpop.f32.mrf.mxu0
    %v1291 = vadd.f32 0.0, %v1290
    %v1292 = vpop.f32.mrf.mxu0
    %v1293 = vpop.f32.mrf.mxu0
    %v1294 = vadd.f32 0.0, %v1293
    %v1295 = vpop.f32.mrf.mxu0
    %1296 = vmatprep.mubr.bf16.mxu0 0
    %1297 = vmatmul.mubr.bf16.gmra.mxu0 %v901
    %v1298 = vpop.f32.mrf.mxu0
    %v1299 = vadd.f32 0.0, %v1298
    %v1300 = vpop.f32.mrf.mxu0
    %v1301 = vpop.f32.mrf.mxu0
    %v1302 = vadd.f32 0.0, %v1301
    %v1303 = vpop.f32.mrf.mxu0
    %1304 = vmatprep.mubr.bf16.mxu0 0
    %1305 = vmatmul.mubr.bf16.gmra.mxu0 %v904
    %v1306 = vpop.f32.mrf.mxu0
    %v1307 = vadd.f32 0.0, %v1306
    %v1308 = vpop.f32.mrf.mxu0
    %v1309 = vpop.f32.mrf.mxu0
    %v1310 = vadd.f32 0.0, %v1309
    %v1311 = vpop.f32.mrf.mxu0
    %1312 = vmatprep.mubr.bf16.mxu0 0
    %1313 = vmatmul.mubr.bf16.gmra.mxu0 %v907
    %v1314 = vpop.f32.mrf.mxu0
    %v1315 = vadd.f32 0.0, %v1314
    %v1316 = vpop.f32.mrf.mxu0
    %v1317 = vpop.f32.mrf.mxu0
    %v1318 = vadd.f32 0.0, %v1317
    %v1319 = vpop.f32.mrf.mxu0
    %1320 = vmatprep.mubr.bf16.mxu0 0
    %1321 = vmatmul.mubr.bf16.gmra.mxu0 %v910
    %v1322 = vpop.f32.mrf.mxu0
    %v1323 = vadd.f32 0.0, %v1322
    %v1324 = vpop.f32.mrf.mxu0
    %v1325 = vpop.f32.mrf.mxu0
    %v1326 = vadd.f32 0.0, %v1325
    %v1327 = vpop.f32.mrf.mxu0
    %1328 = vdwg.mxu0
    %v1329 = vpack.c.bf16 %v950, %v947
    %v1330 = vpack.c.bf16 %v958, %v955
    %v1331 = vpack.c.bf16 %v966, %v963
    %v1332 = vpack.c.bf16 %v974, %v971
    %v1333 = vpack.c.bf16 %v982, %v979
    %v1334 = vpack.c.bf16 %v990, %v987
    %v1335 = vpack.c.bf16 %v998, %v995
    %v1336 = vpack.c.bf16 %v1006, %v1003
    %v1337 = vpack.c.bf16 %v1014, %v1011
    %v1338 = vpack.c.bf16 %v1022, %v1019
    %v1339 = vpack.c.bf16 %v1030, %v1027
    %v1340 = vpack.c.bf16 %v1038, %v1035
    %v1341 = vpack.c.bf16 %v1046, %v1043
    %v1342 = vpack.c.bf16 %v1054, %v1051
    %v1343 = vpack.c.bf16 %v1062, %v1059
    %v1344 = vpack.c.bf16 %v1070, %v1067
    %v1345 = vpack.c.bf16 %v1078, %v1075
    %v1346 = vpack.c.bf16 %v1086, %v1083
    %v1347 = vpack.c.bf16 %v1094, %v1091
    %v1348 = vpack.c.bf16 %v1102, %v1099
    %v1349 = vpack.c.bf16 %v1110, %v1107
    %v1350 = vpack.c.bf16 %v1118, %v1115
    %v1351 = vpack.c.bf16 %v1126, %v1123
    %v1352 = vpack.c.bf16 %v1134, %v1131
    %v1353 = vpack.c.bf16 %v1142, %v1139
    %v1354 = vpack.c.bf16 %v1150, %v1147
    %v1355 = vpack.c.bf16 %v1158, %v1155
    %v1356 = vpack.c.bf16 %v1166, %v1163
    %v1357 = vpack.c.bf16 %v1174, %v1171
    %v1358 = vpack.c.bf16 %v1182, %v1179
    %v1359 = vpack.c.bf16 %v1190, %v1187
    %v1360 = vpack.c.bf16 %v1198, %v1195
    %v1361 = vpack.c.bf16 %v1206, %v1203
    %v1362 = vpack.c.bf16 %v1214, %v1211
    %v1363 = vpack.c.bf16 %v1222, %v1219
    %v1364 = vpack.c.bf16 %v1230, %v1227
    %v1365 = vpack.c.bf16 %v1238, %v1235
    %v1366 = vpack.c.bf16 %v1246, %v1243
    %v1367 = vpack.c.bf16 %v1254, %v1251
    %v1368 = vpack.c.bf16 %v1262, %v1259
    %v1369 = vpack.c.bf16 %v1270, %v1267
    %v1370 = vpack.c.bf16 %v1278, %v1275
    %v1371 = vpack.c.bf16 %v1286, %v1283
    %v1372 = vpack.c.bf16 %v1294, %v1291
    %v1373 = vpack.c.bf16 %v1302, %v1299
    %v1374 = vpack.c.bf16 %v1310, %v1307
    %v1375 = vpack.c.bf16 %v1318, %v1315
    %v1376 = vpack.c.bf16 %v1326, %v1323
    %v1377 = vld [vmem:[%s2] sm:$0xf]
    %v1378 = vld [vmem:[%s2 + $0x4] sm:$0xf]
    %v1379 = vld [vmem:[%s2 + $0x8] sm:$0xf]
    %v1380 = vld [vmem:[%s2 + $0xc] sm:$0xf]
    %v1381 = vld [vmem:[%s2 + $0x10] sm:$0xf]
    %v1382 = vld [vmem:[%s2 + $0x14] sm:$0xf]
    %v1383 = vld [vmem:[%s2 + $0x18] sm:$0xf]
    %v1384 = vld [vmem:[%s2 + $0x1c] sm:$0xf]
    %v1385 = vld [vmem:[%s2 + $0x20] sm:$0xf]
    %v1386 = vld [vmem:[%s2 + $0x24] sm:$0xf]
    %v1387 = vld [vmem:[%s2 + $0x28] sm:$0xf]
    %v1388 = vld [vmem:[%s2 + $0x2c] sm:$0xf]
    %v1389 = vld [vmem:[%s2 + $0x30] sm:$0xf]
    %v1390 = vld [vmem:[%s2 + $0x34] sm:$0xf]
    %v1391 = vld [vmem:[%s2 + $0x38] sm:$0xf]
    %v1392 = vld [vmem:[%s2 + $0x3c] sm:$0xf]
    %v1393 = vld [vmem:[%s3] sm:$0xf]
    %v1394 = vld [vmem:[%s3 + $0x4] sm:$0xf]
    %v1395 = vld [vmem:[%s3 + $0x8] sm:$0xf]
    %v1396 = vld [vmem:[%s3 + $0xc] sm:$0xf]
    %v1397 = vld [vmem:[%s3 + $0x10] sm:$0xf]
    %v1398 = vld [vmem:[%s3 + $0x14] sm:$0xf]
    %v1399 = vld [vmem:[%s3 + $0x18] sm:$0xf]
    %v1400 = vld [vmem:[%s3 + $0x1c] sm:$0xf]
    %v1401 = vld [vmem:[%s3 + $0x20] sm:$0xf]
    %v1402 = vld [vmem:[%s3 + $0x24] sm:$0xf]
    %v1403 = vld [vmem:[%s3 + $0x28] sm:$0xf]
    %v1404 = vld [vmem:[%s3 + $0x2c] sm:$0xf]
    %v1405 = vld [vmem:[%s3 + $0x30] sm:$0xf]
    %v1406 = vld [vmem:[%s3 + $0x34] sm:$0xf]
    %v1407 = vld [vmem:[%s3 + $0x38] sm:$0xf]
    %v1408 = vld [vmem:[%s3 + $0x3c] sm:$0xf]
    %v1425 = vunpack.c.l.b16 %v1393
    %v1426 = vunpack.c.l.b16 %v1394
    %v1427 = vunpack.c.l.b16 %v1395
    %v1428 = vunpack.c.l.b16 %v1396
    %v1429 = vunpack.c.l.b16 %v1397
    %v1430 = vunpack.c.l.b16 %v1398
    %v1431 = vunpack.c.l.b16 %v1399
    %v1432 = vunpack.c.l.b16 %v1400
    %v1433 = vunpack.c.l.b16 %v1401
    %v1434 = vunpack.c.l.b16 %v1402
    %v1435 = vunpack.c.l.b16 %v1403
    %v1436 = vunpack.c.l.b16 %v1404
    %v1437 = vunpack.c.l.b16 %v1405
    %v1438 = vunpack.c.l.b16 %v1406
    %v1439 = vunpack.c.l.b16 %v1407
    %v1440 = vunpack.c.l.b16 %v1408
    %v1441 = vpack.c.b16 %v1426, %v1425
    %v1442 = vpack.c.b16 %v1428, %v1427
    %v1443 = vpack.c.b16 %v1430, %v1429
    %v1444 = vpack.c.b16 %v1432, %v1431
    %v1445 = vpack.c.b16 %v1434, %v1433
    %v1446 = vpack.c.b16 %v1436, %v1435
    %v1447 = vpack.c.b16 %v1438, %v1437
    %v1448 = vpack.c.b16 %v1440, %v1439
    %1457 = vmatprep.subr.bf16.mxu0 0
    %1458 = vmatpush1.bf16.msra.mxu0 %v1448
    %1459 = vmatprep.subr.bf16.mxu0 0
    %1460 = vmatpush1.bf16.msra.mxu0 %v1447
    %1461 = vmatprep.subr.bf16.mxu0 0
    %1462 = vmatpush1.bf16.msra.mxu0 %v1446
    %1463 = vmatprep.subr.bf16.mxu0 0
    %1464 = vmatpush1.bf16.msra.mxu0 %v1445
    %1465 = vmatprep.subr.bf16.mxu0 0
    %1466 = vmatpush1.bf16.msra.mxu0 %v1444
    %1467 = vmatprep.subr.bf16.mxu0 0
    %1468 = vmatpush1.bf16.msra.mxu0 %v1443
    %1469 = vmatprep.subr.bf16.mxu0 0
    %1470 = vmatpush1.bf16.msra.mxu0 %v1442
    %1471 = vmatprep.subr.bf16.mxu0 0
    %1472 = vmatpush1.bf16.msra.mxu0 %v1441
    %1473 = vmatprep.subr.bf16.mxu0 0
    %1474 = vmatpush2.bf16.msra.mxu0 0
    %1475 = vmatprep.subr.bf16.mxu0 0
    %1476 = vmatpush2.bf16.msra.mxu0 0
    %1477 = vmatprep.subr.bf16.mxu0 0
    %1478 = vmatpush2.bf16.msra.mxu0 0
    %1479 = vmatprep.subr.bf16.mxu0 0
    %1480 = vmatpush2.bf16.msra.mxu0 0
    %1481 = vmatprep.subr.bf16.mxu0 0
    %1482 = vmatpush2.bf16.msra.mxu0 0
    %1483 = vmatprep.subr.bf16.mxu0 0
    %1484 = vmatpush2.bf16.msra.mxu0 0
    %1485 = vmatprep.subr.bf16.mxu0 0
    %1486 = vmatpush2.bf16.msra.mxu0 0
    %1487 = vmatprep.subr.bf16.mxu0 0
    %1488 = vmatpush2.bf16.msra.mxu0 0
    %1489 = vmatprep.mubr.bf16.mxu0 0
    %1490 = vmatmul.mubr.bf16.gmra.mxu0 %v1345
    %v1491 = vpop.f32.mrf.mxu0
    %v1492 = vadd.f32 0.0, %v1491
    %v1493 = vpop.f32.mrf.mxu0
    %v1494 = vpop.f32.mrf.mxu0
    %v1495 = vadd.f32 0.0, %v1494
    %v1496 = vpop.f32.mrf.mxu0
    %1497 = vmatprep.mubr.bf16.mxu0 0
    %1498 = vmatmul.mubr.bf16.gmra.mxu0 %v1346
    %v1499 = vpop.f32.mrf.mxu0
    %v1500 = vadd.f32 0.0, %v1499
    %v1501 = vpop.f32.mrf.mxu0
    %v1502 = vpop.f32.mrf.mxu0
    %v1503 = vadd.f32 0.0, %v1502
    %v1504 = vpop.f32.mrf.mxu0
    %1505 = vmatprep.mubr.bf16.mxu0 0
    %1506 = vmatmul.mubr.bf16.gmra.mxu0 %v1347
    %v1507 = vpop.f32.mrf.mxu0
    %v1508 = vadd.f32 0.0, %v1507
    %v1509 = vpop.f32.mrf.mxu0
    %v1510 = vpop.f32.mrf.mxu0
    %v1511 = vadd.f32 0.0, %v1510
    %v1512 = vpop.f32.mrf.mxu0
    %1513 = vmatprep.mubr.bf16.mxu0 0
    %1514 = vmatmul.mubr.bf16.gmra.mxu0 %v1348
    %v1515 = vpop.f32.mrf.mxu0
    %v1516 = vadd.f32 0.0, %v1515
    %v1517 = vpop.f32.mrf.mxu0
    %v1518 = vpop.f32.mrf.mxu0
    %v1519 = vadd.f32 0.0, %v1518
    %v1520 = vpop.f32.mrf.mxu0
    %1521 = vmatprep.mubr.bf16.mxu0 0
    %1522 = vmatmul.mubr.bf16.gmra.mxu0 %v1349
    %v1523 = vpop.f32.mrf.mxu0
    %v1524 = vadd.f32 0.0, %v1523
    %v1525 = vpop.f32.mrf.mxu0
    %v1526 = vpop.f32.mrf.mxu0
    %v1527 = vadd.f32 0.0, %v1526
    %v1528 = vpop.f32.mrf.mxu0
    %1529 = vmatprep.mubr.bf16.mxu0 0
    %1530 = vmatmul.mubr.bf16.gmra.mxu0 %v1350
    %v1531 = vpop.f32.mrf.mxu0
    %v1532 = vadd.f32 0.0, %v1531
    %v1533 = vpop.f32.mrf.mxu0
    %v1534 = vpop.f32.mrf.mxu0
    %v1535 = vadd.f32 0.0, %v1534
    %v1536 = vpop.f32.mrf.mxu0
    %1537 = vmatprep.mubr.bf16.mxu0 0
    %1538 = vmatmul.mubr.bf16.gmra.mxu0 %v1351
    %v1539 = vpop.f32.mrf.mxu0
    %v1540 = vadd.f32 0.0, %v1539
    %v1541 = vpop.f32.mrf.mxu0
    %v1542 = vpop.f32.mrf.mxu0
    %v1543 = vadd.f32 0.0, %v1542
    %v1544 = vpop.f32.mrf.mxu0
    %1545 = vmatprep.mubr.bf16.mxu0 0
    %1546 = vmatmul.mubr.bf16.gmra.mxu0 %v1352
    %v1547 = vpop.f32.mrf.mxu0
    %v1548 = vadd.f32 0.0, %v1547
    %v1549 = vpop.f32.mrf.mxu0
    %v1550 = vpop.f32.mrf.mxu0
    %v1551 = vadd.f32 0.0, %v1550
    %v1552 = vpop.f32.mrf.mxu0
    %1553 = vmatprep.mubr.bf16.mxu0 0
    %1554 = vmatmul.mubr.bf16.gmra.mxu0 %v1353
    %v1555 = vpop.f32.mrf.mxu0
    %v1556 = vadd.f32 0.0, %v1555
    %v1557 = vpop.f32.mrf.mxu0
    %v1558 = vpop.f32.mrf.mxu0
    %v1559 = vadd.f32 0.0, %v1558
    %v1560 = vpop.f32.mrf.mxu0
    %1561 = vmatprep.mubr.bf16.mxu0 0
    %1562 = vmatmul.mubr.bf16.gmra.mxu0 %v1354
    %v1563 = vpop.f32.mrf.mxu0
    %v1564 = vadd.f32 0.0, %v1563
    %v1565 = vpop.f32.mrf.mxu0
    %v1566 = vpop.f32.mrf.mxu0
    %v1567 = vadd.f32 0.0, %v1566
    %v1568 = vpop.f32.mrf.mxu0
    %1569 = vmatprep.mubr.bf16.mxu0 0
    %1570 = vmatmul.mubr.bf16.gmra.mxu0 %v1355
    %v1571 = vpop.f32.mrf.mxu0
    %v1572 = vadd.f32 0.0, %v1571
    %v1573 = vpop.f32.mrf.mxu0
    %v1574 = vpop.f32.mrf.mxu0
    %v1575 = vadd.f32 0.0, %v1574
    %v1576 = vpop.f32.mrf.mxu0
    %1577 = vmatprep.mubr.bf16.mxu0 0
    %1578 = vmatmul.mubr.bf16.gmra.mxu0 %v1356
    %v1579 = vpop.f32.mrf.mxu0
    %v1580 = vadd.f32 0.0, %v1579
    %v1581 = vpop.f32.mrf.mxu0
    %v1582 = vpop.f32.mrf.mxu0
    %v1583 = vadd.f32 0.0, %v1582
    %v1584 = vpop.f32.mrf.mxu0
    %1585 = vmatprep.mubr.bf16.mxu0 0
    %1586 = vmatmul.mubr.bf16.gmra.mxu0 %v1357
    %v1587 = vpop.f32.mrf.mxu0
    %v1588 = vadd.f32 0.0, %v1587
    %v1589 = vpop.f32.mrf.mxu0
    %v1590 = vpop.f32.mrf.mxu0
    %v1591 = vadd.f32 0.0, %v1590
    %v1592 = vpop.f32.mrf.mxu0
    %1593 = vmatprep.mubr.bf16.mxu0 0
    %1594 = vmatmul.mubr.bf16.gmra.mxu0 %v1358
    %v1595 = vpop.f32.mrf.mxu0
    %v1596 = vadd.f32 0.0, %v1595
    %v1597 = vpop.f32.mrf.mxu0
    %v1598 = vpop.f32.mrf.mxu0
    %v1599 = vadd.f32 0.0, %v1598
    %v1600 = vpop.f32.mrf.mxu0
    %1601 = vmatprep.mubr.bf16.mxu0 0
    %1602 = vmatmul.mubr.bf16.gmra.mxu0 %v1359
    %v1603 = vpop.f32.mrf.mxu0
    %v1604 = vadd.f32 0.0, %v1603
    %v1605 = vpop.f32.mrf.mxu0
    %v1606 = vpop.f32.mrf.mxu0
    %v1607 = vadd.f32 0.0, %v1606
    %v1608 = vpop.f32.mrf.mxu0
    %1609 = vmatprep.mubr.bf16.mxu0 0
    %1610 = vmatmul.mubr.bf16.gmra.mxu0 %v1360
    %v1611 = vpop.f32.mrf.mxu0
    %v1612 = vadd.f32 0.0, %v1611
    %v1613 = vpop.f32.mrf.mxu0
    %v1614 = vpop.f32.mrf.mxu0
    %v1615 = vadd.f32 0.0, %v1614
    %v1616 = vpop.f32.mrf.mxu0
    %1617 = vmatprep.mubr.bf16.mxu0 0
    %1618 = vmatmul.mubr.bf16.gmra.mxu0 %v1361
    %v1619 = vpop.f32.mrf.mxu0
    %v1620 = vadd.f32 0.0, %v1619
    %v1621 = vpop.f32.mrf.mxu0
    %v1622 = vpop.f32.mrf.mxu0
    %v1623 = vadd.f32 0.0, %v1622
    %v1624 = vpop.f32.mrf.mxu0
    %1625 = vmatprep.mubr.bf16.mxu0 0
    %1626 = vmatmul.mubr.bf16.gmra.mxu0 %v1362
    %v1627 = vpop.f32.mrf.mxu0
    %v1628 = vadd.f32 0.0, %v1627
    %v1629 = vpop.f32.mrf.mxu0
    %v1630 = vpop.f32.mrf.mxu0
    %v1631 = vadd.f32 0.0, %v1630
    %v1632 = vpop.f32.mrf.mxu0
    %1633 = vmatprep.mubr.bf16.mxu0 0
    %1634 = vmatmul.mubr.bf16.gmra.mxu0 %v1363
    %v1635 = vpop.f32.mrf.mxu0
    %v1636 = vadd.f32 0.0, %v1635
    %v1637 = vpop.f32.mrf.mxu0
    %v1638 = vpop.f32.mrf.mxu0
    %v1639 = vadd.f32 0.0, %v1638
    %v1640 = vpop.f32.mrf.mxu0
    %1641 = vmatprep.mubr.bf16.mxu0 0
    %1642 = vmatmul.mubr.bf16.gmra.mxu0 %v1364
    %v1643 = vpop.f32.mrf.mxu0
    %v1644 = vadd.f32 0.0, %v1643
    %v1645 = vpop.f32.mrf.mxu0
    %v1646 = vpop.f32.mrf.mxu0
    %v1647 = vadd.f32 0.0, %v1646
    %v1648 = vpop.f32.mrf.mxu0
    %1649 = vmatprep.mubr.bf16.mxu0 0
    %1650 = vmatmul.mubr.bf16.gmra.mxu0 %v1365
    %v1651 = vpop.f32.mrf.mxu0
    %v1652 = vadd.f32 0.0, %v1651
    %v1653 = vpop.f32.mrf.mxu0
    %v1654 = vpop.f32.mrf.mxu0
    %v1655 = vadd.f32 0.0, %v1654
    %v1656 = vpop.f32.mrf.mxu0
    %1657 = vmatprep.mubr.bf16.mxu0 0
    %1658 = vmatmul.mubr.bf16.gmra.mxu0 %v1366
    %v1659 = vpop.f32.mrf.mxu0
    %v1660 = vadd.f32 0.0, %v1659
    %v1661 = vpop.f32.mrf.mxu0
    %v1662 = vpop.f32.mrf.mxu0
    %v1663 = vadd.f32 0.0, %v1662
    %v1664 = vpop.f32.mrf.mxu0
    %1665 = vmatprep.mubr.bf16.mxu0 0
    %1666 = vmatmul.mubr.bf16.gmra.mxu0 %v1367
    %v1667 = vpop.f32.mrf.mxu0
    %v1668 = vadd.f32 0.0, %v1667
    %v1669 = vpop.f32.mrf.mxu0
    %v1670 = vpop.f32.mrf.mxu0
    %v1671 = vadd.f32 0.0, %v1670
    %v1672 = vpop.f32.mrf.mxu0
    %1673 = vmatprep.mubr.bf16.mxu0 0
    %1674 = vmatmul.mubr.bf16.gmra.mxu0 %v1368
    %v1675 = vpop.f32.mrf.mxu0
    %v1676 = vadd.f32 0.0, %v1675
    %v1677 = vpop.f32.mrf.mxu0
    %v1678 = vpop.f32.mrf.mxu0
    %v1679 = vadd.f32 0.0, %v1678
    %v1680 = vpop.f32.mrf.mxu0
    %1681 = vmatprep.mubr.bf16.mxu0 0
    %1682 = vmatmul.mubr.bf16.gmra.mxu0 %v1369
    %v1683 = vpop.f32.mrf.mxu0
    %v1684 = vadd.f32 0.0, %v1683
    %v1685 = vpop.f32.mrf.mxu0
    %v1686 = vpop.f32.mrf.mxu0
    %v1687 = vadd.f32 0.0, %v1686
    %v1688 = vpop.f32.mrf.mxu0
    %1689 = vmatprep.mubr.bf16.mxu0 0
    %1690 = vmatmul.mubr.bf16.gmra.mxu0 %v1370
    %v1691 = vpop.f32.mrf.mxu0
    %v1692 = vadd.f32 0.0, %v1691
    %v1693 = vpop.f32.mrf.mxu0
    %v1694 = vpop.f32.mrf.mxu0
    %v1695 = vadd.f32 0.0, %v1694
    %v1696 = vpop.f32.mrf.mxu0
    %1697 = vmatprep.mubr.bf16.mxu0 0
    %1698 = vmatmul.mubr.bf16.gmra.mxu0 %v1371
    %v1699 = vpop.f32.mrf.mxu0
    %v1700 = vadd.f32 0.0, %v1699
    %v1701 = vpop.f32.mrf.mxu0
    %v1702 = vpop.f32.mrf.mxu0
    %v1703 = vadd.f32 0.0, %v1702
    %v1704 = vpop.f32.mrf.mxu0
    %1705 = vmatprep.mubr.bf16.mxu0 0
    %1706 = vmatmul.mubr.bf16.gmra.mxu0 %v1372
    %v1707 = vpop.f32.mrf.mxu0
    %v1708 = vadd.f32 0.0, %v1707
    %v1709 = vpop.f32.mrf.mxu0
    %v1710 = vpop.f32.mrf.mxu0
    %v1711 = vadd.f32 0.0, %v1710
    %v1712 = vpop.f32.mrf.mxu0
    %1713 = vmatprep.mubr.bf16.mxu0 0
    %1714 = vmatmul.mubr.bf16.gmra.mxu0 %v1373
    %v1715 = vpop.f32.mrf.mxu0
    %v1716 = vadd.f32 0.0, %v1715
    %v1717 = vpop.f32.mrf.mxu0
    %v1718 = vpop.f32.mrf.mxu0
    %v1719 = vadd.f32 0.0, %v1718
    %v1720 = vpop.f32.mrf.mxu0
    %1721 = vmatprep.mubr.bf16.mxu0 0
    %1722 = vmatmul.mubr.bf16.gmra.mxu0 %v1374
    %v1723 = vpop.f32.mrf.mxu0
    %v1724 = vadd.f32 0.0, %v1723
    %v1725 = vpop.f32.mrf.mxu0
    %v1726 = vpop.f32.mrf.mxu0
    %v1727 = vadd.f32 0.0, %v1726
    %v1728 = vpop.f32.mrf.mxu0
    %1729 = vmatprep.mubr.bf16.mxu0 0
    %1730 = vmatmul.mubr.bf16.gmra.mxu0 %v1375
    %v1731 = vpop.f32.mrf.mxu0
    %v1732 = vadd.f32 0.0, %v1731
    %v1733 = vpop.f32.mrf.mxu0
    %v1734 = vpop.f32.mrf.mxu0
    %v1735 = vadd.f32 0.0, %v1734
    %v1736 = vpop.f32.mrf.mxu0
    %1737 = vmatprep.mubr.bf16.mxu0 0
    %1738 = vmatmul.mubr.bf16.gmra.mxu0 %v1376
    %v1739 = vpop.f32.mrf.mxu0
    %v1740 = vadd.f32 0.0, %v1739
    %v1741 = vpop.f32.mrf.mxu0
    %v1742 = vpop.f32.mrf.mxu0
    %v1743 = vadd.f32 0.0, %v1742
    %v1744 = vpop.f32.mrf.mxu0
    %1745 = vdwg.mxu0
    %v1746 = vld [vmem:[%s4] sm:$0x1]
    %v1748 = vlaneseq
    %v1749 = vshrl.u32 %v1748, 7
    %v1750 = vsub.s32 0, %v1749
    %v1751 = vrot.slane %v1746, %v1750
    %v1769 = vunpack.c.l.b16 %v1377
    %v1770 = vunpack.c.l.b16 %v1378
    %v1771 = vunpack.c.l.b16 %v1379
    %v1772 = vunpack.c.l.b16 %v1380
    %v1773 = vunpack.c.l.b16 %v1381
    %v1774 = vunpack.c.l.b16 %v1382
    %v1775 = vunpack.c.l.b16 %v1383
    %v1776 = vunpack.c.l.b16 %v1384
    %v1777 = vunpack.c.l.b16 %v1385
    %v1778 = vunpack.c.l.b16 %v1386
    %v1779 = vunpack.c.l.b16 %v1387
    %v1780 = vunpack.c.l.b16 %v1388
    %v1781 = vunpack.c.l.b16 %v1389
    %v1782 = vunpack.c.l.b16 %v1390
    %v1783 = vunpack.c.l.b16 %v1391
    %v1784 = vunpack.c.l.b16 %v1392
    %v1785 = vpack.c.b16 %v1770, %v1769
    %v1786 = vpack.c.b16 %v1772, %v1771
    %v1787 = vpack.c.b16 %v1774, %v1773
    %v1788 = vpack.c.b16 %v1776, %v1775
    %v1789 = vpack.c.b16 %v1778, %v1777
    %v1790 = vpack.c.b16 %v1780, %v1779
    %v1791 = vpack.c.b16 %v1782, %v1781
    %v1792 = vpack.c.b16 %v1784, %v1783
    %1801 = vmatprep.subr.bf16.mxu0 0
    %1802 = vmatpush1.bf16.msra.mxu0 %v1792
    %1803 = vmatprep.subr.bf16.mxu0 0
    %1804 = vmatpush1.bf16.msra.mxu0 %v1791
    %1805 = vmatprep.subr.bf16.mxu0 0
    %1806 = vmatpush1.bf16.msra.mxu0 %v1790
    %1807 = vmatprep.subr.bf16.mxu0 0
    %1808 = vmatpush1.bf16.msra.mxu0 %v1789
    %1809 = vmatprep.subr.bf16.mxu0 0
    %1810 = vmatpush1.bf16.msra.mxu0 %v1788
    %1811 = vmatprep.subr.bf16.mxu0 0
    %1812 = vmatpush1.bf16.msra.mxu0 %v1787
    %1813 = vmatprep.subr.bf16.mxu0 0
    %1814 = vmatpush1.bf16.msra.mxu0 %v1786
    %1815 = vmatprep.subr.bf16.mxu0 0
    %1816 = vmatpush1.bf16.msra.mxu0 %v1785
    %1817 = vmatprep.subr.bf16.mxu0 0
    %1818 = vmatpush2.bf16.msra.mxu0 0
    %1819 = vmatprep.subr.bf16.mxu0 0
    %1820 = vmatpush2.bf16.msra.mxu0 0
    %1821 = vmatprep.subr.bf16.mxu0 0
    %1822 = vmatpush2.bf16.msra.mxu0 0
    %1823 = vmatprep.subr.bf16.mxu0 0
    %1824 = vmatpush2.bf16.msra.mxu0 0
    %1825 = vmatprep.subr.bf16.mxu0 0
    %1826 = vmatpush2.bf16.msra.mxu0 0
    %1827 = vmatprep.subr.bf16.mxu0 0
    %1828 = vmatpush2.bf16.msra.mxu0 0
    %1829 = vmatprep.subr.bf16.mxu0 0
    %1830 = vmatpush2.bf16.msra.mxu0 0
    %1831 = vmatprep.subr.bf16.mxu0 0
    %1832 = vmatpush2.bf16.msra.mxu0 0
    %1833 = vmatprep.mubr.bf16.mxu0 0
    %1834 = vmatmul.mubr.bf16.gmra.mxu0 %v1329
    %v1835 = vpop.f32.mrf.mxu0
    %v1836 = vadd.f32 %v1751, %v1835
    %v1837 = vpop.f32.mrf.mxu0
    %v1838 = vpop.f32.mrf.mxu0
    %v1839 = vadd.f32 %v1751, %v1838
    %v1840 = vpop.f32.mrf.mxu0
    %1841 = vmatprep.mubr.bf16.mxu0 0
    %1842 = vmatmul.mubr.bf16.gmra.mxu0 %v1330
    %v1843 = vpop.f32.mrf.mxu0
    %v1844 = vadd.f32 %v1751, %v1843
    %v1845 = vpop.f32.mrf.mxu0
    %v1846 = vpop.f32.mrf.mxu0
    %v1847 = vadd.f32 %v1751, %v1846
    %v1848 = vpop.f32.mrf.mxu0
    %1849 = vmatprep.mubr.bf16.mxu0 0
    %1850 = vmatmul.mubr.bf16.gmra.mxu0 %v1331
    %v1851 = vpop.f32.mrf.mxu0
    %v1852 = vadd.f32 %v1751, %v1851
    %v1853 = vpop.f32.mrf.mxu0
    %v1854 = vpop.f32.mrf.mxu0
    %v1855 = vadd.f32 %v1751, %v1854
    %v1856 = vpop.f32.mrf.mxu0
    %1857 = vmatprep.mubr.bf16.mxu0 0
    %1858 = vmatmul.mubr.bf16.gmra.mxu0 %v1332
    %v1859 = vpop.f32.mrf.mxu0
    %v1860 = vadd.f32 %v1751, %v1859
    %v1861 = vpop.f32.mrf.mxu0
    %v1862 = vpop.f32.mrf.mxu0
    %v1863 = vadd.f32 %v1751, %v1862
    %v1864 = vpop.f32.mrf.mxu0
    %1865 = vmatprep.mubr.bf16.mxu0 0
    %1866 = vmatmul.mubr.bf16.gmra.mxu0 %v1333
    %v1867 = vpop.f32.mrf.mxu0
    %v1868 = vadd.f32 %v1751, %v1867
    %v1869 = vpop.f32.mrf.mxu0
    %v1870 = vpop.f32.mrf.mxu0
    %v1871 = vadd.f32 %v1751, %v1870
    %v1872 = vpop.f32.mrf.mxu0
    %1873 = vmatprep.mubr.bf16.mxu0 0
    %1874 = vmatmul.mubr.bf16.gmra.mxu0 %v1334
    %v1875 = vpop.f32.mrf.mxu0
    %v1876 = vadd.f32 %v1751, %v1875
    %v1877 = vpop.f32.mrf.mxu0
    %v1878 = vpop.f32.mrf.mxu0
    %v1879 = vadd.f32 %v1751, %v1878
    %v1880 = vpop.f32.mrf.mxu0
    %1881 = vmatprep.mubr.bf16.mxu0 0
    %1882 = vmatmul.mubr.bf16.gmra.mxu0 %v1335
    %v1883 = vpop.f32.mrf.mxu0
    %v1884 = vadd.f32 %v1751, %v1883
    %v1885 = vpop.f32.mrf.mxu0
    %v1886 = vpop.f32.mrf.mxu0
    %v1887 = vadd.f32 %v1751, %v1886
    %v1888 = vpop.f32.mrf.mxu0
    %1889 = vmatprep.mubr.bf16.mxu0 0
    %1890 = vmatmul.mubr.bf16.gmra.mxu0 %v1336
    %v1891 = vpop.f32.mrf.mxu0
    %v1892 = vadd.f32 %v1751, %v1891
    %v1893 = vpop.f32.mrf.mxu0
    %v1894 = vpop.f32.mrf.mxu0
    %v1895 = vadd.f32 %v1751, %v1894
    %v1896 = vpop.f32.mrf.mxu0
    %1897 = vmatprep.mubr.bf16.mxu0 0
    %1898 = vmatmul.mubr.bf16.gmra.mxu0 %v1337
    %v1899 = vpop.f32.mrf.mxu0
    %v1900 = vadd.f32 %v1751, %v1899
    %v1901 = vpop.f32.mrf.mxu0
    %v1902 = vpop.f32.mrf.mxu0
    %v1903 = vadd.f32 %v1751, %v1902
    %v1904 = vpop.f32.mrf.mxu0
    %1905 = vmatprep.mubr.bf16.mxu0 0
    %1906 = vmatmul.mubr.bf16.gmra.mxu0 %v1338
    %v1907 = vpop.f32.mrf.mxu0
    %v1908 = vadd.f32 %v1751, %v1907
    %v1909 = vpop.f32.mrf.mxu0
    %v1910 = vpop.f32.mrf.mxu0
    %v1911 = vadd.f32 %v1751, %v1910
    %v1912 = vpop.f32.mrf.mxu0
    %1913 = vmatprep.mubr.bf16.mxu0 0
    %1914 = vmatmul.mubr.bf16.gmra.mxu0 %v1339
    %v1915 = vpop.f32.mrf.mxu0
    %v1916 = vadd.f32 %v1751, %v1915
    %v1917 = vpop.f32.mrf.mxu0
    %v1918 = vpop.f32.mrf.mxu0
    %v1919 = vadd.f32 %v1751, %v1918
    %v1920 = vpop.f32.mrf.mxu0
    %1921 = vmatprep.mubr.bf16.mxu0 0
    %1922 = vmatmul.mubr.bf16.gmra.mxu0 %v1340
    %v1923 = vpop.f32.mrf.mxu0
    %v1924 = vadd.f32 %v1751, %v1923
    %v1925 = vpop.f32.mrf.mxu0
    %v1926 = vpop.f32.mrf.mxu0
    %v1927 = vadd.f32 %v1751, %v1926
    %v1928 = vpop.f32.mrf.mxu0
    %1929 = vmatprep.mubr.bf16.mxu0 0
    %1930 = vmatmul.mubr.bf16.gmra.mxu0 %v1341
    %v1931 = vpop.f32.mrf.mxu0
    %v1932 = vadd.f32 %v1751, %v1931
    %v1933 = vpop.f32.mrf.mxu0
    %v1934 = vpop.f32.mrf.mxu0
    %v1935 = vadd.f32 %v1751, %v1934
    %v1936 = vpop.f32.mrf.mxu0
    %1937 = vmatprep.mubr.bf16.mxu0 0
    %1938 = vmatmul.mubr.bf16.gmra.mxu0 %v1342
    %v1939 = vpop.f32.mrf.mxu0
    %v1940 = vadd.f32 %v1751, %v1939
    %v1941 = vpop.f32.mrf.mxu0
    %v1942 = vpop.f32.mrf.mxu0
    %v1943 = vadd.f32 %v1751, %v1942
    %v1944 = vpop.f32.mrf.mxu0
    %1945 = vmatprep.mubr.bf16.mxu0 0
    %1946 = vmatmul.mubr.bf16.gmra.mxu0 %v1343
    %v1947 = vpop.f32.mrf.mxu0
    %v1948 = vadd.f32 %v1751, %v1947
    %v1949 = vpop.f32.mrf.mxu0
    %v1950 = vpop.f32.mrf.mxu0
    %v1951 = vadd.f32 %v1751, %v1950
    %v1952 = vpop.f32.mrf.mxu0
    %1953 = vmatprep.mubr.bf16.mxu0 0
    %1954 = vmatmul.mubr.bf16.gmra.mxu0 %v1344
    %v1955 = vpop.f32.mrf.mxu0
    %v1956 = vadd.f32 %v1751, %v1955
    %v1957 = vpop.f32.mrf.mxu0
    %v1958 = vpop.f32.mrf.mxu0
    %v1959 = vadd.f32 %v1751, %v1958
    %v1960 = vpop.f32.mrf.mxu0
    %1961 = vdwg.mxu0
    %v1962 = vadd.f32 %v1836, %v1492
    %v1963 = vadd.f32 %v1839, %v1495
    %v1964 = vadd.f32 %v1844, %v1500
    %v1965 = vadd.f32 %v1847, %v1503
    %v1966 = vadd.f32 %v1852, %v1508
    %v1967 = vadd.f32 %v1855, %v1511
    %v1968 = vadd.f32 %v1860, %v1516
    %v1969 = vadd.f32 %v1863, %v1519
    %v1970 = vadd.f32 %v1868, %v1524
    %v1971 = vadd.f32 %v1871, %v1527
    %v1972 = vadd.f32 %v1876, %v1532
    %v1973 = vadd.f32 %v1879, %v1535
    %v1974 = vadd.f32 %v1884, %v1540
    %v1975 = vadd.f32 %v1887, %v1543
    %v1976 = vadd.f32 %v1892, %v1548
    %v1977 = vadd.f32 %v1895, %v1551
    %v1978 = vadd.f32 %v1900, %v1556
    %v1979 = vadd.f32 %v1903, %v1559
    %v1980 = vadd.f32 %v1908, %v1564
    %v1981 = vadd.f32 %v1911, %v1567
    %v1982 = vadd.f32 %v1916, %v1572
    %v1983 = vadd.f32 %v1919, %v1575
    %v1984 = vadd.f32 %v1924, %v1580
    %v1985 = vadd.f32 %v1927, %v1583
    %v1986 = vadd.f32 %v1932, %v1588
    %v1987 = vadd.f32 %v1935, %v1591
    %v1988 = vadd.f32 %v1940, %v1596
    %v1989 = vadd.f32 %v1943, %v1599
    %v1990 = vadd.f32 %v1948, %v1604
    %v1991 = vadd.f32 %v1951, %v1607
    %v1992 = vadd.f32 %v1956, %v1612
    %v1993 = vadd.f32 %v1959, %v1615
    %v1994 = vmax.f32 %v1962, 0.0
    %v1995 = vmax.f32 %v1963, 0.0
    %v1996 = vmax.f32 %v1964, 0.0
    %v1997 = vmax.f32 %v1965, 0.0
    %v1998 = vmax.f32 %v1966, 0.0
    %v1999 = vmax.f32 %v1967, 0.0
    %v2000 = vmax.f32 %v1968, 0.0
    %v2001 = vmax.f32 %v1969, 0.0
    %v2002 = vmax.f32 %v1970, 0.0
    %v2003 = vmax.f32 %v1971, 0.0
    %v2004 = vmax.f32 %v1972, 0.0
    %v2005 = vmax.f32 %v1973, 0.0
    %v2006 = vmax.f32 %v1974, 0.0
    %v2007 = vmax.f32 %v1975, 0.0
    %v2008 = vmax.f32 %v1976, 0.0
    %v2009 = vmax.f32 %v1977, 0.0
    %v2010 = vmax.f32 %v1978, 0.0
    %v2011 = vmax.f32 %v1979, 0.0
    %v2012 = vmax.f32 %v1980, 0.0
    %v2013 = vmax.f32 %v1981, 0.0
    %v2014 = vmax.f32 %v1982, 0.0
    %v2015 = vmax.f32 %v1983, 0.0
    %v2016 = vmax.f32 %v1984, 0.0
    %v2017 = vmax.f32 %v1985, 0.0
    %v2018 = vmax.f32 %v1986, 0.0
    %v2019 = vmax.f32 %v1987, 0.0
    %v2020 = vmax.f32 %v1988, 0.0
    %v2021 = vmax.f32 %v1989, 0.0
    %v2022 = vmax.f32 %v1990, 0.0
    %v2023 = vmax.f32 %v1991, 0.0
    %v2024 = vmax.f32 %v1992, 0.0
    %v2025 = vmax.f32 %v1993, 0.0
    %v2026 = vadd.f32 %v1836, %v1620
    %v2027 = vadd.f32 %v1839, %v1623
    %v2028 = vadd.f32 %v1844, %v1628
    %v2029 = vadd.f32 %v1847, %v1631
    %v2030 = vadd.f32 %v1852, %v1636
    %v2031 = vadd.f32 %v1855, %v1639
    %v2032 = vadd.f32 %v1860, %v1644
    %v2033 = vadd.f32 %v1863, %v1647
    %v2034 = vadd.f32 %v1868, %v1652
    %v2035 = vadd.f32 %v1871, %v1655
    %v2036 = vadd.f32 %v1876, %v1660
    %v2037 = vadd.f32 %v1879, %v1663
    %v2038 = vadd.f32 %v1884, %v1668
    %v2039 = vadd.f32 %v1887, %v1671
    %v2040 = vadd.f32 %v1892, %v1676
    %v2041 = vadd.f32 %v1895, %v1679
    %v2042 = vadd.f32 %v1900, %v1684
    %v2043 = vadd.f32 %v1903, %v1687
    %v2044 = vadd.f32 %v1908, %v1692
    %v2045 = vadd.f32 %v1911, %v1695
    %v2046 = vadd.f32 %v1916, %v1700
    %v2047 = vadd.f32 %v1919, %v1703
    %v2048 = vadd.f32 %v1924, %v1708
    %v2049 = vadd.f32 %v1927, %v1711
    %v2050 = vadd.f32 %v1932, %v1716
    %v2051 = vadd.f32 %v1935, %v1719
    %v2052 = vadd.f32 %v1940, %v1724
    %v2053 = vadd.f32 %v1943, %v1727
    %v2054 = vadd.f32 %v1948, %v1732
    %v2055 = vadd.f32 %v1951, %v1735
    %v2056 = vadd.f32 %v1956, %v1740
    %v2057 = vadd.f32 %v1959, %v1743
    %v2058 = vmax.f32 %v2026, 0.0
    %v2059 = vmax.f32 %v2027, 0.0
    %v2060 = vmax.f32 %v2028, 0.0
    %v2061 = vmax.f32 %v2029, 0.0
    %v2062 = vmax.f32 %v2030, 0.0
    %v2063 = vmax.f32 %v2031, 0.0
    %v2064 = vmax.f32 %v2032, 0.0
    %v2065 = vmax.f32 %v2033, 0.0
    %v2066 = vmax.f32 %v2034, 0.0
    %v2067 = vmax.f32 %v2035, 0.0
    %v2068 = vmax.f32 %v2036, 0.0
    %v2069 = vmax.f32 %v2037, 0.0
    %v2070 = vmax.f32 %v2038, 0.0
    %v2071 = vmax.f32 %v2039, 0.0
    %v2072 = vmax.f32 %v2040, 0.0
    %v2073 = vmax.f32 %v2041, 0.0
    %v2074 = vmax.f32 %v2042, 0.0
    %v2075 = vmax.f32 %v2043, 0.0
    %v2076 = vmax.f32 %v2044, 0.0
    %v2077 = vmax.f32 %v2045, 0.0
    %v2078 = vmax.f32 %v2046, 0.0
    %v2079 = vmax.f32 %v2047, 0.0
    %v2080 = vmax.f32 %v2048, 0.0
    %v2081 = vmax.f32 %v2049, 0.0
    %v2082 = vmax.f32 %v2050, 0.0
    %v2083 = vmax.f32 %v2051, 0.0
    %v2084 = vmax.f32 %v2052, 0.0
    %v2085 = vmax.f32 %v2053, 0.0
    %v2086 = vmax.f32 %v2054, 0.0
    %v2087 = vmax.f32 %v2055, 0.0
    %v2088 = vmax.f32 %v2056, 0.0
    %v2089 = vmax.f32 %v2057, 0.0
    %v2090 = vld [vmem:[%s5] sm:$0x1]
    %s2091 = sld [smem:[#allocation2]]
    %v2093 = vlaneseq
    %v2094 = vshrl.u32 %v2093, 7
    %v2095 = vsub.s32 0, %v2094
    %v2096 = vrot.slane %v2090, %v2095
    %v2098 = vmul.f32 %v1994, %v2096
    %v2099 = vmul.f32 %v1995, %v2096
    %v2100 = vmul.f32 %v1996, %v2096
    %v2101 = vmul.f32 %v1997, %v2096
    %v2102 = vmul.f32 %v1998, %v2096
    %v2103 = vmul.f32 %v1999, %v2096
    %v2104 = vmul.f32 %v2000, %v2096
    %v2105 = vmul.f32 %v2001, %v2096
    %v2106 = vmul.f32 %v2002, %v2096
    %v2107 = vmul.f32 %v2003, %v2096
    %v2108 = vmul.f32 %v2004, %v2096
    %v2109 = vmul.f32 %v2005, %v2096
    %v2110 = vmul.f32 %v2006, %v2096
    %v2111 = vmul.f32 %v2007, %v2096
    %v2112 = vmul.f32 %v2008, %v2096
    %v2113 = vmul.f32 %v2009, %v2096
    %v2114 = vmul.f32 %v2010, %v2096
    %v2115 = vmul.f32 %v2011, %v2096
    %v2116 = vmul.f32 %v2012, %v2096
    %v2117 = vmul.f32 %v2013, %v2096
    %v2118 = vmul.f32 %v2014, %v2096
    %v2119 = vmul.f32 %v2015, %v2096
    %v2120 = vmul.f32 %v2016, %v2096
    %v2121 = vmul.f32 %v2017, %v2096
    %v2122 = vmul.f32 %v2018, %v2096
    %v2123 = vmul.f32 %v2019, %v2096
    %v2124 = vmul.f32 %v2020, %v2096
    %v2125 = vmul.f32 %v2021, %v2096
    %v2126 = vmul.f32 %v2022, %v2096
    %v2127 = vmul.f32 %v2023, %v2096
    %v2128 = vmul.f32 %v2024, %v2096
    %v2129 = vmul.f32 %v2025, %v2096
    %2130 = vadd.xlane.f32.xlu0 %v2098
    %v2131 = vpop.xlane.xlu0 %2130
    %2132 = vadd.xlane.f32.xlu0 %v2099
    %v2133 = vpop.xlane.xlu0 %2132
    %2134 = vadd.xlane.f32.xlu0 %v2100
    %v2135 = vpop.xlane.xlu0 %2134
    %2136 = vadd.xlane.f32.xlu0 %v2101
    %v2137 = vpop.xlane.xlu0 %2136
    %2138 = vadd.xlane.f32.xlu0 %v2102
    %v2139 = vpop.xlane.xlu0 %2138
    %2140 = vadd.xlane.f32.xlu0 %v2103
    %v2141 = vpop.xlane.xlu0 %2140
    %2142 = vadd.xlane.f32.xlu0 %v2104
    %v2143 = vpop.xlane.xlu0 %2142
    %2144 = vadd.xlane.f32.xlu0 %v2105
    %v2145 = vpop.xlane.xlu0 %2144
    %2146 = vadd.xlane.f32.xlu0 %v2106
    %v2147 = vpop.xlane.xlu0 %2146
    %2148 = vadd.xlane.f32.xlu0 %v2107
    %v2149 = vpop.xlane.xlu0 %2148
    %2150 = vadd.xlane.f32.xlu0 %v2108
    %v2151 = vpop.xlane.xlu0 %2150
    %2152 = vadd.xlane.f32.xlu0 %v2109
    %v2153 = vpop.xlane.xlu0 %2152
    %2154 = vadd.xlane.f32.xlu0 %v2110
    %v2155 = vpop.xlane.xlu0 %2154
    %2156 = vadd.xlane.f32.xlu0 %v2111
    %v2157 = vpop.xlane.xlu0 %2156
    %2158 = vadd.xlane.f32.xlu0 %v2112
    %v2159 = vpop.xlane.xlu0 %2158
    %2160 = vadd.xlane.f32.xlu0 %v2113
    %v2161 = vpop.xlane.xlu0 %2160
    %2162 = vadd.xlane.f32.xlu0 %v2114
    %v2163 = vpop.xlane.xlu0 %2162
    %2164 = vadd.xlane.f32.xlu0 %v2115
    %v2165 = vpop.xlane.xlu0 %2164
    %2166 = vadd.xlane.f32.xlu0 %v2116
    %v2167 = vpop.xlane.xlu0 %2166
    %2168 = vadd.xlane.f32.xlu0 %v2117
    %v2169 = vpop.xlane.xlu0 %2168
    %2170 = vadd.xlane.f32.xlu0 %v2118
    %v2171 = vpop.xlane.xlu0 %2170
    %2172 = vadd.xlane.f32.xlu0 %v2119
    %v2173 = vpop.xlane.xlu0 %2172
    %2174 = vadd.xlane.f32.xlu0 %v2120
    %v2175 = vpop.xlane.xlu0 %2174
    %2176 = vadd.xlane.f32.xlu0 %v2121
    %v2177 = vpop.xlane.xlu0 %2176
    %2178 = vadd.xlane.f32.xlu0 %v2122
    %v2179 = vpop.xlane.xlu0 %2178
    %2180 = vadd.xlane.f32.xlu0 %v2123
    %v2181 = vpop.xlane.xlu0 %2180
    %2182 = vadd.xlane.f32.xlu0 %v2124
    %v2183 = vpop.xlane.xlu0 %2182
    %2184 = vadd.xlane.f32.xlu0 %v2125
    %v2185 = vpop.xlane.xlu0 %2184
    %2186 = vadd.xlane.f32.xlu0 %v2126
    %v2187 = vpop.xlane.xlu0 %2186
    %2188 = vadd.xlane.f32.xlu0 %v2127
    %v2189 = vpop.xlane.xlu0 %2188
    %2190 = vadd.xlane.f32.xlu0 %v2128
    %v2191 = vpop.xlane.xlu0 %2190
    %2192 = vadd.xlane.f32.xlu0 %v2129
    %v2193 = vpop.xlane.xlu0 %2192
    %v2194 = vstv %s2091
    %v2195 = vadd.f32 %v2131, %v2194
    %v2196 = vadd.f32 %v2133, %v2194
    %v2197 = vadd.f32 %v2135, %v2194
    %v2198 = vadd.f32 %v2137, %v2194
    %v2199 = vadd.f32 %v2139, %v2194
    %v2200 = vadd.f32 %v2141, %v2194
    %v2201 = vadd.f32 %v2143, %v2194
    %v2202 = vadd.f32 %v2145, %v2194
    %v2203 = vadd.f32 %v2147, %v2194
    %v2204 = vadd.f32 %v2149, %v2194
    %v2205 = vadd.f32 %v2151, %v2194
    %v2206 = vadd.f32 %v2153, %v2194
    %v2207 = vadd.f32 %v2155, %v2194
    %v2208 = vadd.f32 %v2157, %v2194
    %v2209 = vadd.f32 %v2159, %v2194
    %v2210 = vadd.f32 %v2161, %v2194
    %v2211 = vadd.f32 %v2163, %v2194
    %v2212 = vadd.f32 %v2165, %v2194
    %v2213 = vadd.f32 %v2167, %v2194
    %v2214 = vadd.f32 %v2169, %v2194
    %v2215 = vadd.f32 %v2171, %v2194
    %v2216 = vadd.f32 %v2173, %v2194
    %v2217 = vadd.f32 %v2175, %v2194
    %v2218 = vadd.f32 %v2177, %v2194
    %v2219 = vadd.f32 %v2179, %v2194
    %v2220 = vadd.f32 %v2181, %v2194
    %v2221 = vadd.f32 %v2183, %v2194
    %v2222 = vadd.f32 %v2185, %v2194
    %v2223 = vadd.f32 %v2187, %v2194
    %v2224 = vadd.f32 %v2189, %v2194
    %v2225 = vadd.f32 %v2191, %v2194
    %v2226 = vadd.f32 %v2193, %v2194
    %v2227 = vmul.f32 %v2058, %v2096
    %v2228 = vmul.f32 %v2059, %v2096
    %v2229 = vmul.f32 %v2060, %v2096
    %v2230 = vmul.f32 %v2061, %v2096
    %v2231 = vmul.f32 %v2062, %v2096
    %v2232 = vmul.f32 %v2063, %v2096
    %v2233 = vmul.f32 %v2064, %v2096
    %v2234 = vmul.f32 %v2065, %v2096
    %v2235 = vmul.f32 %v2066, %v2096
    %v2236 = vmul.f32 %v2067, %v2096
    %v2237 = vmul.f32 %v2068, %v2096
    %v2238 = vmul.f32 %v2069, %v2096
    %v2239 = vmul.f32 %v2070, %v2096
    %v2240 = vmul.f32 %v2071, %v2096
    %v2241 = vmul.f32 %v2072, %v2096
    %v2242 = vmul.f32 %v2073, %v2096
    %v2243 = vmul.f32 %v2074, %v2096
    %v2244 = vmul.f32 %v2075, %v2096
    %v2245 = vmul.f32 %v2076, %v2096
    %v2246 = vmul.f32 %v2077, %v2096
    %v2247 = vmul.f32 %v2078, %v2096
    %v2248 = vmul.f32 %v2079, %v2096
    %v2249 = vmul.f32 %v2080, %v2096
    %v2250 = vmul.f32 %v2081, %v2096
    %v2251 = vmul.f32 %v2082, %v2096
    %v2252 = vmul.f32 %v2083, %v2096
    %v2253 = vmul.f32 %v2084, %v2096
    %v2254 = vmul.f32 %v2085, %v2096
    %v2255 = vmul.f32 %v2086, %v2096
    %v2256 = vmul.f32 %v2087, %v2096
    %v2257 = vmul.f32 %v2088, %v2096
    %v2258 = vmul.f32 %v2089, %v2096
    %2259 = vadd.xlane.f32.xlu0 %v2227
    %v2260 = vpop.xlane.xlu0 %2259
    %2261 = vadd.xlane.f32.xlu0 %v2228
    %v2262 = vpop.xlane.xlu0 %2261
    %2263 = vadd.xlane.f32.xlu0 %v2229
    %v2264 = vpop.xlane.xlu0 %2263
    %2265 = vadd.xlane.f32.xlu0 %v2230
    %v2266 = vpop.xlane.xlu0 %2265
    %2267 = vadd.xlane.f32.xlu0 %v2231
    %v2268 = vpop.xlane.xlu0 %2267
    %2269 = vadd.xlane.f32.xlu0 %v2232
    %v2270 = vpop.xlane.xlu0 %2269
    %2271 = vadd.xlane.f32.xlu0 %v2233
    %v2272 = vpop.xlane.xlu0 %2271
    %2273 = vadd.xlane.f32.xlu0 %v2234
    %v2274 = vpop.xlane.xlu0 %2273
    %2275 = vadd.xlane.f32.xlu0 %v2235
    %v2276 = vpop.xlane.xlu0 %2275
    %2277 = vadd.xlane.f32.xlu0 %v2236
    %v2278 = vpop.xlane.xlu0 %2277
    %2279 = vadd.xlane.f32.xlu0 %v2237
    %v2280 = vpop.xlane.xlu0 %2279
    %2281 = vadd.xlane.f32.xlu0 %v2238
    %v2282 = vpop.xlane.xlu0 %2281
    %2283 = vadd.xlane.f32.xlu0 %v2239
    %v2284 = vpop.xlane.xlu0 %2283
    %2285 = vadd.xlane.f32.xlu0 %v2240
    %v2286 = vpop.xlane.xlu0 %2285
    %2287 = vadd.xlane.f32.xlu0 %v2241
    %v2288 = vpop.xlane.xlu0 %2287
    %2289 = vadd.xlane.f32.xlu0 %v2242
    %v2290 = vpop.xlane.xlu0 %2289
    %2291 = vadd.xlane.f32.xlu0 %v2243
    %v2292 = vpop.xlane.xlu0 %2291
    %2293 = vadd.xlane.f32.xlu0 %v2244
    %v2294 = vpop.xlane.xlu0 %2293
    %2295 = vadd.xlane.f32.xlu0 %v2245
    %v2296 = vpop.xlane.xlu0 %2295
    %2297 = vadd.xlane.f32.xlu0 %v2246
    %v2298 = vpop.xlane.xlu0 %2297
    %2299 = vadd.xlane.f32.xlu0 %v2247
    %v2300 = vpop.xlane.xlu0 %2299
    %2301 = vadd.xlane.f32.xlu0 %v2248
    %v2302 = vpop.xlane.xlu0 %2301
    %2303 = vadd.xlane.f32.xlu0 %v2249
    %v2304 = vpop.xlane.xlu0 %2303
    %2305 = vadd.xlane.f32.xlu0 %v2250
    %v2306 = vpop.xlane.xlu0 %2305
    %2307 = vadd.xlane.f32.xlu0 %v2251
    %v2308 = vpop.xlane.xlu0 %2307
    %2309 = vadd.xlane.f32.xlu0 %v2252
    %v2310 = vpop.xlane.xlu0 %2309
    %2311 = vadd.xlane.f32.xlu0 %v2253
    %v2312 = vpop.xlane.xlu0 %2311
    %2313 = vadd.xlane.f32.xlu0 %v2254
    %v2314 = vpop.xlane.xlu0 %2313
    %2315 = vadd.xlane.f32.xlu0 %v2255
    %v2316 = vpop.xlane.xlu0 %2315
    %2317 = vadd.xlane.f32.xlu0 %v2256
    %v2318 = vpop.xlane.xlu0 %2317
    %2319 = vadd.xlane.f32.xlu0 %v2257
    %v2320 = vpop.xlane.xlu0 %2319
    %2321 = vadd.xlane.f32.xlu0 %v2258
    %v2322 = vpop.xlane.xlu0 %2321
    %v2323 = vadd.f32 %v2260, %v2194
    %v2324 = vadd.f32 %v2262, %v2194
    %v2325 = vadd.f32 %v2264, %v2194
    %v2326 = vadd.f32 %v2266, %v2194
    %v2327 = vadd.f32 %v2268, %v2194
    %v2328 = vadd.f32 %v2270, %v2194
    %v2329 = vadd.f32 %v2272, %v2194
    %v2330 = vadd.f32 %v2274, %v2194
    %v2331 = vadd.f32 %v2276, %v2194
    %v2332 = vadd.f32 %v2278, %v2194
    %v2333 = vadd.f32 %v2280, %v2194
    %v2334 = vadd.f32 %v2282, %v2194
    %v2335 = vadd.f32 %v2284, %v2194
    %v2336 = vadd.f32 %v2286, %v2194
    %v2337 = vadd.f32 %v2288, %v2194
    %v2338 = vadd.f32 %v2290, %v2194
    %v2339 = vadd.f32 %v2292, %v2194
    %v2340 = vadd.f32 %v2294, %v2194
    %v2341 = vadd.f32 %v2296, %v2194
    %v2342 = vadd.f32 %v2298, %v2194
    %v2343 = vadd.f32 %v2300, %v2194
    %v2344 = vadd.f32 %v2302, %v2194
    %v2345 = vadd.f32 %v2304, %v2194
    %v2346 = vadd.f32 %v2306, %v2194
    %v2347 = vadd.f32 %v2308, %v2194
    %v2348 = vadd.f32 %v2310, %v2194
    %v2349 = vadd.f32 %v2312, %v2194
    %v2350 = vadd.f32 %v2314, %v2194
    %v2351 = vadd.f32 %v2316, %v2194
    %v2352 = vadd.f32 %v2318, %v2194
    %v2353 = vadd.f32 %v2320, %v2194
    %v2354 = vadd.f32 %v2322, %v2194
    %s2355 = smul.u32 0, 256
    %v2356 = vlaneseq
    %v2357 = vshrl.u32 %v2356, 7
    %v2358 = vadd.s32 %v2357, 8
    %v2359 = vadd.s32 %v2357, 16
    %v2360 = vadd.s32 %v2357, 24
    %v2361 = vadd.s32 %v2357, 32
    %v2362 = vadd.s32 %v2357, 40
    %v2363 = vadd.s32 %v2357, 48
    %v2364 = vadd.s32 %v2357, 56
    %v2365 = vadd.s32 %v2357, 64
    %v2366 = vadd.s32 %v2357, 72
    %v2367 = vadd.s32 %v2357, 80
    %v2368 = vadd.s32 %v2357, 88
    %v2369 = vadd.s32 %v2357, 96
    %v2370 = vadd.s32 %v2357, 104
    %v2371 = vadd.s32 %v2357, 112
    %v2372 = vadd.s32 %v2357, 120
    %v2373 = vadd.s32 %v2357, 128
    %v2374 = vadd.s32 %v2357, 136
    %v2375 = vadd.s32 %v2357, 144
    %v2376 = vadd.s32 %v2357, 152
    %v2377 = vadd.s32 %v2357, 160
    %v2378 = vadd.s32 %v2357, 168
    %v2379 = vadd.s32 %v2357, 176
    %v2380 = vadd.s32 %v2357, 184
    %v2381 = vadd.s32 %v2357, 192
    %v2382 = vadd.s32 %v2357, 200
    %v2383 = vadd.s32 %v2357, 208
    %v2384 = vadd.s32 %v2357, 216
    %v2385 = vadd.s32 %v2357, 224
    %v2386 = vadd.s32 %v2357, 232
    %v2387 = vadd.s32 %v2357, 240
    %v2388 = vadd.s32 %v2357, 248
    %v2389 = vstv %s2355
    %v2390 = vadd.s32 %v2389, %v2357
    %v2391 = vadd.s32 %v2389, %v2358
    %v2392 = vadd.s32 %v2389, %v2359
    %v2393 = vadd.s32 %v2389, %v2360
    %v2394 = vadd.s32 %v2389, %v2361
    %v2395 = vadd.s32 %v2389, %v2362
    %v2396 = vadd.s32 %v2389, %v2363
    %v2397 = vadd.s32 %v2389, %v2364
    %v2398 = vadd.s32 %v2389, %v2365
    %v2399 = vadd.s32 %v2389, %v2366
    %v2400 = vadd.s32 %v2389, %v2367
    %v2401 = vadd.s32 %v2389, %v2368
    %v2402 = vadd.s32 %v2389, %v2369
    %v2403 = vadd.s32 %v2389, %v2370
    %v2404 = vadd.s32 %v2389, %v2371
    %v2405 = vadd.s32 %v2389, %v2372
    %v2406 = vadd.s32 %v2389, %v2373
    %v2407 = vadd.s32 %v2389, %v2374
    %v2408 = vadd.s32 %v2389, %v2375
    %v2409 = vadd.s32 %v2389, %v2376
    %v2410 = vadd.s32 %v2389, %v2377
    %v2411 = vadd.s32 %v2389, %v2378
    %v2412 = vadd.s32 %v2389, %v2379
    %v2413 = vadd.s32 %v2389, %v2380
    %v2414 = vadd.s32 %v2389, %v2381
    %v2415 = vadd.s32 %v2389, %v2382
    %v2416 = vadd.s32 %v2389, %v2383
    %v2417 = vadd.s32 %v2389, %v2384
    %v2418 = vadd.s32 %v2389, %v2385
    %v2419 = vadd.s32 %v2389, %v2386
    %v2420 = vadd.s32 %v2389, %v2387
    %v2421 = vadd.s32 %v2389, %v2388
    %vm2422 = vcmp.lt.s32.totalorder %v2390, 256
    %vm2423 = vcmp.lt.s32.totalorder %v2391, 256
    %vm2424 = vcmp.lt.s32.totalorder %v2392, 256
    %vm2425 = vcmp.lt.s32.totalorder %v2393, 256
    %vm2426 = vcmp.lt.s32.totalorder %v2394, 256
    %vm2427 = vcmp.lt.s32.totalorder %v2395, 256
    %vm2428 = vcmp.lt.s32.totalorder %v2396, 256
    %vm2429 = vcmp.lt.s32.totalorder %v2397, 256
    %vm2430 = vcmp.lt.s32.totalorder %v2398, 256
    %vm2431 = vcmp.lt.s32.totalorder %v2399, 256
    %vm2432 = vcmp.lt.s32.totalorder %v2400, 256
    %vm2433 = vcmp.lt.s32.totalorder %v2401, 256
    %vm2434 = vcmp.lt.s32.totalorder %v2402, 256
    %vm2435 = vcmp.lt.s32.totalorder %v2403, 256
    %vm2436 = vcmp.lt.s32.totalorder %v2404, 256
    %vm2437 = vcmp.lt.s32.totalorder %v2405, 256
    %vm2438 = vcmp.lt.s32.totalorder %v2406, 256
    %vm2439 = vcmp.lt.s32.totalorder %v2407, 256
    %vm2440 = vcmp.lt.s32.totalorder %v2408, 256
    %vm2441 = vcmp.lt.s32.totalorder %v2409, 256
    %vm2442 = vcmp.lt.s32.totalorder %v2410, 256
    %vm2443 = vcmp.lt.s32.totalorder %v2411, 256
    %vm2444 = vcmp.lt.s32.totalorder %v2412, 256
    %vm2445 = vcmp.lt.s32.totalorder %v2413, 256
    %vm2446 = vcmp.lt.s32.totalorder %v2414, 256
    %vm2447 = vcmp.lt.s32.totalorder %v2415, 256
    %vm2448 = vcmp.lt.s32.totalorder %v2416, 256
    %vm2449 = vcmp.lt.s32.totalorder %v2417, 256
    %vm2450 = vcmp.lt.s32.totalorder %v2418, 256
    %vm2451 = vcmp.lt.s32.totalorder %v2419, 256
    %vm2452 = vcmp.lt.s32.totalorder %v2420, 256
    %vm2453 = vcmp.lt.s32.totalorder %v2421, 256
    %v2454 = vsel %vm2422, 1, 0
    %v2455 = vsel %vm2423, 1, 0
    %v2456 = vsel %vm2424, 1, 0
    %v2457 = vsel %vm2425, 1, 0
    %v2458 = vsel %vm2426, 1, 0
    %v2459 = vsel %vm2427, 1, 0
    %v2460 = vsel %vm2428, 1, 0
    %v2461 = vsel %vm2429, 1, 0
    %v2462 = vsel %vm2430, 1, 0
    %v2463 = vsel %vm2431, 1, 0
    %v2464 = vsel %vm2432, 1, 0
    %v2465 = vsel %vm2433, 1, 0
    %v2466 = vsel %vm2434, 1, 0
    %v2467 = vsel %vm2435, 1, 0
    %v2468 = vsel %vm2436, 1, 0
    %v2469 = vsel %vm2437, 1, 0
    %v2470 = vsel %vm2438, 1, 0
    %v2471 = vsel %vm2439, 1, 0
    %v2472 = vsel %vm2440, 1, 0
    %v2473 = vsel %vm2441, 1, 0
    %v2474 = vsel %vm2442, 1, 0
    %v2475 = vsel %vm2443, 1, 0
    %v2476 = vsel %vm2444, 1, 0
    %v2477 = vsel %vm2445, 1, 0
    %v2478 = vsel %vm2446, 1, 0
    %v2479 = vsel %vm2447, 1, 0
    %v2480 = vsel %vm2448, 1, 0
    %v2481 = vsel %vm2449, 1, 0
    %v2482 = vsel %vm2450, 1, 0
    %v2483 = vsel %vm2451, 1, 0
    %v2484 = vsel %vm2452, 1, 0
    %v2485 = vsel %vm2453, 1, 0
    %v2486 = vcvt.s32.f32 %v2454
    %v2487 = vcvt.s32.f32 %v2455
    %v2488 = vcvt.s32.f32 %v2456
    %v2489 = vcvt.s32.f32 %v2457
    %v2490 = vcvt.s32.f32 %v2458
    %v2491 = vcvt.s32.f32 %v2459
    %v2492 = vcvt.s32.f32 %v2460
    %v2493 = vcvt.s32.f32 %v2461
    %v2494 = vcvt.s32.f32 %v2462
    %v2495 = vcvt.s32.f32 %v2463
    %v2496 = vcvt.s32.f32 %v2464
    %v2497 = vcvt.s32.f32 %v2465
    %v2498 = vcvt.s32.f32 %v2466
    %v2499 = vcvt.s32.f32 %v2467
    %v2500 = vcvt.s32.f32 %v2468
    %v2501 = vcvt.s32.f32 %v2469
    %v2502 = vcvt.s32.f32 %v2470
    %v2503 = vcvt.s32.f32 %v2471
    %v2504 = vcvt.s32.f32 %v2472
    %v2505 = vcvt.s32.f32 %v2473
    %v2506 = vcvt.s32.f32 %v2474
    %v2507 = vcvt.s32.f32 %v2475
    %v2508 = vcvt.s32.f32 %v2476
    %v2509 = vcvt.s32.f32 %v2477
    %v2510 = vcvt.s32.f32 %v2478
    %v2511 = vcvt.s32.f32 %v2479
    %v2512 = vcvt.s32.f32 %v2480
    %v2513 = vcvt.s32.f32 %v2481
    %v2514 = vcvt.s32.f32 %v2482
    %v2515 = vcvt.s32.f32 %v2483
    %v2516 = vcvt.s32.f32 %v2484
    %v2517 = vcvt.s32.f32 %v2485
    %v2518 = vsub.f32 0.0, %v2195
    %v2519 = vsub.f32 0.0, %v2196
    %v2520 = vsub.f32 0.0, %v2197
    %v2521 = vsub.f32 0.0, %v2198
    %v2522 = vsub.f32 0.0, %v2199
    %v2523 = vsub.f32 0.0, %v2200
    %v2524 = vsub.f32 0.0, %v2201
    %v2525 = vsub.f32 0.0, %v2202
    %v2526 = vsub.f32 0.0, %v2203
    %v2527 = vsub.f32 0.0, %v2204
    %v2528 = vsub.f32 0.0, %v2205
    %v2529 = vsub.f32 0.0, %v2206
    %v2530 = vsub.f32 0.0, %v2207
    %v2531 = vsub.f32 0.0, %v2208
    %v2532 = vsub.f32 0.0, %v2209
    %v2533 = vsub.f32 0.0, %v2210
    %v2534 = vsub.f32 0.0, %v2211
    %v2535 = vsub.f32 0.0, %v2212
    %v2536 = vsub.f32 0.0, %v2213
    %v2537 = vsub.f32 0.0, %v2214
    %v2538 = vsub.f32 0.0, %v2215
    %v2539 = vsub.f32 0.0, %v2216
    %v2540 = vsub.f32 0.0, %v2217
    %v2541 = vsub.f32 0.0, %v2218
    %v2542 = vsub.f32 0.0, %v2219
    %v2543 = vsub.f32 0.0, %v2220
    %v2544 = vsub.f32 0.0, %v2221
    %v2545 = vsub.f32 0.0, %v2222
    %v2546 = vsub.f32 0.0, %v2223
    %v2547 = vsub.f32 0.0, %v2224
    %v2548 = vsub.f32 0.0, %v2225
    %v2549 = vsub.f32 0.0, %v2226
    %v2550 = vmax.f32 %v2518, 0.0
    %v2551 = vmax.f32 %v2519, 0.0
    %v2552 = vmax.f32 %v2520, 0.0
    %v2553 = vmax.f32 %v2521, 0.0
    %v2554 = vmax.f32 %v2522, 0.0
    %v2555 = vmax.f32 %v2523, 0.0
    %v2556 = vmax.f32 %v2524, 0.0
    %v2557 = vmax.f32 %v2525, 0.0
    %v2558 = vmax.f32 %v2526, 0.0
    %v2559 = vmax.f32 %v2527, 0.0
    %v2560 = vmax.f32 %v2528, 0.0
    %v2561 = vmax.f32 %v2529, 0.0
    %v2562 = vmax.f32 %v2530, 0.0
    %v2563 = vmax.f32 %v2531, 0.0
    %v2564 = vmax.f32 %v2532, 0.0
    %v2565 = vmax.f32 %v2533, 0.0
    %v2566 = vmax.f32 %v2534, 0.0
    %v2567 = vmax.f32 %v2535, 0.0
    %v2568 = vmax.f32 %v2536, 0.0
    %v2569 = vmax.f32 %v2537, 0.0
    %v2570 = vmax.f32 %v2538, 0.0
    %v2571 = vmax.f32 %v2539, 0.0
    %v2572 = vmax.f32 %v2540, 0.0
    %v2573 = vmax.f32 %v2541, 0.0
    %v2574 = vmax.f32 %v2542, 0.0
    %v2575 = vmax.f32 %v2543, 0.0
    %v2576 = vmax.f32 %v2544, 0.0
    %v2577 = vmax.f32 %v2545, 0.0
    %v2578 = vmax.f32 %v2546, 0.0
    %v2579 = vmax.f32 %v2547, 0.0
    %v2580 = vmax.f32 %v2548, 0.0
    %v2581 = vmax.f32 %v2549, 0.0
    %v2582 = vand.u32 2147483647, %v2518
    %v2583 = vand.u32 2147483647, %v2519
    %v2584 = vand.u32 2147483647, %v2520
    %v2585 = vand.u32 2147483647, %v2521
    %v2586 = vand.u32 2147483647, %v2522
    %v2587 = vand.u32 2147483647, %v2523
    %v2588 = vand.u32 2147483647, %v2524
    %v2589 = vand.u32 2147483647, %v2525
    %v2590 = vand.u32 2147483647, %v2526
    %v2591 = vand.u32 2147483647, %v2527
    %v2592 = vand.u32 2147483647, %v2528
    %v2593 = vand.u32 2147483647, %v2529
    %v2594 = vand.u32 2147483647, %v2530
    %v2595 = vand.u32 2147483647, %v2531
    %v2596 = vand.u32 2147483647, %v2532
    %v2597 = vand.u32 2147483647, %v2533
    %v2598 = vand.u32 2147483647, %v2534
    %v2599 = vand.u32 2147483647, %v2535
    %v2600 = vand.u32 2147483647, %v2536
    %v2601 = vand.u32 2147483647, %v2537
    %v2602 = vand.u32 2147483647, %v2538
    %v2603 = vand.u32 2147483647, %v2539
    %v2604 = vand.u32 2147483647, %v2540
    %v2605 = vand.u32 2147483647, %v2541
    %v2606 = vand.u32 2147483647, %v2542
    %v2607 = vand.u32 2147483647, %v2543
    %v2608 = vand.u32 2147483647, %v2544
    %v2609 = vand.u32 2147483647, %v2545
    %v2610 = vand.u32 2147483647, %v2546
    %v2611 = vand.u32 2147483647, %v2547
    %v2612 = vand.u32 2147483647, %v2548
    %v2613 = vand.u32 2147483647, %v2549
    %v2614 = vsub.f32 0.0, %v2582
    %v2615 = vsub.f32 0.0, %v2583
    %v2616 = vsub.f32 0.0, %v2584
    %v2617 = vsub.f32 0.0, %v2585
    %v2618 = vsub.f32 0.0, %v2586
    %v2619 = vsub.f32 0.0, %v2587
    %v2620 = vsub.f32 0.0, %v2588
    %v2621 = vsub.f32 0.0, %v2589
    %v2622 = vsub.f32 0.0, %v2590
    %v2623 = vsub.f32 0.0, %v2591
    %v2624 = vsub.f32 0.0, %v2592
    %v2625 = vsub.f32 0.0, %v2593
    %v2626 = vsub.f32 0.0, %v2594
    %v2627 = vsub.f32 0.0, %v2595
    %v2628 = vsub.f32 0.0, %v2596
    %v2629 = vsub.f32 0.0, %v2597
    %v2630 = vsub.f32 0.0, %v2598
    %v2631 = vsub.f32 0.0, %v2599
    %v2632 = vsub.f32 0.0, %v2600
    %v2633 = vsub.f32 0.0, %v2601
    %v2634 = vsub.f32 0.0, %v2602
    %v2635 = vsub.f32 0.0, %v2603
    %v2636 = vsub.f32 0.0, %v2604
    %v2637 = vsub.f32 0.0, %v2605
    %v2638 = vsub.f32 0.0, %v2606
    %v2639 = vsub.f32 0.0, %v2607
    %v2640 = vsub.f32 0.0, %v2608
    %v2641 = vsub.f32 0.0, %v2609
    %v2642 = vsub.f32 0.0, %v2610
    %v2643 = vsub.f32 0.0, %v2611
    %v2644 = vsub.f32 0.0, %v2612
    %v2645 = vsub.f32 0.0, %v2613
    %v2646 = vmul.f32 %v2614, 1.442695
    %v2647 = vpow.pop %v2646
    %v2648 = vmul.f32 %v2615, 1.442695
    %v2649 = vpow.pop %v2648
    %v2650 = vmul.f32 %v2616, 1.442695
    %v2651 = vpow.pop %v2650
    %v2652 = vmul.f32 %v2617, 1.442695
    %v2653 = vpow.pop %v2652
    %v2654 = vmul.f32 %v2618, 1.442695
    %v2655 = vpow.pop %v2654
    %v2656 = vmul.f32 %v2619, 1.442695
    %v2657 = vpow.pop %v2656
    %v2658 = vmul.f32 %v2620, 1.442695
    %v2659 = vpow.pop %v2658
    %v2660 = vmul.f32 %v2621, 1.442695
    %v2661 = vpow.pop %v2660
    %v2662 = vmul.f32 %v2622, 1.442695
    %v2663 = vpow.pop %v2662
    %v2664 = vmul.f32 %v2623, 1.442695
    %v2665 = vpow.pop %v2664
    %v2666 = vmul.f32 %v2624, 1.442695
    %v2667 = vpow.pop %v2666
    %v2668 = vmul.f32 %v2625, 1.442695
    %v2669 = vpow.pop %v2668
    %v2670 = vmul.f32 %v2626, 1.442695
    %v2671 = vpow.pop %v2670
    %v2672 = vmul.f32 %v2627, 1.442695
    %v2673 = vpow.pop %v2672
    %v2674 = vmul.f32 %v2628, 1.442695
    %v2675 = vpow.pop %v2674
    %v2676 = vmul.f32 %v2629, 1.442695
    %v2677 = vpow.pop %v2676
    %v2678 = vmul.f32 %v2630, 1.442695
    %v2679 = vpow.pop %v2678
    %v2680 = vmul.f32 %v2631, 1.442695
    %v2681 = vpow.pop %v2680
    %v2682 = vmul.f32 %v2632, 1.442695
    %v2683 = vpow.pop %v2682
    %v2684 = vmul.f32 %v2633, 1.442695
    %v2685 = vpow.pop %v2684
    %v2686 = vmul.f32 %v2634, 1.442695
    %v2687 = vpow.pop %v2686
    %v2688 = vmul.f32 %v2635, 1.442695
    %v2689 = vpow.pop %v2688
    %v2690 = vmul.f32 %v2636, 1.442695
    %v2691 = vpow.pop %v2690
    %v2692 = vmul.f32 %v2637, 1.442695
    %v2693 = vpow.pop %v2692
    %v2694 = vmul.f32 %v2638, 1.442695
    %v2695 = vpow.pop %v2694
    %v2696 = vmul.f32 %v2639, 1.442695
    %v2697 = vpow.pop %v2696
    %v2698 = vmul.f32 %v2640, 1.442695
    %v2699 = vpow.pop %v2698
    %v2700 = vmul.f32 %v2641, 1.442695
    %v2701 = vpow.pop %v2700
    %v2702 = vmul.f32 %v2642, 1.442695
    %v2703 = vpow.pop %v2702
    %v2704 = vmul.f32 %v2643, 1.442695
    %v2705 = vpow.pop %v2704
    %v2706 = vmul.f32 %v2644, 1.442695
    %v2707 = vpow.pop %v2706
    %v2708 = vmul.f32 %v2645, 1.442695
    %v2709 = vpow.pop %v2708
    %v2710 = vadd.f32 %v2647, 1.0
    %v2711 = vlog2.pop %v2710
    %v2712 = vmul.f32 %v2711, 0.6931472
    %v2713 = vmul.f32 -0.5, %v2647
    %v2714 = vadd.f32 %v2713, 1.0
    %v2715 = vmul.f32 %v2714, %v2647
    %v2716 = vand.u32 2147483647, %v2647
    %vm2717 = vcmp.lt.f32.partialorder %v2716, 0.0004427343
    %v2718 = vsel %vm2717, %v2715, %v2712
    %v2719 = vadd.f32 %v2649, 1.0
    %v2720 = vlog2.pop %v2719
    %v2721 = vmul.f32 %v2720, 0.6931472
    %v2722 = vmul.f32 -0.5, %v2649
    %v2723 = vadd.f32 %v2722, 1.0
    %v2724 = vmul.f32 %v2723, %v2649
    %v2725 = vand.u32 2147483647, %v2649
    %vm2726 = vcmp.lt.f32.partialorder %v2725, 0.0004427343
    %v2727 = vsel %vm2726, %v2724, %v2721
    %v2728 = vadd.f32 %v2651, 1.0
    %v2729 = vlog2.pop %v2728
    %v2730 = vmul.f32 %v2729, 0.6931472
    %v2731 = vmul.f32 -0.5, %v2651
    %v2732 = vadd.f32 %v2731, 1.0
    %v2733 = vmul.f32 %v2732, %v2651
    %v2734 = vand.u32 2147483647, %v2651
    %vm2735 = vcmp.lt.f32.partialorder %v2734, 0.0004427343
    %v2736 = vsel %vm2735, %v2733, %v2730
    %v2737 = vadd.f32 %v2653, 1.0
    %v2738 = vlog2.pop %v2737
    %v2739 = vmul.f32 %v2738, 0.6931472
    %v2740 = vmul.f32 -0.5, %v2653
    %v2741 = vadd.f32 %v2740, 1.0
    %v2742 = vmul.f32 %v2741, %v2653
    %v2743 = vand.u32 2147483647, %v2653
    %vm2744 = vcmp.lt.f32.partialorder %v2743, 0.0004427343
    %v2745 = vsel %vm2744, %v2742, %v2739
    %v2746 = vadd.f32 %v2655, 1.0
    %v2747 = vlog2.pop %v2746
    %v2748 = vmul.f32 %v2747, 0.6931472
    %v2749 = vmul.f32 -0.5, %v2655
    %v2750 = vadd.f32 %v2749, 1.0
    %v2751 = vmul.f32 %v2750, %v2655
    %v2752 = vand.u32 2147483647, %v2655
    %vm2753 = vcmp.lt.f32.partialorder %v2752, 0.0004427343
    %v2754 = vsel %vm2753, %v2751, %v2748
    %v2755 = vadd.f32 %v2657, 1.0
    %v2756 = vlog2.pop %v2755
    %v2757 = vmul.f32 %v2756, 0.6931472
    %v2758 = vmul.f32 -0.5, %v2657
    %v2759 = vadd.f32 %v2758, 1.0
    %v2760 = vmul.f32 %v2759, %v2657
    %v2761 = vand.u32 2147483647, %v2657
    %vm2762 = vcmp.lt.f32.partialorder %v2761, 0.0004427343
    %v2763 = vsel %vm2762, %v2760, %v2757
    %v2764 = vadd.f32 %v2659, 1.0
    %v2765 = vlog2.pop %v2764
    %v2766 = vmul.f32 %v2765, 0.6931472
    %v2767 = vmul.f32 -0.5, %v2659
    %v2768 = vadd.f32 %v2767, 1.0
    %v2769 = vmul.f32 %v2768, %v2659
    %v2770 = vand.u32 2147483647, %v2659
    %vm2771 = vcmp.lt.f32.partialorder %v2770, 0.0004427343
    %v2772 = vsel %vm2771, %v2769, %v2766
    %v2773 = vadd.f32 %v2661, 1.0
    %v2774 = vlog2.pop %v2773
    %v2775 = vmul.f32 %v2774, 0.6931472
    %v2776 = vmul.f32 -0.5, %v2661
    %v2777 = vadd.f32 %v2776, 1.0
    %v2778 = vmul.f32 %v2777, %v2661
    %v2779 = vand.u32 2147483647, %v2661
    %vm2780 = vcmp.lt.f32.partialorder %v2779, 0.0004427343
    %v2781 = vsel %vm2780, %v2778, %v2775
    %v2782 = vadd.f32 %v2663, 1.0
    %v2783 = vlog2.pop %v2782
    %v2784 = vmul.f32 %v2783, 0.6931472
    %v2785 = vmul.f32 -0.5, %v2663
    %v2786 = vadd.f32 %v2785, 1.0
    %v2787 = vmul.f32 %v2786, %v2663
    %v2788 = vand.u32 2147483647, %v2663
    %vm2789 = vcmp.lt.f32.partialorder %v2788, 0.0004427343
    %v2790 = vsel %vm2789, %v2787, %v2784
    %v2791 = vadd.f32 %v2665, 1.0
    %v2792 = vlog2.pop %v2791
    %v2793 = vmul.f32 %v2792, 0.6931472
    %v2794 = vmul.f32 -0.5, %v2665
    %v2795 = vadd.f32 %v2794, 1.0
    %v2796 = vmul.f32 %v2795, %v2665
    %v2797 = vand.u32 2147483647, %v2665
    %vm2798 = vcmp.lt.f32.partialorder %v2797, 0.0004427343
    %v2799 = vsel %vm2798, %v2796, %v2793
    %v2800 = vadd.f32 %v2667, 1.0
    %v2801 = vlog2.pop %v2800
    %v2802 = vmul.f32 %v2801, 0.6931472
    %v2803 = vmul.f32 -0.5, %v2667
    %v2804 = vadd.f32 %v2803, 1.0
    %v2805 = vmul.f32 %v2804, %v2667
    %v2806 = vand.u32 2147483647, %v2667
    %vm2807 = vcmp.lt.f32.partialorder %v2806, 0.0004427343
    %v2808 = vsel %vm2807, %v2805, %v2802
    %v2809 = vadd.f32 %v2669, 1.0
    %v2810 = vlog2.pop %v2809
    %v2811 = vmul.f32 %v2810, 0.6931472
    %v2812 = vmul.f32 -0.5, %v2669
    %v2813 = vadd.f32 %v2812, 1.0
    %v2814 = vmul.f32 %v2813, %v2669
    %v2815 = vand.u32 2147483647, %v2669
    %vm2816 = vcmp.lt.f32.partialorder %v2815, 0.0004427343
    %v2817 = vsel %vm2816, %v2814, %v2811
    %v2818 = vadd.f32 %v2671, 1.0
    %v2819 = vlog2.pop %v2818
    %v2820 = vmul.f32 %v2819, 0.6931472
    %v2821 = vmul.f32 -0.5, %v2671
    %v2822 = vadd.f32 %v2821, 1.0
    %v2823 = vmul.f32 %v2822, %v2671
    %v2824 = vand.u32 2147483647, %v2671
    %vm2825 = vcmp.lt.f32.partialorder %v2824, 0.0004427343
    %v2826 = vsel %vm2825, %v2823, %v2820
    %v2827 = vadd.f32 %v2673, 1.0
    %v2828 = vlog2.pop %v2827
    %v2829 = vmul.f32 %v2828, 0.6931472
    %v2830 = vmul.f32 -0.5, %v2673
    %v2831 = vadd.f32 %v2830, 1.0
    %v2832 = vmul.f32 %v2831, %v2673
    %v2833 = vand.u32 2147483647, %v2673
    %vm2834 = vcmp.lt.f32.partialorder %v2833, 0.0004427343
    %v2835 = vsel %vm2834, %v2832, %v2829
    %v2836 = vadd.f32 %v2675, 1.0
    %v2837 = vlog2.pop %v2836
    %v2838 = vmul.f32 %v2837, 0.6931472
    %v2839 = vmul.f32 -0.5, %v2675
    %v2840 = vadd.f32 %v2839, 1.0
    %v2841 = vmul.f32 %v2840, %v2675
    %v2842 = vand.u32 2147483647, %v2675
    %vm2843 = vcmp.lt.f32.partialorder %v2842, 0.0004427343
    %v2844 = vsel %vm2843, %v2841, %v2838
    %v2845 = vadd.f32 %v2677, 1.0
    %v2846 = vlog2.pop %v2845
    %v2847 = vmul.f32 %v2846, 0.6931472
    %v2848 = vmul.f32 -0.5, %v2677
    %v2849 = vadd.f32 %v2848, 1.0
    %v2850 = vmul.f32 %v2849, %v2677
    %v2851 = vand.u32 2147483647, %v2677
    %vm2852 = vcmp.lt.f32.partialorder %v2851, 0.0004427343
    %v2853 = vsel %vm2852, %v2850, %v2847
    %v2854 = vadd.f32 %v2679, 1.0
    %v2855 = vlog2.pop %v2854
    %v2856 = vmul.f32 %v2855, 0.6931472
    %v2857 = vmul.f32 -0.5, %v2679
    %v2858 = vadd.f32 %v2857, 1.0
    %v2859 = vmul.f32 %v2858, %v2679
    %v2860 = vand.u32 2147483647, %v2679
    %vm2861 = vcmp.lt.f32.partialorder %v2860, 0.0004427343
    %v2862 = vsel %vm2861, %v2859, %v2856
    %v2863 = vadd.f32 %v2681, 1.0
    %v2864 = vlog2.pop %v2863
    %v2865 = vmul.f32 %v2864, 0.6931472
    %v2866 = vmul.f32 -0.5, %v2681
    %v2867 = vadd.f32 %v2866, 1.0
    %v2868 = vmul.f32 %v2867, %v2681
    %v2869 = vand.u32 2147483647, %v2681
    %vm2870 = vcmp.lt.f32.partialorder %v2869, 0.0004427343
    %v2871 = vsel %vm2870, %v2868, %v2865
    %v2872 = vadd.f32 %v2683, 1.0
    %v2873 = vlog2.pop %v2872
    %v2874 = vmul.f32 %v2873, 0.6931472
    %v2875 = vmul.f32 -0.5, %v2683
    %v2876 = vadd.f32 %v2875, 1.0
    %v2877 = vmul.f32 %v2876, %v2683
    %v2878 = vand.u32 2147483647, %v2683
    %vm2879 = vcmp.lt.f32.partialorder %v2878, 0.0004427343
    %v2880 = vsel %vm2879, %v2877, %v2874
    %v2881 = vadd.f32 %v2685, 1.0
    %v2882 = vlog2.pop %v2881
    %v2883 = vmul.f32 %v2882, 0.6931472
    %v2884 = vmul.f32 -0.5, %v2685
    %v2885 = vadd.f32 %v2884, 1.0
    %v2886 = vmul.f32 %v2885, %v2685
    %v2887 = vand.u32 2147483647, %v2685
    %vm2888 = vcmp.lt.f32.partialorder %v2887, 0.0004427343
    %v2889 = vsel %vm2888, %v2886, %v2883
    %v2890 = vadd.f32 %v2687, 1.0
    %v2891 = vlog2.pop %v2890
    %v2892 = vmul.f32 %v2891, 0.6931472
    %v2893 = vmul.f32 -0.5, %v2687
    %v2894 = vadd.f32 %v2893, 1.0
    %v2895 = vmul.f32 %v2894, %v2687
    %v2896 = vand.u32 2147483647, %v2687
    %vm2897 = vcmp.lt.f32.partialorder %v2896, 0.0004427343
    %v2898 = vsel %vm2897, %v2895, %v2892
    %v2899 = vadd.f32 %v2689, 1.0
    %v2900 = vlog2.pop %v2899
    %v2901 = vmul.f32 %v2900, 0.6931472
    %v2902 = vmul.f32 -0.5, %v2689
    %v2903 = vadd.f32 %v2902, 1.0
    %v2904 = vmul.f32 %v2903, %v2689
    %v2905 = vand.u32 2147483647, %v2689
    %vm2906 = vcmp.lt.f32.partialorder %v2905, 0.0004427343
    %v2907 = vsel %vm2906, %v2904, %v2901
    %v2908 = vadd.f32 %v2691, 1.0
    %v2909 = vlog2.pop %v2908
    %v2910 = vmul.f32 %v2909, 0.6931472
    %v2911 = vmul.f32 -0.5, %v2691
    %v2912 = vadd.f32 %v2911, 1.0
    %v2913 = vmul.f32 %v2912, %v2691
    %v2914 = vand.u32 2147483647, %v2691
    %vm2915 = vcmp.lt.f32.partialorder %v2914, 0.0004427343
    %v2916 = vsel %vm2915, %v2913, %v2910
    %v2917 = vadd.f32 %v2693, 1.0
    %v2918 = vlog2.pop %v2917
    %v2919 = vmul.f32 %v2918, 0.6931472
    %v2920 = vmul.f32 -0.5, %v2693
    %v2921 = vadd.f32 %v2920, 1.0
    %v2922 = vmul.f32 %v2921, %v2693
    %v2923 = vand.u32 2147483647, %v2693
    %vm2924 = vcmp.lt.f32.partialorder %v2923, 0.0004427343
    %v2925 = vsel %vm2924, %v2922, %v2919
    %v2926 = vadd.f32 %v2695, 1.0
    %v2927 = vlog2.pop %v2926
    %v2928 = vmul.f32 %v2927, 0.6931472
    %v2929 = vmul.f32 -0.5, %v2695
    %v2930 = vadd.f32 %v2929, 1.0
    %v2931 = vmul.f32 %v2930, %v2695
    %v2932 = vand.u32 2147483647, %v2695
    %vm2933 = vcmp.lt.f32.partialorder %v2932, 0.0004427343
    %v2934 = vsel %vm2933, %v2931, %v2928
    %v2935 = vadd.f32 %v2697, 1.0
    %v2936 = vlog2.pop %v2935
    %v2937 = vmul.f32 %v2936, 0.6931472
    %v2938 = vmul.f32 -0.5, %v2697
    %v2939 = vadd.f32 %v2938, 1.0
    %v2940 = vmul.f32 %v2939, %v2697
    %v2941 = vand.u32 2147483647, %v2697
    %vm2942 = vcmp.lt.f32.partialorder %v2941, 0.0004427343
    %v2943 = vsel %vm2942, %v2940, %v2937
    %v2944 = vadd.f32 %v2699, 1.0
    %v2945 = vlog2.pop %v2944
    %v2946 = vmul.f32 %v2945, 0.6931472
    %v2947 = vmul.f32 -0.5, %v2699
    %v2948 = vadd.f32 %v2947, 1.0
    %v2949 = vmul.f32 %v2948, %v2699
    %v2950 = vand.u32 2147483647, %v2699
    %vm2951 = vcmp.lt.f32.partialorder %v2950, 0.0004427343
    %v2952 = vsel %vm2951, %v2949, %v2946
    %v2953 = vadd.f32 %v2701, 1.0
    %v2954 = vlog2.pop %v2953
    %v2955 = vmul.f32 %v2954, 0.6931472
    %v2956 = vmul.f32 -0.5, %v2701
    %v2957 = vadd.f32 %v2956, 1.0
    %v2958 = vmul.f32 %v2957, %v2701
    %v2959 = vand.u32 2147483647, %v2701
    %vm2960 = vcmp.lt.f32.partialorder %v2959, 0.0004427343
    %v2961 = vsel %vm2960, %v2958, %v2955
    %v2962 = vadd.f32 %v2703, 1.0
    %v2963 = vlog2.pop %v2962
    %v2964 = vmul.f32 %v2963, 0.6931472
    %v2965 = vmul.f32 -0.5, %v2703
    %v2966 = vadd.f32 %v2965, 1.0
    %v2967 = vmul.f32 %v2966, %v2703
    %v2968 = vand.u32 2147483647, %v2703
    %vm2969 = vcmp.lt.f32.partialorder %v2968, 0.0004427343
    %v2970 = vsel %vm2969, %v2967, %v2964
    %v2971 = vadd.f32 %v2705, 1.0
    %v2972 = vlog2.pop %v2971
    %v2973 = vmul.f32 %v2972, 0.6931472
    %v2974 = vmul.f32 -0.5, %v2705
    %v2975 = vadd.f32 %v2974, 1.0
    %v2976 = vmul.f32 %v2975, %v2705
    %v2977 = vand.u32 2147483647, %v2705
    %vm2978 = vcmp.lt.f32.partialorder %v2977, 0.0004427343
    %v2979 = vsel %vm2978, %v2976, %v2973
    %v2980 = vadd.f32 %v2707, 1.0
    %v2981 = vlog2.pop %v2980
    %v2982 = vmul.f32 %v2981, 0.6931472
    %v2983 = vmul.f32 -0.5, %v2707
    %v2984 = vadd.f32 %v2983, 1.0
    %v2985 = vmul.f32 %v2984, %v2707
    %v2986 = vand.u32 2147483647, %v2707
    %vm2987 = vcmp.lt.f32.partialorder %v2986, 0.0004427343
    %v2988 = vsel %vm2987, %v2985, %v2982
    %v2989 = vadd.f32 %v2709, 1.0
    %v2990 = vlog2.pop %v2989
    %v2991 = vmul.f32 %v2990, 0.6931472
    %v2992 = vmul.f32 -0.5, %v2709
    %v2993 = vadd.f32 %v2992, 1.0
    %v2994 = vmul.f32 %v2993, %v2709
    %v2995 = vand.u32 2147483647, %v2709
    %vm2996 = vcmp.lt.f32.partialorder %v2995, 0.0004427343
    %v2997 = vsel %vm2996, %v2994, %v2991
    %v2998 = vadd.f32 %v2550, %v2718
    %v2999 = vadd.f32 %v2551, %v2727
    %v3000 = vadd.f32 %v2552, %v2736
    %v3001 = vadd.f32 %v2553, %v2745
    %v3002 = vadd.f32 %v2554, %v2754
    %v3003 = vadd.f32 %v2555, %v2763
    %v3004 = vadd.f32 %v2556, %v2772
    %v3005 = vadd.f32 %v2557, %v2781
    %v3006 = vadd.f32 %v2558, %v2790
    %v3007 = vadd.f32 %v2559, %v2799
    %v3008 = vadd.f32 %v2560, %v2808
    %v3009 = vadd.f32 %v2561, %v2817
    %v3010 = vadd.f32 %v2562, %v2826
    %v3011 = vadd.f32 %v2563, %v2835
    %v3012 = vadd.f32 %v2564, %v2844
    %v3013 = vadd.f32 %v2565, %v2853
    %v3014 = vadd.f32 %v2566, %v2862
    %v3015 = vadd.f32 %v2567, %v2871
    %v3016 = vadd.f32 %v2568, %v2880
    %v3017 = vadd.f32 %v2569, %v2889
    %v3018 = vadd.f32 %v2570, %v2898
    %v3019 = vadd.f32 %v2571, %v2907
    %v3020 = vadd.f32 %v2572, %v2916
    %v3021 = vadd.f32 %v2573, %v2925
    %v3022 = vadd.f32 %v2574, %v2934
    %v3023 = vadd.f32 %v2575, %v2943
    %v3024 = vadd.f32 %v2576, %v2952
    %v3025 = vadd.f32 %v2577, %v2961
    %v3026 = vadd.f32 %v2578, %v2970
    %v3027 = vadd.f32 %v2579, %v2979
    %v3028 = vadd.f32 %v2580, %v2988
    %v3029 = vadd.f32 %v2581, %v2997
    %v3030 = vmax.f32 %v2323, 0.0
    %v3031 = vmax.f32 %v2324, 0.0
    %v3032 = vmax.f32 %v2325, 0.0
    %v3033 = vmax.f32 %v2326, 0.0
    %v3034 = vmax.f32 %v2327, 0.0
    %v3035 = vmax.f32 %v2328, 0.0
    %v3036 = vmax.f32 %v2329, 0.0
    %v3037 = vmax.f32 %v2330, 0.0
    %v3038 = vmax.f32 %v2331, 0.0
    %v3039 = vmax.f32 %v2332, 0.0
    %v3040 = vmax.f32 %v2333, 0.0
    %v3041 = vmax.f32 %v2334, 0.0
    %v3042 = vmax.f32 %v2335, 0.0
    %v3043 = vmax.f32 %v2336, 0.0
    %v3044 = vmax.f32 %v2337, 0.0
    %v3045 = vmax.f32 %v2338, 0.0
    %v3046 = vmax.f32 %v2339, 0.0
    %v3047 = vmax.f32 %v2340, 0.0
    %v3048 = vmax.f32 %v2341, 0.0
    %v3049 = vmax.f32 %v2342, 0.0
    %v3050 = vmax.f32 %v2343, 0.0
    %v3051 = vmax.f32 %v2344, 0.0
    %v3052 = vmax.f32 %v2345, 0.0
    %v3053 = vmax.f32 %v2346, 0.0
    %v3054 = vmax.f32 %v2347, 0.0
    %v3055 = vmax.f32 %v2348, 0.0
    %v3056 = vmax.f32 %v2349, 0.0
    %v3057 = vmax.f32 %v2350, 0.0
    %v3058 = vmax.f32 %v2351, 0.0
    %v3059 = vmax.f32 %v2352, 0.0
    %v3060 = vmax.f32 %v2353, 0.0
    %v3061 = vmax.f32 %v2354, 0.0
    %v3062 = vand.u32 2147483647, %v2323
    %v3063 = vand.u32 2147483647, %v2324
    %v3064 = vand.u32 2147483647, %v2325
    %v3065 = vand.u32 2147483647, %v2326
    %v3066 = vand.u32 2147483647, %v2327
    %v3067 = vand.u32 2147483647, %v2328
    %v3068 = vand.u32 2147483647, %v2329
    %v3069 = vand.u32 2147483647, %v2330
    %v3070 = vand.u32 2147483647, %v2331
    %v3071 = vand.u32 2147483647, %v2332
    %v3072 = vand.u32 2147483647, %v2333
    %v3073 = vand.u32 2147483647, %v2334
    %v3074 = vand.u32 2147483647, %v2335
    %v3075 = vand.u32 2147483647, %v2336
    %v3076 = vand.u32 2147483647, %v2337
    %v3077 = vand.u32 2147483647, %v2338
    %v3078 = vand.u32 2147483647, %v2339
    %v3079 = vand.u32 2147483647, %v2340
    %v3080 = vand.u32 2147483647, %v2341
    %v3081 = vand.u32 2147483647, %v2342
    %v3082 = vand.u32 2147483647, %v2343
    %v3083 = vand.u32 2147483647, %v2344
    %v3084 = vand.u32 2147483647, %v2345
    %v3085 = vand.u32 2147483647, %v2346
    %v3086 = vand.u32 2147483647, %v2347
    %v3087 = vand.u32 2147483647, %v2348
    %v3088 = vand.u32 2147483647, %v2349
    %v3089 = vand.u32 2147483647, %v2350
    %v3090 = vand.u32 2147483647, %v2351
    %v3091 = vand.u32 2147483647, %v2352
    %v3092 = vand.u32 2147483647, %v2353
    %v3093 = vand.u32 2147483647, %v2354
    %v3094 = vsub.f32 0.0, %v3062
    %v3095 = vsub.f32 0.0, %v3063
    %v3096 = vsub.f32 0.0, %v3064
    %v3097 = vsub.f32 0.0, %v3065
    %v3098 = vsub.f32 0.0, %v3066
    %v3099 = vsub.f32 0.0, %v3067
    %v3100 = vsub.f32 0.0, %v3068
    %v3101 = vsub.f32 0.0, %v3069
    %v3102 = vsub.f32 0.0, %v3070
    %v3103 = vsub.f32 0.0, %v3071
    %v3104 = vsub.f32 0.0, %v3072
    %v3105 = vsub.f32 0.0, %v3073
    %v3106 = vsub.f32 0.0, %v3074
    %v3107 = vsub.f32 0.0, %v3075
    %v3108 = vsub.f32 0.0, %v3076
    %v3109 = vsub.f32 0.0, %v3077
    %v3110 = vsub.f32 0.0, %v3078
    %v3111 = vsub.f32 0.0, %v3079
    %v3112 = vsub.f32 0.0, %v3080
    %v3113 = vsub.f32 0.0, %v3081
    %v3114 = vsub.f32 0.0, %v3082
    %v3115 = vsub.f32 0.0, %v3083
    %v3116 = vsub.f32 0.0, %v3084
    %v3117 = vsub.f32 0.0, %v3085
    %v3118 = vsub.f32 0.0, %v3086
    %v3119 = vsub.f32 0.0, %v3087
    %v3120 = vsub.f32 0.0, %v3088
    %v3121 = vsub.f32 0.0, %v3089
    %v3122 = vsub.f32 0.0, %v3090
    %v3123 = vsub.f32 0.0, %v3091
    %v3124 = vsub.f32 0.0, %v3092
    %v3125 = vsub.f32 0.0, %v3093
    %v3126 = vmul.f32 %v3094, 1.442695
    %v3127 = vpow.pop %v3126
    %v3128 = vmul.f32 %v3095, 1.442695
    %v3129 = vpow.pop %v3128
    %v3130 = vmul.f32 %v3096, 1.442695
    %v3131 = vpow.pop %v3130
    %v3132 = vmul.f32 %v3097, 1.442695
    %v3133 = vpow.pop %v3132
    %v3134 = vmul.f32 %v3098, 1.442695
    %v3135 = vpow.pop %v3134
    %v3136 = vmul.f32 %v3099, 1.442695
    %v3137 = vpow.pop %v3136
    %v3138 = vmul.f32 %v3100, 1.442695
    %v3139 = vpow.pop %v3138
    %v3140 = vmul.f32 %v3101, 1.442695
    %v3141 = vpow.pop %v3140
    %v3142 = vmul.f32 %v3102, 1.442695
    %v3143 = vpow.pop %v3142
    %v3144 = vmul.f32 %v3103, 1.442695
    %v3145 = vpow.pop %v3144
    %v3146 = vmul.f32 %v3104, 1.442695
    %v3147 = vpow.pop %v3146
    %v3148 = vmul.f32 %v3105, 1.442695
    %v3149 = vpow.pop %v3148
    %v3150 = vmul.f32 %v3106, 1.442695
    %v3151 = vpow.pop %v3150
    %v3152 = vmul.f32 %v3107, 1.442695
    %v3153 = vpow.pop %v3152
    %v3154 = vmul.f32 %v3108, 1.442695
    %v3155 = vpow.pop %v3154
    %v3156 = vmul.f32 %v3109, 1.442695
    %v3157 = vpow.pop %v3156
    %v3158 = vmul.f32 %v3110, 1.442695
    %v3159 = vpow.pop %v3158
    %v3160 = vmul.f32 %v3111, 1.442695
    %v3161 = vpow.pop %v3160
    %v3162 = vmul.f32 %v3112, 1.442695
    %v3163 = vpow.pop %v3162
    %v3164 = vmul.f32 %v3113, 1.442695
    %v3165 = vpow.pop %v3164
    %v3166 = vmul.f32 %v3114, 1.442695
    %v3167 = vpow.pop %v3166
    %v3168 = vmul.f32 %v3115, 1.442695
    %v3169 = vpow.pop %v3168
    %v3170 = vmul.f32 %v3116, 1.442695
    %v3171 = vpow.pop %v3170
    %v3172 = vmul.f32 %v3117, 1.442695
    %v3173 = vpow.pop %v3172
    %v3174 = vmul.f32 %v3118, 1.442695
    %v3175 = vpow.pop %v3174
    %v3176 = vmul.f32 %v3119, 1.442695
    %v3177 = vpow.pop %v3176
    %v3178 = vmul.f32 %v3120, 1.442695
    %v3179 = vpow.pop %v3178
    %v3180 = vmul.f32 %v3121, 1.442695
    %v3181 = vpow.pop %v3180
    %v3182 = vmul.f32 %v3122, 1.442695
    %v3183 = vpow.pop %v3182
    %v3184 = vmul.f32 %v3123, 1.442695
    %v3185 = vpow.pop %v3184
    %v3186 = vmul.f32 %v3124, 1.442695
    %v3187 = vpow.pop %v3186
    %v3188 = vmul.f32 %v3125, 1.442695
    %v3189 = vpow.pop %v3188
    %v3190 = vadd.f32 %v3127, 1.0
    %v3191 = vlog2.pop %v3190
    %v3192 = vmul.f32 %v3191, 0.6931472
    %v3193 = vmul.f32 -0.5, %v3127
    %v3194 = vadd.f32 %v3193, 1.0
    %v3195 = vmul.f32 %v3194, %v3127
    %v3196 = vand.u32 2147483647, %v3127
    %vm3197 = vcmp.lt.f32.partialorder %v3196, 0.0004427343
    %v3198 = vsel %vm3197, %v3195, %v3192
    %v3199 = vadd.f32 %v3129, 1.0
    %v3200 = vlog2.pop %v3199
    %v3201 = vmul.f32 %v3200, 0.6931472
    %v3202 = vmul.f32 -0.5, %v3129
    %v3203 = vadd.f32 %v3202, 1.0
    %v3204 = vmul.f32 %v3203, %v3129
    %v3205 = vand.u32 2147483647, %v3129
    %vm3206 = vcmp.lt.f32.partialorder %v3205, 0.0004427343
    %v3207 = vsel %vm3206, %v3204, %v3201
    %v3208 = vadd.f32 %v3131, 1.0
    %v3209 = vlog2.pop %v3208
    %v3210 = vmul.f32 %v3209, 0.6931472
    %v3211 = vmul.f32 -0.5, %v3131
    %v3212 = vadd.f32 %v3211, 1.0
    %v3213 = vmul.f32 %v3212, %v3131
    %v3214 = vand.u32 2147483647, %v3131
    %vm3215 = vcmp.lt.f32.partialorder %v3214, 0.0004427343
    %v3216 = vsel %vm3215, %v3213, %v3210
    %v3217 = vadd.f32 %v3133, 1.0
    %v3218 = vlog2.pop %v3217
    %v3219 = vmul.f32 %v3218, 0.6931472
    %v3220 = vmul.f32 -0.5, %v3133
    %v3221 = vadd.f32 %v3220, 1.0
    %v3222 = vmul.f32 %v3221, %v3133
    %v3223 = vand.u32 2147483647, %v3133
    %vm3224 = vcmp.lt.f32.partialorder %v3223, 0.0004427343
    %v3225 = vsel %vm3224, %v3222, %v3219
    %v3226 = vadd.f32 %v3135, 1.0
    %v3227 = vlog2.pop %v3226
    %v3228 = vmul.f32 %v3227, 0.6931472
    %v3229 = vmul.f32 -0.5, %v3135
    %v3230 = vadd.f32 %v3229, 1.0
    %v3231 = vmul.f32 %v3230, %v3135
    %v3232 = vand.u32 2147483647, %v3135
    %vm3233 = vcmp.lt.f32.partialorder %v3232, 0.0004427343
    %v3234 = vsel %vm3233, %v3231, %v3228
    %v3235 = vadd.f32 %v3137, 1.0
    %v3236 = vlog2.pop %v3235
    %v3237 = vmul.f32 %v3236, 0.6931472
    %v3238 = vmul.f32 -0.5, %v3137
    %v3239 = vadd.f32 %v3238, 1.0
    %v3240 = vmul.f32 %v3239, %v3137
    %v3241 = vand.u32 2147483647, %v3137
    %vm3242 = vcmp.lt.f32.partialorder %v3241, 0.0004427343
    %v3243 = vsel %vm3242, %v3240, %v3237
    %v3244 = vadd.f32 %v3139, 1.0
    %v3245 = vlog2.pop %v3244
    %v3246 = vmul.f32 %v3245, 0.6931472
    %v3247 = vmul.f32 -0.5, %v3139
    %v3248 = vadd.f32 %v3247, 1.0
    %v3249 = vmul.f32 %v3248, %v3139
    %v3250 = vand.u32 2147483647, %v3139
    %vm3251 = vcmp.lt.f32.partialorder %v3250, 0.0004427343
    %v3252 = vsel %vm3251, %v3249, %v3246
    %v3253 = vadd.f32 %v3141, 1.0
    %v3254 = vlog2.pop %v3253
    %v3255 = vmul.f32 %v3254, 0.6931472
    %v3256 = vmul.f32 -0.5, %v3141
    %v3257 = vadd.f32 %v3256, 1.0
    %v3258 = vmul.f32 %v3257, %v3141
    %v3259 = vand.u32 2147483647, %v3141
    %vm3260 = vcmp.lt.f32.partialorder %v3259, 0.0004427343
    %v3261 = vsel %vm3260, %v3258, %v3255
    %v3262 = vadd.f32 %v3143, 1.0
    %v3263 = vlog2.pop %v3262
    %v3264 = vmul.f32 %v3263, 0.6931472
    %v3265 = vmul.f32 -0.5, %v3143
    %v3266 = vadd.f32 %v3265, 1.0
    %v3267 = vmul.f32 %v3266, %v3143
    %v3268 = vand.u32 2147483647, %v3143
    %vm3269 = vcmp.lt.f32.partialorder %v3268, 0.0004427343
    %v3270 = vsel %vm3269, %v3267, %v3264
    %v3271 = vadd.f32 %v3145, 1.0
    %v3272 = vlog2.pop %v3271
    %v3273 = vmul.f32 %v3272, 0.6931472
    %v3274 = vmul.f32 -0.5, %v3145
    %v3275 = vadd.f32 %v3274, 1.0
    %v3276 = vmul.f32 %v3275, %v3145
    %v3277 = vand.u32 2147483647, %v3145
    %vm3278 = vcmp.lt.f32.partialorder %v3277, 0.0004427343
    %v3279 = vsel %vm3278, %v3276, %v3273
    %v3280 = vadd.f32 %v3147, 1.0
    %v3281 = vlog2.pop %v3280
    %v3282 = vmul.f32 %v3281, 0.6931472
    %v3283 = vmul.f32 -0.5, %v3147
    %v3284 = vadd.f32 %v3283, 1.0
    %v3285 = vmul.f32 %v3284, %v3147
    %v3286 = vand.u32 2147483647, %v3147
    %vm3287 = vcmp.lt.f32.partialorder %v3286, 0.0004427343
    %v3288 = vsel %vm3287, %v3285, %v3282
    %v3289 = vadd.f32 %v3149, 1.0
    %v3290 = vlog2.pop %v3289
    %v3291 = vmul.f32 %v3290, 0.6931472
    %v3292 = vmul.f32 -0.5, %v3149
    %v3293 = vadd.f32 %v3292, 1.0
    %v3294 = vmul.f32 %v3293, %v3149
    %v3295 = vand.u32 2147483647, %v3149
    %vm3296 = vcmp.lt.f32.partialorder %v3295, 0.0004427343
    %v3297 = vsel %vm3296, %v3294, %v3291
    %v3298 = vadd.f32 %v3151, 1.0
    %v3299 = vlog2.pop %v3298
    %v3300 = vmul.f32 %v3299, 0.6931472
    %v3301 = vmul.f32 -0.5, %v3151
    %v3302 = vadd.f32 %v3301, 1.0
    %v3303 = vmul.f32 %v3302, %v3151
    %v3304 = vand.u32 2147483647, %v3151
    %vm3305 = vcmp.lt.f32.partialorder %v3304, 0.0004427343
    %v3306 = vsel %vm3305, %v3303, %v3300
    %v3307 = vadd.f32 %v3153, 1.0
    %v3308 = vlog2.pop %v3307
    %v3309 = vmul.f32 %v3308, 0.6931472
    %v3310 = vmul.f32 -0.5, %v3153
    %v3311 = vadd.f32 %v3310, 1.0
    %v3312 = vmul.f32 %v3311, %v3153
    %v3313 = vand.u32 2147483647, %v3153
    %vm3314 = vcmp.lt.f32.partialorder %v3313, 0.0004427343
    %v3315 = vsel %vm3314, %v3312, %v3309
    %v3316 = vadd.f32 %v3155, 1.0
    %v3317 = vlog2.pop %v3316
    %v3318 = vmul.f32 %v3317, 0.6931472
    %v3319 = vmul.f32 -0.5, %v3155
    %v3320 = vadd.f32 %v3319, 1.0
    %v3321 = vmul.f32 %v3320, %v3155
    %v3322 = vand.u32 2147483647, %v3155
    %vm3323 = vcmp.lt.f32.partialorder %v3322, 0.0004427343
    %v3324 = vsel %vm3323, %v3321, %v3318
    %v3325 = vadd.f32 %v3157, 1.0
    %v3326 = vlog2.pop %v3325
    %v3327 = vmul.f32 %v3326, 0.6931472
    %v3328 = vmul.f32 -0.5, %v3157
    %v3329 = vadd.f32 %v3328, 1.0
    %v3330 = vmul.f32 %v3329, %v3157
    %v3331 = vand.u32 2147483647, %v3157
    %vm3332 = vcmp.lt.f32.partialorder %v3331, 0.0004427343
    %v3333 = vsel %vm3332, %v3330, %v3327
    %v3334 = vadd.f32 %v3159, 1.0
    %v3335 = vlog2.pop %v3334
    %v3336 = vmul.f32 %v3335, 0.6931472
    %v3337 = vmul.f32 -0.5, %v3159
    %v3338 = vadd.f32 %v3337, 1.0
    %v3339 = vmul.f32 %v3338, %v3159
    %v3340 = vand.u32 2147483647, %v3159
    %vm3341 = vcmp.lt.f32.partialorder %v3340, 0.0004427343
    %v3342 = vsel %vm3341, %v3339, %v3336
    %v3343 = vadd.f32 %v3161, 1.0
    %v3344 = vlog2.pop %v3343
    %v3345 = vmul.f32 %v3344, 0.6931472
    %v3346 = vmul.f32 -0.5, %v3161
    %v3347 = vadd.f32 %v3346, 1.0
    %v3348 = vmul.f32 %v3347, %v3161
    %v3349 = vand.u32 2147483647, %v3161
    %vm3350 = vcmp.lt.f32.partialorder %v3349, 0.0004427343
    %v3351 = vsel %vm3350, %v3348, %v3345
    %v3352 = vadd.f32 %v3163, 1.0
    %v3353 = vlog2.pop %v3352
    %v3354 = vmul.f32 %v3353, 0.6931472
    %v3355 = vmul.f32 -0.5, %v3163
    %v3356 = vadd.f32 %v3355, 1.0
    %v3357 = vmul.f32 %v3356, %v3163
    %v3358 = vand.u32 2147483647, %v3163
    %vm3359 = vcmp.lt.f32.partialorder %v3358, 0.0004427343
    %v3360 = vsel %vm3359, %v3357, %v3354
    %v3361 = vadd.f32 %v3165, 1.0
    %v3362 = vlog2.pop %v3361
    %v3363 = vmul.f32 %v3362, 0.6931472
    %v3364 = vmul.f32 -0.5, %v3165
    %v3365 = vadd.f32 %v3364, 1.0
    %v3366 = vmul.f32 %v3365, %v3165
    %v3367 = vand.u32 2147483647, %v3165
    %vm3368 = vcmp.lt.f32.partialorder %v3367, 0.0004427343
    %v3369 = vsel %vm3368, %v3366, %v3363
    %v3370 = vadd.f32 %v3167, 1.0
    %v3371 = vlog2.pop %v3370
    %v3372 = vmul.f32 %v3371, 0.6931472
    %v3373 = vmul.f32 -0.5, %v3167
    %v3374 = vadd.f32 %v3373, 1.0
    %v3375 = vmul.f32 %v3374, %v3167
    %v3376 = vand.u32 2147483647, %v3167
    %vm3377 = vcmp.lt.f32.partialorder %v3376, 0.0004427343
    %v3378 = vsel %vm3377, %v3375, %v3372
    %v3379 = vadd.f32 %v3169, 1.0
    %v3380 = vlog2.pop %v3379
    %v3381 = vmul.f32 %v3380, 0.6931472
    %v3382 = vmul.f32 -0.5, %v3169
    %v3383 = vadd.f32 %v3382, 1.0
    %v3384 = vmul.f32 %v3383, %v3169
    %v3385 = vand.u32 2147483647, %v3169
    %vm3386 = vcmp.lt.f32.partialorder %v3385, 0.0004427343
    %v3387 = vsel %vm3386, %v3384, %v3381
    %v3388 = vadd.f32 %v3171, 1.0
    %v3389 = vlog2.pop %v3388
    %v3390 = vmul.f32 %v3389, 0.6931472
    %v3391 = vmul.f32 -0.5, %v3171
    %v3392 = vadd.f32 %v3391, 1.0
    %v3393 = vmul.f32 %v3392, %v3171
    %v3394 = vand.u32 2147483647, %v3171
    %vm3395 = vcmp.lt.f32.partialorder %v3394, 0.0004427343
    %v3396 = vsel %vm3395, %v3393, %v3390
    %v3397 = vadd.f32 %v3173, 1.0
    %v3398 = vlog2.pop %v3397
    %v3399 = vmul.f32 %v3398, 0.6931472
    %v3400 = vmul.f32 -0.5, %v3173
    %v3401 = vadd.f32 %v3400, 1.0
    %v3402 = vmul.f32 %v3401, %v3173
    %v3403 = vand.u32 2147483647, %v3173
    %vm3404 = vcmp.lt.f32.partialorder %v3403, 0.0004427343
    %v3405 = vsel %vm3404, %v3402, %v3399
    %v3406 = vadd.f32 %v3175, 1.0
    %v3407 = vlog2.pop %v3406
    %v3408 = vmul.f32 %v3407, 0.6931472
    %v3409 = vmul.f32 -0.5, %v3175
    %v3410 = vadd.f32 %v3409, 1.0
    %v3411 = vmul.f32 %v3410, %v3175
    %v3412 = vand.u32 2147483647, %v3175
    %vm3413 = vcmp.lt.f32.partialorder %v3412, 0.0004427343
    %v3414 = vsel %vm3413, %v3411, %v3408
    %v3415 = vadd.f32 %v3177, 1.0
    %v3416 = vlog2.pop %v3415
    %v3417 = vmul.f32 %v3416, 0.6931472
    %v3418 = vmul.f32 -0.5, %v3177
    %v3419 = vadd.f32 %v3418, 1.0
    %v3420 = vmul.f32 %v3419, %v3177
    %v3421 = vand.u32 2147483647, %v3177
    %vm3422 = vcmp.lt.f32.partialorder %v3421, 0.0004427343
    %v3423 = vsel %vm3422, %v3420, %v3417
    %v3424 = vadd.f32 %v3179, 1.0
    %v3425 = vlog2.pop %v3424
    %v3426 = vmul.f32 %v3425, 0.6931472
    %v3427 = vmul.f32 -0.5, %v3179
    %v3428 = vadd.f32 %v3427, 1.0
    %v3429 = vmul.f32 %v3428, %v3179
    %v3430 = vand.u32 2147483647, %v3179
    %vm3431 = vcmp.lt.f32.partialorder %v3430, 0.0004427343
    %v3432 = vsel %vm3431, %v3429, %v3426
    %v3433 = vadd.f32 %v3181, 1.0
    %v3434 = vlog2.pop %v3433
    %v3435 = vmul.f32 %v3434, 0.6931472
    %v3436 = vmul.f32 -0.5, %v3181
    %v3437 = vadd.f32 %v3436, 1.0
    %v3438 = vmul.f32 %v3437, %v3181
    %v3439 = vand.u32 2147483647, %v3181
    %vm3440 = vcmp.lt.f32.partialorder %v3439, 0.0004427343
    %v3441 = vsel %vm3440, %v3438, %v3435
    %v3442 = vadd.f32 %v3183, 1.0
    %v3443 = vlog2.pop %v3442
    %v3444 = vmul.f32 %v3443, 0.6931472
    %v3445 = vmul.f32 -0.5, %v3183
    %v3446 = vadd.f32 %v3445, 1.0
    %v3447 = vmul.f32 %v3446, %v3183
    %v3448 = vand.u32 2147483647, %v3183
    %vm3449 = vcmp.lt.f32.partialorder %v3448, 0.0004427343
    %v3450 = vsel %vm3449, %v3447, %v3444
    %v3451 = vadd.f32 %v3185, 1.0
    %v3452 = vlog2.pop %v3451
    %v3453 = vmul.f32 %v3452, 0.6931472
    %v3454 = vmul.f32 -0.5, %v3185
    %v3455 = vadd.f32 %v3454, 1.0
    %v3456 = vmul.f32 %v3455, %v3185
    %v3457 = vand.u32 2147483647, %v3185
    %vm3458 = vcmp.lt.f32.partialorder %v3457, 0.0004427343
    %v3459 = vsel %vm3458, %v3456, %v3453
    %v3460 = vadd.f32 %v3187, 1.0
    %v3461 = vlog2.pop %v3460
    %v3462 = vmul.f32 %v3461, 0.6931472
    %v3463 = vmul.f32 -0.5, %v3187
    %v3464 = vadd.f32 %v3463, 1.0
    %v3465 = vmul.f32 %v3464, %v3187
    %v3466 = vand.u32 2147483647, %v3187
    %vm3467 = vcmp.lt.f32.partialorder %v3466, 0.0004427343
    %v3468 = vsel %vm3467, %v3465, %v3462
    %v3469 = vadd.f32 %v3189, 1.0
    %v3470 = vlog2.pop %v3469
    %v3471 = vmul.f32 %v3470, 0.6931472
    %v3472 = vmul.f32 -0.5, %v3189
    %v3473 = vadd.f32 %v3472, 1.0
    %v3474 = vmul.f32 %v3473, %v3189
    %v3475 = vand.u32 2147483647, %v3189
    %vm3476 = vcmp.lt.f32.partialorder %v3475, 0.0004427343
    %v3477 = vsel %vm3476, %v3474, %v3471
    %v3478 = vadd.f32 %v3030, %v3198
    %v3479 = vadd.f32 %v3031, %v3207
    %v3480 = vadd.f32 %v3032, %v3216
    %v3481 = vadd.f32 %v3033, %v3225
    %v3482 = vadd.f32 %v3034, %v3234
    %v3483 = vadd.f32 %v3035, %v3243
    %v3484 = vadd.f32 %v3036, %v3252
    %v3485 = vadd.f32 %v3037, %v3261
    %v3486 = vadd.f32 %v3038, %v3270
    %v3487 = vadd.f32 %v3039, %v3279
    %v3488 = vadd.f32 %v3040, %v3288
    %v3489 = vadd.f32 %v3041, %v3297
    %v3490 = vadd.f32 %v3042, %v3306
    %v3491 = vadd.f32 %v3043, %v3315
    %v3492 = vadd.f32 %v3044, %v3324
    %v3493 = vadd.f32 %v3045, %v3333
    %v3494 = vadd.f32 %v3046, %v3342
    %v3495 = vadd.f32 %v3047, %v3351
    %v3496 = vadd.f32 %v3048, %v3360
    %v3497 = vadd.f32 %v3049, %v3369
    %v3498 = vadd.f32 %v3050, %v3378
    %v3499 = vadd.f32 %v3051, %v3387
    %v3500 = vadd.f32 %v3052, %v3396
    %v3501 = vadd.f32 %v3053, %v3405
    %v3502 = vadd.f32 %v3054, %v3414
    %v3503 = vadd.f32 %v3055, %v3423
    %v3504 = vadd.f32 %v3056, %v3432
    %v3505 = vadd.f32 %v3057, %v3441
    %v3506 = vadd.f32 %v3058, %v3450
    %v3507 = vadd.f32 %v3059, %v3459
    %v3508 = vadd.f32 %v3060, %v3468
    %v3509 = vadd.f32 %v3061, %v3477
    %v3510 = vadd.f32 %v2998, %v3478
    %v3511 = vadd.f32 %v2999, %v3479
    %v3512 = vadd.f32 %v3000, %v3480
    %v3513 = vadd.f32 %v3001, %v3481
    %v3514 = vadd.f32 %v3002, %v3482
    %v3515 = vadd.f32 %v3003, %v3483
    %v3516 = vadd.f32 %v3004, %v3484
    %v3517 = vadd.f32 %v3005, %v3485
    %v3518 = vadd.f32 %v3006, %v3486
    %v3519 = vadd.f32 %v3007, %v3487
    %v3520 = vadd.f32 %v3008, %v3488
    %v3521 = vadd.f32 %v3009, %v3489
    %v3522 = vadd.f32 %v3010, %v3490
    %v3523 = vadd.f32 %v3011, %v3491
    %v3524 = vadd.f32 %v3012, %v3492
    %v3525 = vadd.f32 %v3013, %v3493
    %v3526 = vadd.f32 %v3014, %v3494
    %v3527 = vadd.f32 %v3015, %v3495
    %v3528 = vadd.f32 %v3016, %v3496
    %v3529 = vadd.f32 %v3017, %v3497
    %v3530 = vadd.f32 %v3018, %v3498
    %v3531 = vadd.f32 %v3019, %v3499
    %v3532 = vadd.f32 %v3020, %v3500
    %v3533 = vadd.f32 %v3021, %v3501
    %v3534 = vadd.f32 %v3022, %v3502
    %v3535 = vadd.f32 %v3023, %v3503
    %v3536 = vadd.f32 %v3024, %v3504
    %v3537 = vadd.f32 %v3025, %v3505
    %v3538 = vadd.f32 %v3026, %v3506
    %v3539 = vadd.f32 %v3027, %v3507
    %v3540 = vadd.f32 %v3028, %v3508
    %v3541 = vadd.f32 %v3029, %v3509
    %v3542 = vmul.f32 %v2486, %v3510
    %v3543 = vmul.f32 %v2487, %v3511
    %v3544 = vmul.f32 %v2488, %v3512
    %v3545 = vmul.f32 %v2489, %v3513
    %v3546 = vmul.f32 %v2490, %v3514
    %v3547 = vmul.f32 %v2491, %v3515
    %v3548 = vmul.f32 %v2492, %v3516
    %v3549 = vmul.f32 %v2493, %v3517
    %v3550 = vmul.f32 %v2494, %v3518
    %v3551 = vmul.f32 %v2495, %v3519
    %v3552 = vmul.f32 %v2496, %v3520
    %v3553 = vmul.f32 %v2497, %v3521
    %v3554 = vmul.f32 %v2498, %v3522
    %v3555 = vmul.f32 %v2499, %v3523
    %v3556 = vmul.f32 %v2500, %v3524
    %v3557 = vmul.f32 %v2501, %v3525
    %v3558 = vmul.f32 %v2502, %v3526
    %v3559 = vmul.f32 %v2503, %v3527
    %v3560 = vmul.f32 %v2504, %v3528
    %v3561 = vmul.f32 %v2505, %v3529
    %v3562 = vmul.f32 %v2506, %v3530
    %v3563 = vmul.f32 %v2507, %v3531
    %v3564 = vmul.f32 %v2508, %v3532
    %v3565 = vmul.f32 %v2509, %v3533
    %v3566 = vmul.f32 %v2510, %v3534
    %v3567 = vmul.f32 %v2511, %v3535
    %v3568 = vmul.f32 %v2512, %v3536
    %v3569 = vmul.f32 %v2513, %v3537
    %v3570 = vmul.f32 %v2514, %v3538
    %v3571 = vmul.f32 %v2515, %v3539
    %v3572 = vmul.f32 %v2516, %v3540
    %v3573 = vmul.f32 %v2517, %v3541
    %vm3574 = vcmask 7168
    %v3575 = vsel %vm3574, %v3542, 0.0
    %v3576 = vsel %vm3574, %v3543, 0.0
    %v3577 = vadd.f32 %v3575, %v3576
    %v3578 = vsel %vm3574, %v3544, 0.0
    %v3579 = vadd.f32 %v3577, %v3578
    %v3580 = vsel %vm3574, %v3545, 0.0
    %v3581 = vadd.f32 %v3579, %v3580
    %v3582 = vsel %vm3574, %v3546, 0.0
    %v3583 = vadd.f32 %v3581, %v3582
    %v3584 = vsel %vm3574, %v3547, 0.0
    %v3585 = vadd.f32 %v3583, %v3584
    %v3586 = vsel %vm3574, %v3548, 0.0
    %v3587 = vadd.f32 %v3585, %v3586
    %v3588 = vsel %vm3574, %v3549, 0.0
    %v3589 = vadd.f32 %v3587, %v3588
    %v3590 = vsel %vm3574, %v3550, 0.0
    %v3591 = vadd.f32 %v3589, %v3590
    %v3592 = vsel %vm3574, %v3551, 0.0
    %v3593 = vadd.f32 %v3591, %v3592
    %v3594 = vsel %vm3574, %v3552, 0.0
    %v3595 = vadd.f32 %v3593, %v3594
    %v3596 = vsel %vm3574, %v3553, 0.0
    %v3597 = vadd.f32 %v3595, %v3596
    %v3598 = vsel %vm3574, %v3554, 0.0
    %v3599 = vadd.f32 %v3597, %v3598
    %v3600 = vsel %vm3574, %v3555, 0.0
    %v3601 = vadd.f32 %v3599, %v3600
    %v3602 = vsel %vm3574, %v3556, 0.0
    %v3603 = vadd.f32 %v3601, %v3602
    %v3604 = vsel %vm3574, %v3557, 0.0
    %v3605 = vadd.f32 %v3603, %v3604
    %v3606 = vsel %vm3574, %v3558, 0.0
    %v3607 = vadd.f32 %v3605, %v3606
    %v3608 = vsel %vm3574, %v3559, 0.0
    %v3609 = vadd.f32 %v3607, %v3608
    %v3610 = vsel %vm3574, %v3560, 0.0
    %v3611 = vadd.f32 %v3609, %v3610
    %v3612 = vsel %vm3574, %v3561, 0.0
    %v3613 = vadd.f32 %v3611, %v3612
    %v3614 = vsel %vm3574, %v3562, 0.0
    %v3615 = vadd.f32 %v3613, %v3614
    %v3616 = vsel %vm3574, %v3563, 0.0
    %v3617 = vadd.f32 %v3615, %v3616
    %v3618 = vsel %vm3574, %v3564, 0.0
    %v3619 = vadd.f32 %v3617, %v3618
    %v3620 = vsel %vm3574, %v3565, 0.0
    %v3621 = vadd.f32 %v3619, %v3620
    %v3622 = vsel %vm3574, %v3566, 0.0
    %v3623 = vadd.f32 %v3621, %v3622
    %v3624 = vsel %vm3574, %v3567, 0.0
    %v3625 = vadd.f32 %v3623, %v3624
    %v3626 = vsel %vm3574, %v3568, 0.0
    %v3627 = vadd.f32 %v3625, %v3626
    %v3628 = vsel %vm3574, %v3569, 0.0
    %v3629 = vadd.f32 %v3627, %v3628
    %v3630 = vsel %vm3574, %v3570, 0.0
    %v3631 = vadd.f32 %v3629, %v3630
    %v3632 = vsel %vm3574, %v3571, 0.0
    %v3633 = vadd.f32 %v3631, %v3632
    %v3634 = vsel %vm3574, %v3572, 0.0
    %v3635 = vadd.f32 %v3633, %v3634
    %v3636 = vsel %vm3574, %v3573, 0.0
    %v3637 = vadd.f32 %v3635, %v3636
    %3638 = vadd.xlane.f32.xlu0 %v3637
    %v3639 = vpop.xlane.xlu0 %3638
    %v3640 = vrot.slane %v3639, 4
    %v3641 = vadd.f32 %v3639, %v3640
    %v3642 = vrot.slane %v3641, 2
    %v3643 = vadd.f32 %v3641, %v3642
    %v3644 = vrot.slane %v3643, 1
    %v3645 = vadd.f32 %v3643, %v3644
    %s3646 = vtos %v3645
    %v3647 = vstv %s3646
    %vm3648 = vcmask 0
    %3649 = vst.msk [vmem:[#allocation3] sm:$0x1] %vm3648, %v3647
    // Predicated region
    $region30: #{pipeline_loss.3} parent=1 // pred_check
      _
    $region31: #{pipeline_loss.3} parent=1 // pred_check_branch
      %3651 = sbr.rel (0) target = $region33
    $region32: #{pipeline_loss.3} parent=1 // pred_region
      %s3653 = ssub.s32 16, 16
      %3654 = vsyncadd [#allocation4], %s3653
      %s3656 = sshll.u32 [#allocation3], 4
      %s3657 = int_to_ptr.vmem [resolvable:$true] %s3656
      %3659 = dma.vmem_to_hbm [thread:$0]  %s3657, 16, %s7, [#allocation4]
    $region33: #{pipeline_loss.3} parent=1 // pred_fallthru
      _
    // Predicated region
    $region34: #{pipeline_loss.3} parent=1 // pred_check
      _
    $region35: #{pipeline_loss.3} parent=1 // pred_check_branch
      %3661 = sbr.rel (0) target = $region37
    $region36: #{pipeline_loss.3} parent=1 // pred_region
      %3662 = dma.done [#allocation4], 16
    $region37: #{pipeline_loss.3} parent=1 // pred_fallthru
      _
    %3663 = vsyncpa [#allocation4], 1

</llo_original>
